<compile_context>
chip_gen: v7x
topology: tpu7x:2x2x1
jax: 0.10.0
libtpu: 0.0.40
codegen_flags: <defaults>
</compile_context>

<pallas_src>
import numpy as np
import jax
import jax.numpy as jnp
from jax import lax
from jax.experimental import pallas as pl
from jax.experimental.pallas import tpu as pltpu

BN_EPS = 1e-5
LANE = 128


# ------------------------------------------------------------------ fused kernel
def _make_fused_kernel(BB, Ch, A, boff):
    """boff: name -> (offset, length) into the packed bias slab (128-aligned)."""
    BBC, BBA = BB * Ch, BB * A

    def kernel(x_ref, wc_ref, pall_ref, m1_ref, p2e_ref, lw_ref, col_ref,
               amat_ref, gw0_ref, gw1_ref, gw2_ref, wfc_ref, esel_ref,
               bias_ref, o_ref):
        f32 = jnp.float32

        def bvec(name):                       # static, 128-aligned slice of bias slab
            o, n = boff[name]
            return bias_ref[:, o:o + n]       # (1, n)

        xf = x_ref[...]                                               # (BB*Ch, Cin*T)

        # --- Tception x3: banded conv (+bias), square, avgpool + branch concat, log
        y = jnp.dot(xf, wc_ref[...], preferred_element_type=f32) + bvec("bv")
        pooled = jnp.dot(y * y, pall_ref[...], preferred_element_type=f32)
        tfeat = jnp.log(pooled)                                       # (BB*Ch, nT*Tcat)

        # --- bn_t (folded) + 1x1 conv (kron block matmul) + LeakyReLU(0.01)
        mixed = jnp.dot(tfeat, m1_ref[...], preferred_element_type=f32) + bvec("b1")
        act = jnp.where(mixed >= 0.0, mixed, 0.01 * mixed)

        # --- AvgPool(1,2) + bn_s folded; lands directly in (row, nT*T2) graph layout
        out2 = jnp.dot(act, p2e_ref[...], preferred_element_type=f32) + bvec("h2")

        # --- local filter + per-brain-area mean aggregation (+bn), all batches at once
        loc = jnp.maximum(out2 * lw_ref[...] - col_ref[0], 0.0)          # (BB*Ch, F)
        h = (jnp.dot(amat_ref[...], loc, preferred_element_type=f32)
             + col_ref[1][0:BBA, :])                                     # (BB*A, F)

        # --- block-diagonal batch mask, derived from the fc row-selector constant
        smat = jnp.sum(esel_ref[...], axis=0)                            # (BB, BB*A)
        blkmask = lax.dot_general(smat, smat, (((0,), (0,)), ((), ())),
                                  preferred_element_type=f32)            # (BB*A, BB*A)

        # --- 3x dynamic graph convolution (per-batch via the block mask)
        def dgcn(xv, w_ref, bname):
            gram = lax.dot_general(xv, xv, (((1,), (1,)), ((), ())),
                                   preferred_element_type=f32)           # x x^T
            adj = blkmask * gram                                         # per-batch blocks
            rs = jnp.sum(adj, axis=1, keepdims=True) + 1.0               # + I row-sum
            rs = rs + (rs == 0.0).astype(f32)                            # zero-row guard
            d = lax.rsqrt(rs)                                            # rowsum^-1/2
            sup = jnp.dot(xv, w_ref[...], preferred_element_type=f32) + bvec(bname)
            ds = d * sup
            # D^-1/2 (A+I) D^-1/2 S  ==  d * ((A @ (d*S)) + d*S)
            z = jnp.dot(adj, ds, preferred_element_type=f32) + ds
            return jnp.maximum(d * z, 0.0)

        h = dgcn(h, gw0_ref, "g0")
        h = dgcn(h, gw1_ref, "g1")
        h = dgcn(h, gw2_ref, "g2")                                       # (BB*A, G)

        # --- fc head (bn_ folded offline), lane-padded to 128 -> unmasked store
        acc = jnp.zeros((BB, LANE), f32)
        for a in range(A):
            hb = jnp.dot(esel_ref[a], h, preferred_element_type=f32)     # (BB, G)
            acc = acc + jnp.dot(hb, wfc_ref[a], preferred_element_type=f32)
        o_ref[...] = acc + bvec("fc")

    return kernel


def tdgcn_forward(x, consts, boff, cfg):
    B, Cin, Ch, T = x.shape
    BB, A, C = cfg["BB"], cfg["area"], cfg["num_classes"]
    assert B == cfg["B"] and B % BB == 0
    nb = B // BB
    BBC = BB * Ch

    xf = jnp.transpose(x, (0, 2, 1, 3)).reshape(B * Ch, Cin * T)
    kernel = _make_fused_kernel(BB, Ch, A, boff)

    in_specs = [pl.BlockSpec((BBC, Cin * T), lambda i: (i, 0))]
    for arr in consts:
        in_specs.append(pl.BlockSpec(arr.shape, lambda i, _n=arr.ndim: (0,) * _n))

    out = pl.pallas_call(
        kernel,
        grid=(nb,),
        in_specs=in_specs,
        out_specs=pl.BlockSpec((BB, LANE), lambda i: (i, 0)),
        out_shape=jax.ShapeDtypeStruct((B, LANE), jnp.float32),
        compiler_params=pltpu.CompilerParams(
            dimension_semantics=("arbitrary",) if nb == 1 else ("parallel",)),
    )(xf, *consts)
    return out[:, :C]


# ------------------------------------------------------------------ parameters
def _xavier(key, shape, gain=1.0):
    a = gain * np.sqrt(6.0 / (shape[0] + shape[1]))
    return jax.random.uniform(key, shape, jnp.float32, -a, a)


def init_tdgcn_params(key, num_classes, input_size, sampling_rate, num_T,
                      out_graph, pool, pool_step_rate, idx_graph):
    in_chan, ch, t0 = input_size
    hidden = t0
    window = [0.5, 0.25, 0.125]
    ks = [int(w * sampling_rate) for w in window]
    step = int(pool_step_rate * pool)

    tcs = [t0 - k + 1 for k in ks]
    tps = [(tc - pool) // step + 1 for tc in tcs]
    t_cat = sum(tps)
    t2 = (t_cat - 2) // 2 + 1
    feat = num_T * t2
    area = len(idx_graph)

    # Aggregator.get_idx arithmetic -> channel group bounds
    idx_full = [0]
    for v in idx_graph:
        idx_full.append(idx_full[-1] + v)
    bounds = []
    for i in range(area):
        s = idx_full[i]
        e = idx_full[i + 1] if i < area - 1 else ch
        bounds.append((s, e))

    keys = jax.random.split(key, 16)
    p = {}
    for n, (kk, K) in enumerate(zip(keys[:3], ks), start=1):
        p[f"w_t{n}"] = 0.1 * jax.random.normal(kk, (num_T, in_chan, 1, K), jnp.float32)
        p[f"b_t{n}"] = jnp.zeros((num_T,), jnp.float32)
    p["w_1x1"] = 0.1 * jax.random.normal(keys[3], (num_T, num_T), jnp.float32)
    p["b_1x1"] = jnp.zeros((num_T,), jnp.float32)

    def bn_eval(n):
        gamma = jnp.ones((n,), jnp.float32)
        beta = jnp.zeros((n,), jnp.float32)
        mean = jnp.zeros((n,), jnp.float32)
        var = jnp.ones((n,), jnp.float32)
        scale = gamma / jnp.sqrt(var + BN_EPS)
        shift = beta - mean * scale
        return scale, shift

    p["bnt_scale"], p["bnt_shift"] = bn_eval(num_T)
    p["bns_scale"], p["bns_shift"] = bn_eval(num_T)
    p["bn1_scale"], p["bn1_shift"] = bn_eval(area)
    p["bn2_scale"], p["bn2_shift"] = bn_eval(area)

    p["local_w"] = _xavier(keys[4], (ch, feat))
    p["local_b"] = jnp.zeros((1, ch, 1), jnp.float32)

    gdims = [(feat, hidden), (hidden, hidden), (hidden, out_graph)]
    for li, (fi, fo) in enumerate(gdims):
        p[f"gcn_w{li}"] = _xavier(keys[5 + li], (fi, fo), gain=1.414)
        p[f"gcn_b{li}"] = jnp.zeros((1, fo), jnp.float32)

    p["global_adj"] = _xavier(keys[8], (area, area))  # exists but unused in forward
    p["fc_w"] = _xavier(keys[9], (area * out_graph, num_classes))
    p["fc_b"] = jnp.zeros((1, num_classes), jnp.float32)

    cfg = dict(T=t0, Cin=in_chan, Ch=ch, nT=num_T, pool=pool, step=step,
               ks=tuple(ks), bounds=tuple(bounds), num_classes=num_classes,
               out_graph=out_graph, hidden=hidden)
    return p, cfg


# ------------------------------------------------- constant (weight-matrix) prep
def _pick_block_batch(B, Ch, target_rows=256):
    bb = max(1, min(B, max(1, target_rows // max(Ch, 1))))
    while B % bb:
        bb -= 1
    if B // bb > 1 and bb % 8 != 0:
        bb = B                      # small / odd batches: one program for all of it
    return bb


def prepare_tdgcn_consts(p, cfg, B):
    """Build the lane-dense matmul operands consumed by the fused kernel."""
    T, Cin, Ch, nT = cfg["T"], cfg["Cin"], cfg["Ch"], cfg["nT"]
    pool, step, ks, bounds = cfg["pool"], cfg["step"], cfg["ks"], cfg["bounds"]
    C, G = cfg["num_classes"], cfg["out_graph"]
    tcs = [T - k + 1 for k in ks]
    tps = [(tc - pool) // step + 1 for tc in tcs]
    Tcat = sum(tps)
    T2 = (Tcat - 2) // 2 + 1
    F = nT * T2
    A = len(bounds)
    BB = _pick_block_batch(B, Ch)
    cfg["B"], cfg["BB"], cfg["area"] = B, BB, A

    # (a) Tception: banded conv matrices + bias vectors + pool/placement matrices
    wcs, bvs, pps = [], [], []
    off = 0
    for wname, bname, K, Tc, Tp in zip(("w_t1", "w_t2", "w_t3"),
                                       ("b_t1", "b_t2", "b_t3"), ks, tcs, tps):
        w = np.asarray(p[wname], np.float32)               # (nT, Cin, 1, K)
        diff = np.arange(T)[:, None] - np.arange(Tc)[None, :]
        valid = ((diff >= 0) & (diff < K)).astype(np.float32)
        idxk = np.clip(diff, 0, K - 1)
        band = w[:, :, 0, :][:, :, idxk] * valid            # (nT, Cin, T, Tc)
        wcs.append(np.transpose(band, (1, 2, 0, 3)).reshape(Cin * T, nT * Tc))
        bvs.append(np.repeat(np.asarray(p[bname], np.float32), Tc))
        pm = np.zeros((Tc, Tcat), np.float32)
        for u in range(Tp):
            pm[u * step:u * step + pool, off + u] = 1.0 / pool
        pps.append(np.kron(np.eye(nT, dtype=np.float32), pm))
        off += Tp
    wc_all = np.concatenate(wcs, axis=1)                    # (Cin*T, nT*sum(Tc))
    bv_all = np.concatenate(bvs)                            # (nT*sum(Tc),)
    p_all = np.concatenate(pps, axis=0)                     # (nT*sum(Tc), nT*Tcat)

    # (b) bn_t folded into 1x1 conv; 1x1 conv as kron block matmul
    s1 = np.asarray(p["bnt_scale"], np.float32)
    h1 = np.asarray(p["bnt_shift"], np.float32)
    W1 = np.asarray(p["w_1x1"], np.float32)
    b1 = np.asarray(p["b_1x1"], np.float32)
    W1eff = W1 * s1[None, :]
    b1eff = b1 + W1 @ h1
    m1 = np.kron(W1eff.T, np.eye(Tcat, dtype=np.float32))   # (nT*Tcat, nT*Tcat)
    b1c = np.repeat(b1eff, Tcat)

    # (c) AvgPool(1,2) + bn_s folded into a block-diagonal matmul
    s2 = np.asarray(p["bns_scale"], np.float32)
    h2 = np.asarray(p["bns_shift"], np.float32)
    base = np.zeros((Tcat, T2), np.float32)
    for u in range(T2):
        base[2 * u:2 * u + 2, u] = 0.5
    p2e = np.kron(np.diag(s2), base)                        # (nT*Tcat, nT*T2)
    h2c = np.repeat(h2, T2)

    # (d) local filter (tiled over batch block) + aggregator(+bn) block-diag matmul
    lw = np.asarray(p["local_w"], np.float32)               # (Ch, F)
    lb = np.asarray(p["local_b"], np.float32).reshape(Ch, 1)
    lw_blk = np.tile(lw, (BB, 1))                           # (BB*Ch, F)
    lb_blk = np.tile(lb, (BB, 1))                           # (BB*Ch, 1)
    sa = np.asarray(p["bn1_scale"], np.float32)
    ha = np.asarray(p["bn1_shift"], np.float32)
    am = np.zeros((A, Ch), np.float32)
    for a, (s, e) in enumerate(bounds):
        am[a, s:e] = 1.0 / (e - s)
    amat_blk = np.kron(np.eye(BB, dtype=np.float32), am * sa[:, None])   # (BB*A, BB*Ch)
    colvecs = np.zeros((2, BB * Ch, 1), np.float32)
    colvecs[0] = lb_blk
    colvecs[1, :BB * A, 0] = np.tile(ha, BB)                # hb1 in rows 0..BB*A

    # (e) fc head: fold bn_ into the weights, pad lanes to 128, per-area selectors
    sb2 = np.asarray(p["bn2_scale"], np.float32)
    hb2 = np.asarray(p["bn2_shift"], np.float32)
    Wfc = np.asarray(p["fc_w"], np.float32)                 # (A*G, C)
    bfc = np.asarray(p["fc_b"], np.float32).reshape(-1)     # (C,)
    Wfc3 = Wfc.reshape(A, G, C)
    wfc_eff = Wfc3 * sb2[:, None, None]
    bfc_eff = bfc + np.einsum("a,agc->c", hb2, Wfc3)
    wfc_pad = np.zeros((A, G, LANE), np.float32)
    wfc_pad[:, :, :C] = wfc_eff
    bfc_pad = np.zeros((LANE,), np.float32)
    bfc_pad[:C] = bfc_eff
    esel = np.zeros((A, BB, BB * A), np.float32)
    for a in range(A):
        for b in range(BB):
            esel[a, b, b * A + a] = 1.0

    # (f) one packed, 128-aligned bias slab (single DMA instead of 7)
    bias_list = [("bv", bv_all), ("b1", b1c), ("h2", h2c),
                 ("g0", np.asarray(p["gcn_b0"], np.float32).reshape(-1)),
                 ("g1", np.asarray(p["gcn_b1"], np.float32).reshape(-1)),
                 ("g2", np.asarray(p["gcn_b2"], np.float32).reshape(-1)),
                 ("fc", bfc_pad)]
    chunks, boff, cur = [], {}, 0
    for name, v in bias_list:
        v = np.asarray(v, np.float32).reshape(-1)
        boff[name] = (cur, int(v.size))
        pad = (-v.size) % LANE
        chunks.append(np.concatenate([v, np.zeros(pad, np.float32)]))
        cur += v.size + pad
    bias_slab = np.concatenate(chunks)[None, :]             # (1, total), aligned segs

    consts = (wc_all, p_all, m1, p2e, lw_blk, colvecs, amat_blk,
              np.asarray(p["gcn_w0"], np.float32),
              np.asarray(p["gcn_w1"], np.float32),
              np.asarray(p["gcn_w2"], np.float32),
              wfc_pad, esel, bias_slab)
    return tuple(jnp.asarray(c, jnp.float32) for c in consts), boff


# ------------------------------------------------------------- pure-JAX reference
def tdgcn_reference(x, p, cfg):
    pool, step, bounds = cfg["pool"], cfg["step"], cfg["bounds"]
    B, Cin, Ch, T = x.shape
    nT = cfg["nT"]

    def tception(w, b):
        K = w.shape[-1]
        Tc = T - K + 1
        out = jnp.zeros((B, nT, Ch, Tc), jnp.float32)
        for o in range(nT):
            acc = jnp.zeros((B, Ch, Tc), jnp.float32)
            for i in range(Cin):
                for k in range(K):
                    acc = acc + x[:, i, :, k:k + Tc] * w[o, i, 0, k]
            out = out.at[:, o].set(acc + b[o])
        sq = out * out
        Tp = (Tc - pool) // step + 1
        pooled = jnp.stack([sq[..., u * step:u * step + pool].mean(-1)
                            for u in range(Tp)], axis=-1)
        return jnp.log(pooled)

    y = jnp.concatenate([tception(p["w_t1"], p["b_t1"]),
                         tception(p["w_t2"], p["b_t2"]),
                         tception(p["w_t3"], p["b_t3"])], axis=-1)
    y = y * p["bnt_scale"][None, :, None, None] + p["bnt_shift"][None, :, None, None]
    y = jnp.einsum("oj,bjct->boct", p["w_1x1"], y) + p["b_1x1"][None, :, None, None]
    y = jnp.where(y >= 0, y, 0.01 * y)
    T2 = (y.shape[-1] - 2) // 2 + 1
    y = jnp.stack([y[..., 2 * u:2 * u + 2].mean(-1) for u in range(T2)], axis=-1)
    y = y * p["bns_scale"][None, :, None, None] + p["bns_shift"][None, :, None, None]
    y = jnp.transpose(y, (0, 2, 1, 3)).reshape(B, Ch, -1)
    y = jnp.maximum(y * p["local_w"][None] - p["local_b"], 0.0)
    h = jnp.stack([y[:, s:e].mean(axis=1) for (s, e) in bounds], axis=1)
    h = h * p["bn1_scale"][None, :, None] + p["bn1_shift"][None, :, None]
    A = h.shape[1]
    eye = jnp.eye(A, dtype=jnp.float32)
    for li in range(3):
        W, bb = p[f"gcn_w{li}"], p[f"gcn_b{li}"]
        adj = jnp.einsum("baf,bcf->bac", h, h) + eye[None]
        rs = adj.sum(-1)
        rs = rs + (rs == 0).astype(jnp.float32)
        dinv = rs ** -0.5
        dmat = dinv[:, :, None] * eye[None]
        adjn = jnp.matmul(jnp.matmul(dmat, adj), dmat)
        support = jnp.matmul(h, W) + bb[None]
        h = jnp.maximum(jnp.matmul(adjn, support), 0.0)
    h = h * p["bn2_scale"][None, :, None] + p["bn2_shift"][None, :, None]
    h = h.reshape(B, -1)
    return h @ p["fc_w"] + p["fc_b"]


# --------------------------------------------------------------------------- main
if __name__ == "__main__":
    num_classes = 3
    input_size = (1, 16, 64)        # (in_chan, eeg_channel, time)
    sampling_rate = 32
    num_T = 4
    out_graph = 8
    dropout_rate = 0.5              # eval mode -> identity
    pool = 4
    pool_step_rate = 0.5
    idx_graph = [4, 4, 4, 4]
    B = 2

    root = jax.random.PRNGKey(0)
    pkey, xkey = jax.random.split(root)
    params, cfg = init_tdgcn_params(pkey, num_classes, input_size, sampling_rate,
                                    num_T, out_graph, pool, pool_step_rate,
                                    idx_graph)
    consts, boff = prepare_tdgcn_consts(params, cfg, B)
    x = jax.random.normal(xkey, (B,) + tuple(input_size), jnp.float32)

    out = jax.block_until_ready(tdgcn_forward(x, consts, boff, cfg))
    assert out.shape == (B, num_classes), out.shape
    assert bool(jnp.all(jnp.isfinite(out)))

    ref = jax.block_until_ready(tdgcn_reference(x, params, cfg))
    err = float(jnp.max(jnp.abs(out - ref)))
    assert err < 2e-3, f"mismatch vs pure-JAX reference: max|diff|={err}"

    print("KERNEL_OK")
</pallas_src>

<mosaic_0001>
module attributes {stable_mosaic.version = 11 : i64} {
  func.func @kernel(%arg0: i32, %arg1: memref<32x64xf32, #tpu.memory_space<vmem>>, %arg2: memref<64x668xf32, #tpu.memory_space<vmem>>, %arg3: memref<668x316xf32, #tpu.memory_space<vmem>>, %arg4: memref<316x316xf32, #tpu.memory_space<vmem>>, %arg5: memref<316x156xf32, #tpu.memory_space<vmem>>, %arg6: memref<32x156xf32, #tpu.memory_space<vmem>>, %arg7: memref<2x32x1xf32, #tpu.memory_space<vmem>>, %arg8: memref<8x32xf32, #tpu.memory_space<vmem>>, %arg9: memref<156x64xf32, #tpu.memory_space<vmem>>, %arg10: memref<64x64xf32, #tpu.memory_space<vmem>>, %arg11: memref<64x8xf32, #tpu.memory_space<vmem>>, %arg12: memref<4x8x128xf32, #tpu.memory_space<vmem>>, %arg13: memref<4x2x8xf32, #tpu.memory_space<vmem>>, %arg14: memref<1x1920xf32, #tpu.memory_space<vmem>>, %arg15: memref<2x128xf32, #tpu.memory_space<vmem>>) attributes {dimension_semantics = [#tpu.dimension_semantics<arbitrary>], iteration_bounds = array<i64: 1>, scalar_prefetch = 0 : i64, scratch_operands = 0 : i64, tpu.core_type = #tpu.core_type<tc>, window_params = [{transform_indices = @transform_0, window_bounds = array<i64: 32, 64>}, {pipeline_mode = #tpu.pipeline_mode<synchronous>, transform_indices = @transform_1, window_bounds = array<i64: 64, 668>}, {pipeline_mode = #tpu.pipeline_mode<synchronous>, transform_indices = @transform_2, window_bounds = array<i64: 668, 316>}, {pipeline_mode = #tpu.pipeline_mode<synchronous>, transform_indices = @transform_3, window_bounds = array<i64: 316, 316>}, {pipeline_mode = #tpu.pipeline_mode<synchronous>, transform_indices = @transform_4, window_bounds = array<i64: 316, 156>}, {pipeline_mode = #tpu.pipeline_mode<synchronous>, transform_indices = @transform_5, window_bounds = array<i64: 32, 156>}, {pipeline_mode = #tpu.pipeline_mode<synchronous>, transform_indices = @transform_6, window_bounds = array<i64: 2, 32, 1>}, {pipeline_mode = #tpu.pipeline_mode<synchronous>, transform_indices = @transform_7, window_bounds = array<i64: 8, 32>}, {pipeline_mode = #tpu.pipeline_mode<synchronous>, transform_indices = @transform_8, window_bounds = array<i64: 156, 64>}, {pipeline_mode = #tpu.pipeline_mode<synchronous>, transform_indices = @transform_9, window_bounds = array<i64: 64, 64>}, {pipeline_mode = #tpu.pipeline_mode<synchronous>, transform_indices = @transform_10, window_bounds = array<i64: 64, 8>}, {pipeline_mode = #tpu.pipeline_mode<synchronous>, transform_indices = @transform_11, window_bounds = array<i64: 4, 8, 128>}, {pipeline_mode = #tpu.pipeline_mode<synchronous>, transform_indices = @transform_12, window_bounds = array<i64: 4, 2, 8>}, {pipeline_mode = #tpu.pipeline_mode<synchronous>, transform_indices = @transform_13, window_bounds = array<i64: 1, 1920>}, {transform_indices = @transform_14, window_bounds = array<i64: 2, 128>}]} {
    %c0 = arith.constant 0 : index
    %c0_0 = arith.constant 0 : index
    %0 = vector.load %arg1[%c0, %c0_0] : memref<32x64xf32, #tpu.memory_space<vmem>>, vector<32x64xf32>
    %c0_1 = arith.constant 0 : index
    %c0_2 = arith.constant 0 : index
    %1 = vector.load %arg2[%c0_1, %c0_2] : memref<64x668xf32, #tpu.memory_space<vmem>>, vector<64x668xf32>
    %cst = arith.constant dense<0.000000e+00> : vector<32x668xf32>
    %2 = tpu.matmul %0, %1, %cst {dimension_numbers = #tpu.dot_dimension_numbers<[1], [0], [0], [1], [0, 0, 1, 1], [], []>} : vector<32x64xf32>, vector<64x668xf32>, vector<32x668xf32> -> vector<32x668xf32>
    %c0_3 = arith.constant 0 : index
    %c0_4 = arith.constant 0 : index
    %3 = vector.load %arg14[%c0_3, %c0_4] : memref<1x1920xf32, #tpu.memory_space<vmem>>, vector<1x668xf32>
    %4 = vector.broadcast %3 : vector<1x668xf32> to vector<32x668xf32>
    %5 = arith.addf %2, %4 : vector<32x668xf32>
    %6 = arith.mulf %5, %5 : vector<32x668xf32>
    %c0_5 = arith.constant 0 : index
    %c0_6 = arith.constant 0 : index
    %7 = vector.load %arg3[%c0_5, %c0_6] : memref<668x316xf32, #tpu.memory_space<vmem>>, vector<668x316xf32>
    %cst_7 = arith.constant dense<0.000000e+00> : vector<32x316xf32>
    %8 = tpu.matmul %6, %7, %cst_7 {dimension_numbers = #tpu.dot_dimension_numbers<[1], [0], [0], [1], [0, 0, 1, 1], [], []>} : vector<32x668xf32>, vector<668x316xf32>, vector<32x316xf32> -> vector<32x316xf32>
    %9 = math.log %8 : vector<32x316xf32>
    %c0_8 = arith.constant 0 : index
    %c0_9 = arith.constant 0 : index
    %10 = vector.load %arg4[%c0_8, %c0_9] : memref<316x316xf32, #tpu.memory_space<vmem>>, vector<316x316xf32>
    %cst_10 = arith.constant dense<0.000000e+00> : vector<32x316xf32>
    %11 = tpu.matmul %9, %10, %cst_10 {dimension_numbers = #tpu.dot_dimension_numbers<[1], [0], [0], [1], [0, 0, 1, 1], [], []>} : vector<32x316xf32>, vector<316x316xf32>, vector<32x316xf32> -> vector<32x316xf32>
    %c0_11 = arith.constant 0 : index
    %c768 = arith.constant 768 : index
    %12 = vector.load %arg14[%c0_11, %c768] : memref<1x1920xf32, #tpu.memory_space<vmem>>, vector<1x316xf32>
    %13 = vector.broadcast %12 : vector<1x316xf32> to vector<32x316xf32>
    %14 = arith.addf %11, %13 : vector<32x316xf32>
    %cst_12 = arith.constant 0.000000e+00 : f32
    %15 = vector.broadcast %cst_12 : f32 to vector<32x316xf32>
    %16 = arith.cmpf oge, %14, %15 : vector<32x316xf32>
    %cst_13 = arith.constant 0.00999999977 : f32
    %17 = vector.broadcast %cst_13 : f32 to vector<32x316xf32>
    %18 = arith.mulf %17, %14 : vector<32x316xf32>
    %19 = arith.select %16, %14, %18 : vector<32x316xi1>, vector<32x316xf32>
    %c0_14 = arith.constant 0 : index
    %c0_15 = arith.constant 0 : index
    %20 = vector.load %arg5[%c0_14, %c0_15] : memref<316x156xf32, #tpu.memory_space<vmem>>, vector<316x156xf32>
    %cst_16 = arith.constant dense<0.000000e+00> : vector<32x156xf32>
    %21 = tpu.matmul %19, %20, %cst_16 {dimension_numbers = #tpu.dot_dimension_numbers<[1], [0], [0], [1], [0, 0, 1, 1], [], []>} : vector<32x316xf32>, vector<316x156xf32>, vector<32x156xf32> -> vector<32x156xf32>
    %c0_17 = arith.constant 0 : index
    %c1152 = arith.constant 1152 : index
    %22 = vector.load %arg14[%c0_17, %c1152] : memref<1x1920xf32, #tpu.memory_space<vmem>>, vector<1x156xf32>
    %23 = vector.broadcast %22 : vector<1x156xf32> to vector<32x156xf32>
    %24 = arith.addf %21, %23 : vector<32x156xf32>
    %c0_18 = arith.constant 0 : index
    %c0_19 = arith.constant 0 : index
    %25 = vector.load %arg6[%c0_18, %c0_19] : memref<32x156xf32, #tpu.memory_space<vmem>>, vector<32x156xf32>
    %26 = arith.mulf %24, %25 : vector<32x156xf32>
    %c0_20 = arith.constant 0 : index
    %c0_21 = arith.constant 0 : index
    %c0_22 = arith.constant 0 : index
    %27 = vector.load %arg7[%c0_20, %c0_21, %c0_22] : memref<2x32x1xf32, #tpu.memory_space<vmem>>, vector<1x32x1xf32>
    %28 = vector.shape_cast %27 : vector<1x32x1xf32> to vector<32x1xf32>
    %29 = vector.broadcast %28 : vector<32x1xf32> to vector<32x156xf32>
    %30 = arith.subf %26, %29 : vector<32x156xf32>
    %cst_23 = arith.constant 0.000000e+00 : f32
    %31 = vector.broadcast %cst_23 : f32 to vector<32x156xf32>
    %32 = arith.maximumf %30, %31 : vector<32x156xf32>
    %c0_24 = arith.constant 0 : index
    %c0_25 = arith.constant 0 : index
    %33 = vector.load %arg8[%c0_24, %c0_25] : memref<8x32xf32, #tpu.memory_space<vmem>>, vector<8x32xf32>
    %cst_26 = arith.constant dense<0.000000e+00> : vector<8x156xf32>
    %34 = tpu.matmul %33, %32, %cst_26 {dimension_numbers = #tpu.dot_dimension_numbers<[1], [0], [0], [1], [0, 0, 1, 1], [], []>} : vector<8x32xf32>, vector<32x156xf32>, vector<8x156xf32> -> vector<8x156xf32>
    %c1 = arith.constant 1 : index
    %c0_27 = arith.constant 0 : index
    %c0_28 = arith.constant 0 : index
    %35 = vector.load %arg7[%c1, %c0_27, %c0_28] : memref<2x32x1xf32, #tpu.memory_space<vmem>>, vector<1x32x1xf32>
    %36 = vector.shape_cast %35 : vector<1x32x1xf32> to vector<32x1xf32>
    %37 = vector.extract_strided_slice %36 {offsets = [0, 0], sizes = [8, 1], strides = [1, 1]} : vector<32x1xf32> to vector<8x1xf32>
    %38 = vector.broadcast %37 : vector<8x1xf32> to vector<8x156xf32>
    %39 = arith.addf %34, %38 : vector<8x156xf32>
    %c0_29 = arith.constant 0 : index
    %c0_30 = arith.constant 0 : index
    %c0_31 = arith.constant 0 : index
    %40 = vector.load %arg13[%c0_29, %c0_30, %c0_31] : memref<4x2x8xf32, #tpu.memory_space<vmem>>, vector<4x2x8xf32>
    %cst_32 = arith.constant dense<0.000000e+00> : vector<2x8xf32>
    %41 = vector.multi_reduction <add>, %40, %cst_32 [0] : vector<4x2x8xf32> to vector<2x8xf32>
    %cst_33 = arith.constant dense<0.000000e+00> : vector<8x8xf32>
    %42 = tpu.matmul %41, %41, %cst_33 {dimension_numbers = #tpu.dot_dimension_numbers<[0], [0], [1], [1], [0, 1, 1, 1], [], []>} : vector<2x8xf32>, vector<2x8xf32>, vector<8x8xf32> -> vector<8x8xf32>
    %cst_34 = arith.constant dense<0.000000e+00> : vector<8x8xf32>
    %43 = tpu.matmul %39, %39, %cst_34 {dimension_numbers = #tpu.dot_dimension_numbers<[1], [1], [0], [0], [0, 0, 1, 0], [], []>} : vector<8x156xf32>, vector<8x156xf32>, vector<8x8xf32> -> vector<8x8xf32>
    %44 = arith.mulf %42, %43 : vector<8x8xf32>
    %cst_35 = arith.constant dense<0.000000e+00> : vector<8xf32>
    %45 = vector.multi_reduction <add>, %44, %cst_35 [1] : vector<8x8xf32> to vector<8xf32>
    %46 = vector.shape_cast %45 : vector<8xf32> to vector<8x1xf32>
    %cst_36 = arith.constant 1.000000e+00 : f32
    %47 = vector.broadcast %cst_36 : f32 to vector<8x1xf32>
    %48 = arith.addf %46, %47 : vector<8x1xf32>
    %cst_37 = arith.constant 0.000000e+00 : f32
    %49 = vector.broadcast %cst_37 : f32 to vector<8x1xf32>
    %50 = arith.cmpf oeq, %48, %49 : vector<8x1xf32>
    %51 = arith.extui %50 : vector<8x1xi1> to vector<8x1xi32>
    %52 = arith.sitofp %51 : vector<8x1xi32> to vector<8x1xf32>
    %53 = arith.addf %48, %52 : vector<8x1xf32>
    %54 = math.rsqrt %53 : vector<8x1xf32>
    %c0_38 = arith.constant 0 : index
    %c0_39 = arith.constant 0 : index
    %55 = vector.load %arg9[%c0_38, %c0_39] : memref<156x64xf32, #tpu.memory_space<vmem>>, vector<156x64xf32>
    %cst_40 = arith.constant dense<0.000000e+00> : vector<8x64xf32>
    %56 = tpu.matmul %39, %55, %cst_40 {dimension_numbers = #tpu.dot_dimension_numbers<[1], [0], [0], [1], [0, 0, 1, 1], [], []>} : vector<8x156xf32>, vector<156x64xf32>, vector<8x64xf32> -> vector<8x64xf32>
    %c0_41 = arith.constant 0 : index
    %c1408 = arith.constant 1408 : index
    %57 = vector.load %arg14[%c0_41, %c1408] : memref<1x1920xf32, #tpu.memory_space<vmem>>, vector<1x64xf32>
    %58 = vector.broadcast %57 : vector<1x64xf32> to vector<8x64xf32>
    %59 = arith.addf %56, %58 : vector<8x64xf32>
    %60 = vector.broadcast %54 : vector<8x1xf32> to vector<8x64xf32>
    %61 = arith.mulf %60, %59 : vector<8x64xf32>
    %cst_42 = arith.constant dense<0.000000e+00> : vector<8x64xf32>
    %62 = tpu.matmul %44, %61, %cst_42 {dimension_numbers = #tpu.dot_dimension_numbers<[1], [0], [0], [1], [0, 0, 1, 1], [], []>} : vector<8x8xf32>, vector<8x64xf32>, vector<8x64xf32> -> vector<8x64xf32>
    %63 = arith.addf %62, %61 : vector<8x64xf32>
    %64 = vector.broadcast %54 : vector<8x1xf32> to vector<8x64xf32>
    %65 = arith.mulf %64, %63 : vector<8x64xf32>
    %cst_43 = arith.constant 0.000000e+00 : f32
    %66 = vector.broadcast %cst_43 : f32 to vector<8x64xf32>
    %67 = arith.maximumf %65, %66 : vector<8x64xf32>
    %cst_44 = arith.constant dense<0.000000e+00> : vector<8x8xf32>
    %68 = tpu.matmul %67, %67, %cst_44 {dimension_numbers = #tpu.dot_dimension_numbers<[1], [1], [0], [0], [0, 0, 1, 0], [], []>} : vector<8x64xf32>, vector<8x64xf32>, vector<8x8xf32> -> vector<8x8xf32>
    %69 = arith.mulf %42, %68 : vector<8x8xf32>
    %cst_45 = arith.constant dense<0.000000e+00> : vector<8xf32>
    %70 = vector.multi_reduction <add>, %69, %cst_45 [1] : vector<8x8xf32> to vector<8xf32>
    %71 = vector.shape_cast %70 : vector<8xf32> to vector<8x1xf32>
    %cst_46 = arith.constant 1.000000e+00 : f32
    %72 = vector.broadcast %cst_46 : f32 to vector<8x1xf32>
    %73 = arith.addf %71, %72 : vector<8x1xf32>
    %cst_47 = arith.constant 0.000000e+00 : f32
    %74 = vector.broadcast %cst_47 : f32 to vector<8x1xf32>
    %75 = arith.cmpf oeq, %73, %74 : vector<8x1xf32>
    %76 = arith.extui %75 : vector<8x1xi1> to vector<8x1xi32>
    %77 = arith.sitofp %76 : vector<8x1xi32> to vector<8x1xf32>
    %78 = arith.addf %73, %77 : vector<8x1xf32>
    %79 = math.rsqrt %78 : vector<8x1xf32>
    %c0_48 = arith.constant 0 : index
    %c0_49 = arith.constant 0 : index
    %80 = vector.load %arg10[%c0_48, %c0_49] : memref<64x64xf32, #tpu.memory_space<vmem>>, vector<64x64xf32>
    %cst_50 = arith.constant dense<0.000000e+00> : vector<8x64xf32>
    %81 = tpu.matmul %67, %80, %cst_50 {dimension_numbers = #tpu.dot_dimension_numbers<[1], [0], [0], [1], [0, 0, 1, 1], [], []>} : vector<8x64xf32>, vector<64x64xf32>, vector<8x64xf32> -> vector<8x64xf32>
    %c0_51 = arith.constant 0 : index
    %c1536 = arith.constant 1536 : index
    %82 = vector.load %arg14[%c0_51, %c1536] : memref<1x1920xf32, #tpu.memory_space<vmem>>, vector<1x64xf32>
    %83 = vector.broadcast %82 : vector<1x64xf32> to vector<8x64xf32>
    %84 = arith.addf %81, %83 : vector<8x64xf32>
    %85 = vector.broadcast %79 : vector<8x1xf32> to vector<8x64xf32>
    %86 = arith.mulf %85, %84 : vector<8x64xf32>
    %cst_52 = arith.constant dense<0.000000e+00> : vector<8x64xf32>
    %87 = tpu.matmul %69, %86, %cst_52 {dimension_numbers = #tpu.dot_dimension_numbers<[1], [0], [0], [1], [0, 0, 1, 1], [], []>} : vector<8x8xf32>, vector<8x64xf32>, vector<8x64xf32> -> vector<8x64xf32>
    %88 = arith.addf %87, %86 : vector<8x64xf32>
    %89 = vector.broadcast %79 : vector<8x1xf32> to vector<8x64xf32>
    %90 = arith.mulf %89, %88 : vector<8x64xf32>
    %cst_53 = arith.constant 0.000000e+00 : f32
    %91 = vector.broadcast %cst_53 : f32 to vector<8x64xf32>
    %92 = arith.maximumf %90, %91 : vector<8x64xf32>
    %cst_54 = arith.constant dense<0.000000e+00> : vector<8x8xf32>
    %93 = tpu.matmul %92, %92, %cst_54 {dimension_numbers = #tpu.dot_dimension_numbers<[1], [1], [0], [0], [0, 0, 1, 0], [], []>} : vector<8x64xf32>, vector<8x64xf32>, vector<8x8xf32> -> vector<8x8xf32>
    %94 = arith.mulf %42, %93 : vector<8x8xf32>
    %cst_55 = arith.constant dense<0.000000e+00> : vector<8xf32>
    %95 = vector.multi_reduction <add>, %94, %cst_55 [1] : vector<8x8xf32> to vector<8xf32>
    %96 = vector.shape_cast %95 : vector<8xf32> to vector<8x1xf32>
    %cst_56 = arith.constant 1.000000e+00 : f32
    %97 = vector.broadcast %cst_56 : f32 to vector<8x1xf32>
    %98 = arith.addf %96, %97 : vector<8x1xf32>
    %cst_57 = arith.constant 0.000000e+00 : f32
    %99 = vector.broadcast %cst_57 : f32 to vector<8x1xf32>
    %100 = arith.cmpf oeq, %98, %99 : vector<8x1xf32>
    %101 = arith.extui %100 : vector<8x1xi1> to vector<8x1xi32>
    %102 = arith.sitofp %101 : vector<8x1xi32> to vector<8x1xf32>
    %103 = arith.addf %98, %102 : vector<8x1xf32>
    %104 = math.rsqrt %103 : vector<8x1xf32>
    %c0_58 = arith.constant 0 : index
    %c0_59 = arith.constant 0 : index
    %105 = vector.load %arg11[%c0_58, %c0_59] : memref<64x8xf32, #tpu.memory_space<vmem>>, vector<64x8xf32>
    %cst_60 = arith.constant dense<0.000000e+00> : vector<8x8xf32>
    %106 = tpu.matmul %92, %105, %cst_60 {dimension_numbers = #tpu.dot_dimension_numbers<[1], [0], [0], [1], [0, 0, 1, 1], [], []>} : vector<8x64xf32>, vector<64x8xf32>, vector<8x8xf32> -> vector<8x8xf32>
    %c0_61 = arith.constant 0 : index
    %c1664 = arith.constant 1664 : index
    %107 = vector.load %arg14[%c0_61, %c1664] : memref<1x1920xf32, #tpu.memory_space<vmem>>, vector<1x8xf32>
    %108 = vector.broadcast %107 : vector<1x8xf32> to vector<8x8xf32>
    %109 = arith.addf %106, %108 : vector<8x8xf32>
    %110 = vector.broadcast %104 : vector<8x1xf32> to vector<8x8xf32>
    %111 = arith.mulf %110, %109 : vector<8x8xf32>
    %cst_62 = arith.constant dense<0.000000e+00> : vector<8x8xf32>
    %112 = tpu.matmul %94, %111, %cst_62 {dimension_numbers = #tpu.dot_dimension_numbers<[1], [0], [0], [1], [0, 0, 1, 1], [], []>} : vector<8x8xf32>, vector<8x8xf32>, vector<8x8xf32> -> vector<8x8xf32>
    %113 = arith.addf %112, %111 : vector<8x8xf32>
    %114 = vector.broadcast %104 : vector<8x1xf32> to vector<8x8xf32>
    %115 = arith.mulf %114, %113 : vector<8x8xf32>
    %cst_63 = arith.constant 0.000000e+00 : f32
    %116 = vector.broadcast %cst_63 : f32 to vector<8x8xf32>
    %117 = arith.maximumf %115, %116 : vector<8x8xf32>
    %cst_64 = arith.constant 0.000000e+00 : f32
    %118 = vector.broadcast %cst_64 : f32 to vector<2x128xf32>
    %c0_65 = arith.constant 0 : index
    %c0_66 = arith.constant 0 : index
    %c0_67 = arith.constant 0 : index
    %119 = vector.load %arg13[%c0_65, %c0_66, %c0_67] : memref<4x2x8xf32, #tpu.memory_space<vmem>>, vector<1x2x8xf32>
    %120 = vector.shape_cast %119 : vector<1x2x8xf32> to vector<2x8xf32>
    %cst_68 = arith.constant dense<0.000000e+00> : vector<2x8xf32>
    %121 = tpu.matmul %120, %117, %cst_68 {dimension_numbers = #tpu.dot_dimension_numbers<[1], [0], [0], [1], [0, 0, 1, 1], [], []>} : vector<2x8xf32>, vector<8x8xf32>, vector<2x8xf32> -> vector<2x8xf32>
    %c0_69 = arith.constant 0 : index
    %c0_70 = arith.constant 0 : index
    %c0_71 = arith.constant 0 : index
    %122 = vector.load %arg12[%c0_69, %c0_70, %c0_71] : memref<4x8x128xf32, #tpu.memory_space<vmem>>, vector<1x8x128xf32>
    %123 = vector.shape_cast %122 : vector<1x8x128xf32> to vector<8x128xf32>
    %cst_72 = arith.constant dense<0.000000e+00> : vector<2x128xf32>
    %124 = tpu.matmul %121, %123, %cst_72 {dimension_numbers = #tpu.dot_dimension_numbers<[1], [0], [0], [1], [0, 0, 1, 1], [], []>} : vector<2x8xf32>, vector<8x128xf32>, vector<2x128xf32> -> vector<2x128xf32>
    %125 = arith.addf %118, %124 : vector<2x128xf32>
    %c1_73 = arith.constant 1 : index
    %c0_74 = arith.constant 0 : index
    %c0_75 = arith.constant 0 : index
    %126 = vector.load %arg13[%c1_73, %c0_74, %c0_75] : memref<4x2x8xf32, #tpu.memory_space<vmem>>, vector<1x2x8xf32>
    %127 = vector.shape_cast %126 : vector<1x2x8xf32> to vector<2x8xf32>
    %cst_76 = arith.constant dense<0.000000e+00> : vector<2x8xf32>
    %128 = tpu.matmul %127, %117, %cst_76 {dimension_numbers = #tpu.dot_dimension_numbers<[1], [0], [0], [1], [0, 0, 1, 1], [], []>} : vector<2x8xf32>, vector<8x8xf32>, vector<2x8xf32> -> vector<2x8xf32>
    %c1_77 = arith.constant 1 : index
    %c0_78 = arith.constant 0 : index
    %c0_79 = arith.constant 0 : index
    %129 = vector.load %arg12[%c1_77, %c0_78, %c0_79] : memref<4x8x128xf32, #tpu.memory_space<vmem>>, vector<1x8x128xf32>
    %130 = vector.shape_cast %129 : vector<1x8x128xf32> to vector<8x128xf32>
    %cst_80 = arith.constant dense<0.000000e+00> : vector<2x128xf32>
    %131 = tpu.matmul %128, %130, %cst_80 {dimension_numbers = #tpu.dot_dimension_numbers<[1], [0], [0], [1], [0, 0, 1, 1], [], []>} : vector<2x8xf32>, vector<8x128xf32>, vector<2x128xf32> -> vector<2x128xf32>
    %132 = arith.addf %125, %131 : vector<2x128xf32>
    %c2 = arith.constant 2 : index
    %c0_81 = arith.constant 0 : index
    %c0_82 = arith.constant 0 : index
    %133 = vector.load %arg13[%c2, %c0_81, %c0_82] : memref<4x2x8xf32, #tpu.memory_space<vmem>>, vector<1x2x8xf32>
    %134 = vector.shape_cast %133 : vector<1x2x8xf32> to vector<2x8xf32>
    %cst_83 = arith.constant dense<0.000000e+00> : vector<2x8xf32>
    %135 = tpu.matmul %134, %117, %cst_83 {dimension_numbers = #tpu.dot_dimension_numbers<[1], [0], [0], [1], [0, 0, 1, 1], [], []>} : vector<2x8xf32>, vector<8x8xf32>, vector<2x8xf32> -> vector<2x8xf32>
    %c2_84 = arith.constant 2 : index
    %c0_85 = arith.constant 0 : index
    %c0_86 = arith.constant 0 : index
    %136 = vector.load %arg12[%c2_84, %c0_85, %c0_86] : memref<4x8x128xf32, #tpu.memory_space<vmem>>, vector<1x8x128xf32>
    %137 = vector.shape_cast %136 : vector<1x8x128xf32> to vector<8x128xf32>
    %cst_87 = arith.constant dense<0.000000e+00> : vector<2x128xf32>
    %138 = tpu.matmul %135, %137, %cst_87 {dimension_numbers = #tpu.dot_dimension_numbers<[1], [0], [0], [1], [0, 0, 1, 1], [], []>} : vector<2x8xf32>, vector<8x128xf32>, vector<2x128xf32> -> vector<2x128xf32>
    %139 = arith.addf %132, %138 : vector<2x128xf32>
    %c3 = arith.constant 3 : index
    %c0_88 = arith.constant 0 : index
    %c0_89 = arith.constant 0 : index
    %140 = vector.load %arg13[%c3, %c0_88, %c0_89] : memref<4x2x8xf32, #tpu.memory_space<vmem>>, vector<1x2x8xf32>
    %141 = vector.shape_cast %140 : vector<1x2x8xf32> to vector<2x8xf32>
    %cst_90 = arith.constant dense<0.000000e+00> : vector<2x8xf32>
    %142 = tpu.matmul %141, %117, %cst_90 {dimension_numbers = #tpu.dot_dimension_numbers<[1], [0], [0], [1], [0, 0, 1, 1], [], []>} : vector<2x8xf32>, vector<8x8xf32>, vector<2x8xf32> -> vector<2x8xf32>
    %c3_91 = arith.constant 3 : index
    %c0_92 = arith.constant 0 : index
    %c0_93 = arith.constant 0 : index
    %143 = vector.load %arg12[%c3_91, %c0_92, %c0_93] : memref<4x8x128xf32, #tpu.memory_space<vmem>>, vector<1x8x128xf32>
    %144 = vector.shape_cast %143 : vector<1x8x128xf32> to vector<8x128xf32>
    %cst_94 = arith.constant dense<0.000000e+00> : vector<2x128xf32>
    %145 = tpu.matmul %142, %144, %cst_94 {dimension_numbers = #tpu.dot_dimension_numbers<[1], [0], [0], [1], [0, 0, 1, 1], [], []>} : vector<2x8xf32>, vector<8x128xf32>, vector<2x128xf32> -> vector<2x128xf32>
    %146 = arith.addf %139, %145 : vector<2x128xf32>
    %c0_95 = arith.constant 0 : index
    %c1792 = arith.constant 1792 : index
    %147 = vector.load %arg14[%c0_95, %c1792] : memref<1x1920xf32, #tpu.memory_space<vmem>>, vector<1x128xf32>
    %148 = vector.broadcast %147 : vector<1x128xf32> to vector<2x128xf32>
    %149 = arith.addf %146, %148 : vector<2x128xf32>
    %c0_96 = arith.constant 0 : index
    %c0_97 = arith.constant 0 : index
    %150 = vector.load %arg15[%c0_96, %c0_97] : memref<2x128xf32, #tpu.memory_space<vmem>>, vector<2x128xf32>
    tpu.vector_store %arg15[%c0_96, %c0_97], %149 {strides = array<i32>} : memref<2x128xf32, #tpu.memory_space<vmem>>, vector<2x128xf32>,
    return
  }
  func.func @transform_0(%arg0: i32) -> (i32, i32) {
    %c0_i32 = arith.constant 0 : i32
    %c0_i32_0 = arith.constant 0 : i32
    return %arg0, %c0_i32 : i32, i32
  }
  func.func @transform_1(%arg0: i32) -> (i32, i32) {
    %c0_i32 = arith.constant 0 : i32
    %c0_i32_0 = arith.constant 0 : i32
    %c0_i32_1 = arith.constant 0 : i32
    return %c0_i32, %c0_i32_0 : i32, i32
  }
  func.func @transform_2(%arg0: i32) -> (i32, i32) {
    %c0_i32 = arith.constant 0 : i32
    %c0_i32_0 = arith.constant 0 : i32
    %c0_i32_1 = arith.constant 0 : i32
    return %c0_i32, %c0_i32_0 : i32, i32
  }
  func.func @transform_3(%arg0: i32) -> (i32, i32) {
    %c0_i32 = arith.constant 0 : i32
    %c0_i32_0 = arith.constant 0 : i32
    %c0_i32_1 = arith.constant 0 : i32
    return %c0_i32, %c0_i32_0 : i32, i32
  }
  func.func @transform_4(%arg0: i32) -> (i32, i32) {
    %c0_i32 = arith.constant 0 : i32
    %c0_i32_0 = arith.constant 0 : i32
    %c0_i32_1 = arith.constant 0 : i32
    return %c0_i32, %c0_i32_0 : i32, i32
  }
  func.func @transform_5(%arg0: i32) -> (i32, i32) {
    %c0_i32 = arith.constant 0 : i32
    %c0_i32_0 = arith.constant 0 : i32
    %c0_i32_1 = arith.constant 0 : i32
    return %c0_i32, %c0_i32_0 : i32, i32
  }
  func.func @transform_6(%arg0: i32) -> (i32, i32, i32) {
    %c0_i32 = arith.constant 0 : i32
    %c0_i32_0 = arith.constant 0 : i32
    %c0_i32_1 = arith.constant 0 : i32
    %c0_i32_2 = arith.constant 0 : i32
    return %c0_i32, %c0_i32_0, %c0_i32_1 : i32, i32, i32
  }
  func.func @transform_7(%arg0: i32) -> (i32, i32) {
    %c0_i32 = arith.constant 0 : i32
    %c0_i32_0 = arith.constant 0 : i32
    %c0_i32_1 = arith.constant 0 : i32
    return %c0_i32, %c0_i32_0 : i32, i32
  }
  func.func @transform_8(%arg0: i32) -> (i32, i32) {
    %c0_i32 = arith.constant 0 : i32
    %c0_i32_0 = arith.constant 0 : i32
    %c0_i32_1 = arith.constant 0 : i32
    return %c0_i32, %c0_i32_0 : i32, i32
  }
  func.func @transform_9(%arg0: i32) -> (i32, i32) {
    %c0_i32 = arith.constant 0 : i32
    %c0_i32_0 = arith.constant 0 : i32
    %c0_i32_1 = arith.constant 0 : i32
    return %c0_i32, %c0_i32_0 : i32, i32
  }
  func.func @transform_10(%arg0: i32) -> (i32, i32) {
    %c0_i32 = arith.constant 0 : i32
    %c0_i32_0 = arith.constant 0 : i32
    %c0_i32_1 = arith.constant 0 : i32
    return %c0_i32, %c0_i32_0 : i32, i32
  }
  func.func @transform_11(%arg0: i32) -> (i32, i32, i32) {
    %c0_i32 = arith.constant 0 : i32
    %c0_i32_0 = arith.constant 0 : i32
    %c0_i32_1 = arith.constant 0 : i32
    %c0_i32_2 = arith.constant 0 : i32
    return %c0_i32, %c0_i32_0, %c0_i32_1 : i32, i32, i32
  }
  func.func @transform_12(%arg0: i32) -> (i32, i32, i32) {
    %c0_i32 = arith.constant 0 : i32
    %c0_i32_0 = arith.constant 0 : i32
    %c0_i32_1 = arith.constant 0 : i32
    %c0_i32_2 = arith.constant 0 : i32
    return %c0_i32, %c0_i32_0, %c0_i32_1 : i32, i32, i32
  }
  func.func @transform_13(%arg0: i32) -> (i32, i32) {
    %c0_i32 = arith.constant 0 : i32
    %c0_i32_0 = arith.constant 0 : i32
    %c0_i32_1 = arith.constant 0 : i32
    return %c0_i32, %c0_i32_0 : i32, i32
  }
  func.func @transform_14(%arg0: i32) -> (i32, i32) {
    %c0_i32 = arith.constant 0 : i32
    %c0_i32_0 = arith.constant 0 : i32
    return %arg0, %c0_i32 : i32, i32
  }
}

</mosaic_0001>

<llo_original>
// kernel: tpu_custom_call.1
$region0: #{tpu_custom_call.1}
  #allocation0 [shape = 'u32[]', space=smem, size = 0x4, offset = 0x4, fixed_abs, tag = 'smem constant byte address 0x4 - core index']
  #allocation1 [shape = 'u32[144,128]{1,0:T(1,128)}', space=vmem, size = 0x12000, scoped, tag = 'internal scratch']
  %s0 = inlined_call_operand.vmem [shape: f32[32,64], index: 0, kind: input, shape index: {}]
  %s1 = inlined_call_operand.vmem [shape: f32[64,668], index: 1, kind: input, shape index: {}]
  %s2 = inlined_call_operand.vmem [shape: f32[668,316], index: 2, kind: input, shape index: {}]
  %s3 = inlined_call_operand.vmem [shape: f32[316,316], index: 3, kind: input, shape index: {}]
  %s4 = inlined_call_operand.vmem [shape: f32[316,156], index: 4, kind: input, shape index: {}]
  %s5 = inlined_call_operand.vmem [shape: f32[32,156], index: 5, kind: input, shape index: {}]
  %s6 = inlined_call_operand.vmem [shape: f32[2,32,1], index: 6, kind: input, shape index: {}]
  %s7 = inlined_call_operand.vmem [shape: f32[8,32], index: 7, kind: input, shape index: {}]
  %s8 = inlined_call_operand.vmem [shape: f32[156,64], index: 8, kind: input, shape index: {}]
  %s9 = inlined_call_operand.vmem [shape: f32[64,64], index: 9, kind: input, shape index: {}]
  %s10 = inlined_call_operand.vmem [shape: f32[64,8], index: 10, kind: input, shape index: {}]
  %s11 = inlined_call_operand.vmem [shape: f32[4,8,128], index: 11, kind: input, shape index: {}]
  %s12 = inlined_call_operand.vmem [shape: f32[4,2,8], index: 12, kind: input, shape index: {}]
  %s13 = inlined_call_operand.vmem [shape: f32[1,1920], index: 13, kind: input, shape index: {}]
  %s14 = inlined_call_operand.hbm [shape: f32[2,128], index: 14, kind: output, shape index: {}]
  %s15 = sld [smem:[#allocation0]]
  $region66: #{tpu_custom_call.1} parent=0
    _
  %s17 = ssub.s32 1, %s15
  %s18 = scalar_select 0, %s17, %s15
  $region1: #{tpu_custom_call.1} parent=0
    #allocation2 [shape = 'u8[1024]{0}', space=vmem, size = 0x400, scoped, tag = 'output window, operand 0, single buffered']
    #allocation3 [shape = 's32[1]{0}', space=sflag, size = 0x4, scoped, tag = 'scoped memory for tpu_custom_call.1']
    %19 = vsyncpa [#allocation3], 0
    // Predicated region
    $region2: #{tpu_custom_call.1} parent=1 // pred_check
      _
    $region3: #{tpu_custom_call.1} parent=1 // pred_check_branch
      %21 = sbr.rel (0) target = $region5
    $region4: #{tpu_custom_call.1} parent=1 // pred_region
      _
    $region5: #{tpu_custom_call.1} parent=1 // pred_fallthru
      _
    // Predicated region
    $region6: #{tpu_custom_call.1} parent=1 // pred_check
      _
    $region7: #{tpu_custom_call.1} parent=1 // pred_check_branch
      %23 = sbr.rel (0) target = $region9
    $region8: #{tpu_custom_call.1} parent=1 // pred_region
      _
    $region9: #{tpu_custom_call.1} parent=1 // pred_fallthru
      _
    // Predicated region
    $region10: #{tpu_custom_call.1} parent=1 // pred_check
      _
    $region11: #{tpu_custom_call.1} parent=1 // pred_check_branch
      %25 = sbr.rel (0) target = $region13
    $region12: #{tpu_custom_call.1} parent=1 // pred_region
      _
    $region13: #{tpu_custom_call.1} parent=1 // pred_fallthru
      _
    // Predicated region
    $region14: #{tpu_custom_call.1} parent=1 // pred_check
      _
    $region15: #{tpu_custom_call.1} parent=1 // pred_check_branch
      %27 = sbr.rel (0) target = $region17
    $region16: #{tpu_custom_call.1} parent=1 // pred_region
      _
    $region17: #{tpu_custom_call.1} parent=1 // pred_fallthru
      _
    // Predicated region
    $region18: #{tpu_custom_call.1} parent=1 // pred_check
      _
    $region19: #{tpu_custom_call.1} parent=1 // pred_check_branch
      %29 = sbr.rel (0) target = $region21
    $region20: #{tpu_custom_call.1} parent=1 // pred_region
      _
    $region21: #{tpu_custom_call.1} parent=1 // pred_fallthru
      _
    // Predicated region
    $region22: #{tpu_custom_call.1} parent=1 // pred_check
      _
    $region23: #{tpu_custom_call.1} parent=1 // pred_check_branch
      %31 = sbr.rel (0) target = $region25
    $region24: #{tpu_custom_call.1} parent=1 // pred_region
      _
    $region25: #{tpu_custom_call.1} parent=1 // pred_fallthru
      _
    // Predicated region
    $region26: #{tpu_custom_call.1} parent=1 // pred_check
      _
    $region27: #{tpu_custom_call.1} parent=1 // pred_check_branch
      %33 = sbr.rel (0) target = $region29
    $region28: #{tpu_custom_call.1} parent=1 // pred_region
      _
    $region29: #{tpu_custom_call.1} parent=1 // pred_fallthru
      _
    // Predicated region
    $region30: #{tpu_custom_call.1} parent=1 // pred_check
      _
    $region31: #{tpu_custom_call.1} parent=1 // pred_check_branch
      %35 = sbr.rel (0) target = $region33
    $region32: #{tpu_custom_call.1} parent=1 // pred_region
      _
    $region33: #{tpu_custom_call.1} parent=1 // pred_fallthru
      _
    // Predicated region
    $region34: #{tpu_custom_call.1} parent=1 // pred_check
      _
    $region35: #{tpu_custom_call.1} parent=1 // pred_check_branch
      %37 = sbr.rel (0) target = $region37
    $region36: #{tpu_custom_call.1} parent=1 // pred_region
      _
    $region37: #{tpu_custom_call.1} parent=1 // pred_fallthru
      _
    // Predicated region
    $region38: #{tpu_custom_call.1} parent=1 // pred_check
      _
    $region39: #{tpu_custom_call.1} parent=1 // pred_check_branch
      %39 = sbr.rel (0) target = $region41
    $region40: #{tpu_custom_call.1} parent=1 // pred_region
      _
    $region41: #{tpu_custom_call.1} parent=1 // pred_fallthru
      _
    // Predicated region
    $region42: #{tpu_custom_call.1} parent=1 // pred_check
      _
    $region43: #{tpu_custom_call.1} parent=1 // pred_check_branch
      %41 = sbr.rel (0) target = $region45
    $region44: #{tpu_custom_call.1} parent=1 // pred_region
      _
    $region45: #{tpu_custom_call.1} parent=1 // pred_fallthru
      _
    // Predicated region
    $region46: #{tpu_custom_call.1} parent=1 // pred_check
      _
    $region47: #{tpu_custom_call.1} parent=1 // pred_check_branch
      %43 = sbr.rel (0) target = $region49
    $region48: #{tpu_custom_call.1} parent=1 // pred_region
      _
    $region49: #{tpu_custom_call.1} parent=1 // pred_fallthru
      _
    // Predicated region
    $region50: #{tpu_custom_call.1} parent=1 // pred_check
      _
    $region51: #{tpu_custom_call.1} parent=1 // pred_check_branch
      %45 = sbr.rel (0) target = $region53
    $region52: #{tpu_custom_call.1} parent=1 // pred_region
      _
    $region53: #{tpu_custom_call.1} parent=1 // pred_fallthru
      _
    // Predicated region
    $region54: #{tpu_custom_call.1} parent=1 // pred_check
      _
    $region55: #{tpu_custom_call.1} parent=1 // pred_check_branch
      %47 = sbr.rel (0) target = $region57
    $region56: #{tpu_custom_call.1} parent=1 // pred_region
      _
    $region57: #{tpu_custom_call.1} parent=1 // pred_fallthru
      _
    %v48 = vld [vmem:[%s0] sm:$0xff]
    %v49 = vld [vmem:[%s0 + $0x8] sm:$0xff]
    %v50 = vld [vmem:[%s0 + $0x10] sm:$0xff]
    %v51 = vld [vmem:[%s0 + $0x18] sm:$0xff]
    %v52 = vld [vmem:[%s1] sm:$0xff]
    %v53 = vld [vmem:[%s1 + $0x8] sm:$0xff]
    %v54 = vld [vmem:[%s1 + $0x10] sm:$0xff]
    %v55 = vld [vmem:[%s1 + $0x18] sm:$0xff]
    %v56 = vld [vmem:[%s1 + $0x20] sm:$0xff]
    %v57 = vld [vmem:[%s1 + $0x28] sm:$0xff]
    %v58 = vld [vmem:[%s1 + $0x30] sm:$0xff]
    %v59 = vld [vmem:[%s1 + $0x38] sm:$0xff]
    %v60 = vld [vmem:[%s1 + $0x40] sm:$0xff]
    %v61 = vld [vmem:[%s1 + $0x48] sm:$0xff]
    %v62 = vld [vmem:[%s1 + $0x50] sm:$0xff]
    %v63 = vld [vmem:[%s1 + $0x58] sm:$0xff]
    %v64 = vld [vmem:[%s1 + $0x60] sm:$0xff]
    %v65 = vld [vmem:[%s1 + $0x68] sm:$0xff]
    %v66 = vld [vmem:[%s1 + $0x70] sm:$0xff]
    %v67 = vld [vmem:[%s1 + $0x78] sm:$0xff]
    %v68 = vld [vmem:[%s1 + $0x80] sm:$0xff]
    %v69 = vld [vmem:[%s1 + $0x88] sm:$0xff]
    %v70 = vld [vmem:[%s1 + $0x90] sm:$0xff]
    %v71 = vld [vmem:[%s1 + $0x98] sm:$0xff]
    %v72 = vld [vmem:[%s1 + $0xa0] sm:$0xff]
    %v73 = vld [vmem:[%s1 + $0xa8] sm:$0xff]
    %v74 = vld [vmem:[%s1 + $0xb0] sm:$0xff]
    %v75 = vld [vmem:[%s1 + $0xb8] sm:$0xff]
    %v76 = vld [vmem:[%s1 + $0xc0] sm:$0xff]
    %v77 = vld [vmem:[%s1 + $0xc8] sm:$0xff]
    %v78 = vld [vmem:[%s1 + $0xd0] sm:$0xff]
    %v79 = vld [vmem:[%s1 + $0xd8] sm:$0xff]
    %v80 = vld [vmem:[%s1 + $0xe0] sm:$0xff]
    %v81 = vld [vmem:[%s1 + $0xe8] sm:$0xff]
    %v82 = vld [vmem:[%s1 + $0xf0] sm:$0xff]
    %v83 = vld [vmem:[%s1 + $0xf8] sm:$0xff]
    %v84 = vld [vmem:[%s1 + $0x100] sm:$0xff]
    %v85 = vld [vmem:[%s1 + $0x108] sm:$0xff]
    %v86 = vld [vmem:[%s1 + $0x110] sm:$0xff]
    %v87 = vld [vmem:[%s1 + $0x118] sm:$0xff]
    %v88 = vld [vmem:[%s1 + $0x120] sm:$0xff]
    %v89 = vld [vmem:[%s1 + $0x128] sm:$0xff]
    %v90 = vld [vmem:[%s1 + $0x130] sm:$0xff]
    %v91 = vld [vmem:[%s1 + $0x138] sm:$0xff]
    %v92 = vld [vmem:[%s1 + $0x140] sm:$0xff]
    %v93 = vld [vmem:[%s1 + $0x148] sm:$0xff]
    %v94 = vld [vmem:[%s1 + $0x150] sm:$0xff]
    %v95 = vld [vmem:[%s1 + $0x158] sm:$0xff]
    %v96 = vld [vmem:[%s1 + $0x160] sm:$0xff]
    %v97 = vld [vmem:[%s1 + $0x168] sm:$0xff]
    %v98 = vld [vmem:[%s1 + $0x170] sm:$0xff]
    %v99 = vld [vmem:[%s1 + $0x178] sm:$0xff]
    %v100 = vld [vmem:[%s13] sm:$0x3f]
    %v102 = vlaneseq
    %v103 = vshrl.u32 %v102, 7
    %v104 = vsub.s32 0, %v103
    %v105 = vrot.slane %v100, %v104
    %v106 = vlaneseq
    %v107 = vshrl.u32 %v106, 7
    %v108 = vsub.s32 1, %v107
    %v109 = vrot.slane %v100, %v108
    %v110 = vlaneseq
    %v111 = vshrl.u32 %v110, 7
    %v112 = vsub.s32 2, %v111
    %v113 = vrot.slane %v100, %v112
    %v114 = vlaneseq
    %v115 = vshrl.u32 %v114, 7
    %v116 = vsub.s32 3, %v115
    %v117 = vrot.slane %v100, %v116
    %v118 = vlaneseq
    %v119 = vshrl.u32 %v118, 7
    %v120 = vsub.s32 4, %v119
    %v121 = vrot.slane %v100, %v120
    %v122 = vlaneseq
    %v123 = vshrl.u32 %v122, 7
    %v124 = vsub.s32 5, %v123
    %v125 = vrot.slane %v100, %v124
    %vm132 = vcmask 523264
    %v134 = vsel %vm132, %v48, 0
    %v137 = vsel %vm132, %v49, 0
    %v140 = vsel %vm132, %v50, 0
    %v143 = vsel %vm132, %v51, 0
    %145 = vmatprep.subr.mxu0 %v53
    %146 = vmatpush1.msra.mxu0 %v52
    %147 = vmatprep.subr.mxu0 %v59
    %148 = vmatpush1.msra.mxu0 %v58
    %149 = vmatprep.subr.mxu0 %v65
    %150 = vmatpush1.msra.mxu0 %v64
    %151 = vmatprep.subr.mxu0 %v71
    %152 = vmatpush1.msra.mxu0 %v70
    %153 = vmatprep.subr.mxu0 %v77
    %154 = vmatpush1.msra.mxu0 %v76
    %155 = vmatprep.subr.mxu0 %v83
    %156 = vmatpush1.msra.mxu0 %v82
    %157 = vmatprep.subr.mxu0 %v89
    %158 = vmatpush1.msra.mxu0 %v88
    %159 = vmatprep.subr.mxu0 %v95
    %160 = vmatpush1.msra.mxu0 %v94
    %161 = vmatprep.subr.mxu0 0.0
    %162 = vmatpush1.msra.mxu0 0.0
    %163 = vmatprep.subr.mxu0 0.0
    %164 = vmatpush1.msra.mxu0 0.0
    %165 = vmatprep.subr.mxu0 0.0
    %166 = vmatpush1.msra.mxu0 0.0
    %167 = vmatprep.subr.mxu0 0.0
    %168 = vmatpush1.msra.mxu0 0.0
    %169 = vmatprep.subr.mxu0 0.0
    %170 = vmatpush1.msra.mxu0 0.0
    %171 = vmatprep.subr.mxu0 0.0
    %172 = vmatpush1.msra.mxu0 0.0
    %173 = vmatprep.subr.mxu0 0.0
    %174 = vmatpush1.msra.mxu0 0.0
    %175 = vmatprep.subr.mxu0 0.0
    %176 = vmatpush1.msra.mxu0 0.0
    %177 = vmatprep.subr.mxu0 0.0
    %178 = vmatpush1.msra.mxu0 0.0
    %179 = vmatprep.subr.mxu0 0.0
    %180 = vmatpush1.msra.mxu0 0.0
    %181 = vmatprep.subr.mxu0 0.0
    %182 = vmatpush1.msra.mxu0 0.0
    %183 = vmatprep.subr.mxu0 0.0
    %184 = vmatpush1.msra.mxu0 0.0
    %185 = vmatprep.subr.mxu0 0.0
    %186 = vmatpush1.msra.mxu0 0.0
    %187 = vmatprep.subr.mxu0 0.0
    %188 = vmatpush1.msra.mxu0 0.0
    %189 = vmatprep.subr.mxu0 0.0
    %190 = vmatpush1.msra.mxu0 0.0
    %191 = vmatprep.subr.mxu0 0.0
    %192 = vmatpush1.msra.mxu0 0.0
    %193 = vmatprep.subr.mxu0 0.0
    %194 = vmatpush1.msra.mxu0 0.0
    %195 = vmatprep.subr.mxu0 0.0
    %196 = vmatpush1.msra.mxu0 0.0
    %197 = vmatprep.subr.mxu0 0.0
    %198 = vmatpush1.msra.mxu0 0.0
    %199 = vmatprep.subr.mxu0 0.0
    %200 = vmatpush1.msra.mxu0 0.0
    %201 = vmatprep.subr.mxu0 0.0
    %202 = vmatpush1.msra.mxu0 0.0
    %203 = vmatprep.subr.mxu0 0.0
    %204 = vmatpush1.msra.mxu0 0.0
    %205 = vmatprep.subr.mxu0 0.0
    %206 = vmatpush1.msra.mxu0 0.0
    %207 = vmatprep.subr.mxu0 0.0
    %208 = vmatpush1.msra.mxu0 0.0
    %209 = vmatprep.mubr.f32.mxu0 0.0
    %210 = vmatmul.mubr.f32.gmra.mrb[0].mxu0 %v134
    %v211 = vpop.f32.mrb[0].mxu0
    %v212 = vadd.f32 %v105, %v211
    %v213 = vpop.f32.mrb[0].mxu0
    %v214 = vadd.f32 %v109, %v213
    %215 = vmatprep.mubr.f32.mxu0 0.0
    %216 = vmatmul.mubr.f32.gmra.mrb[0].mxu0 %v137
    %v217 = vpop.f32.mrb[0].mxu0
    %v218 = vadd.f32 %v105, %v217
    %v219 = vpop.f32.mrb[0].mxu0
    %v220 = vadd.f32 %v109, %v219
    %221 = vmatprep.mubr.f32.mxu0 0.0
    %222 = vmatmul.mubr.f32.gmra.mrb[0].mxu0 %v140
    %v223 = vpop.f32.mrb[0].mxu0
    %v224 = vadd.f32 %v105, %v223
    %v225 = vpop.f32.mrb[0].mxu0
    %v226 = vadd.f32 %v109, %v225
    %227 = vmatprep.mubr.f32.mxu0 0.0
    %228 = vmatmul.mubr.f32.gmra.mrb[0].mxu0 %v143
    %v229 = vpop.f32.mrb[0].mxu0
    %v230 = vadd.f32 %v105, %v229
    %v231 = vpop.f32.mrb[0].mxu0
    %v232 = vadd.f32 %v109, %v231
    %233 = vdwg.mxu0
    %234 = vmatprep.subr.mxu0 %v55
    %235 = vmatpush1.msra.mxu0 %v54
    %236 = vmatprep.subr.mxu0 %v61
    %237 = vmatpush1.msra.mxu0 %v60
    %238 = vmatprep.subr.mxu0 %v67
    %239 = vmatpush1.msra.mxu0 %v66
    %240 = vmatprep.subr.mxu0 %v73
    %241 = vmatpush1.msra.mxu0 %v72
    %242 = vmatprep.subr.mxu0 %v79
    %243 = vmatpush1.msra.mxu0 %v78
    %244 = vmatprep.subr.mxu0 %v85
    %245 = vmatpush1.msra.mxu0 %v84
    %246 = vmatprep.subr.mxu0 %v91
    %247 = vmatpush1.msra.mxu0 %v90
    %248 = vmatprep.subr.mxu0 %v97
    %249 = vmatpush1.msra.mxu0 %v96
    %250 = vmatprep.subr.mxu0 0.0
    %251 = vmatpush1.msra.mxu0 0.0
    %252 = vmatprep.subr.mxu0 0.0
    %253 = vmatpush1.msra.mxu0 0.0
    %254 = vmatprep.subr.mxu0 0.0
    %255 = vmatpush1.msra.mxu0 0.0
    %256 = vmatprep.subr.mxu0 0.0
    %257 = vmatpush1.msra.mxu0 0.0
    %258 = vmatprep.subr.mxu0 0.0
    %259 = vmatpush1.msra.mxu0 0.0
    %260 = vmatprep.subr.mxu0 0.0
    %261 = vmatpush1.msra.mxu0 0.0
    %262 = vmatprep.subr.mxu0 0.0
    %263 = vmatpush1.msra.mxu0 0.0
    %264 = vmatprep.subr.mxu0 0.0
    %265 = vmatpush1.msra.mxu0 0.0
    %266 = vmatprep.subr.mxu0 0.0
    %267 = vmatpush1.msra.mxu0 0.0
    %268 = vmatprep.subr.mxu0 0.0
    %269 = vmatpush1.msra.mxu0 0.0
    %270 = vmatprep.subr.mxu0 0.0
    %271 = vmatpush1.msra.mxu0 0.0
    %272 = vmatprep.subr.mxu0 0.0
    %273 = vmatpush1.msra.mxu0 0.0
    %274 = vmatprep.subr.mxu0 0.0
    %275 = vmatpush1.msra.mxu0 0.0
    %276 = vmatprep.subr.mxu0 0.0
    %277 = vmatpush1.msra.mxu0 0.0
    %278 = vmatprep.subr.mxu0 0.0
    %279 = vmatpush1.msra.mxu0 0.0
    %280 = vmatprep.subr.mxu0 0.0
    %281 = vmatpush1.msra.mxu0 0.0
    %282 = vmatprep.subr.mxu0 0.0
    %283 = vmatpush1.msra.mxu0 0.0
    %284 = vmatprep.subr.mxu0 0.0
    %285 = vmatpush1.msra.mxu0 0.0
    %286 = vmatprep.subr.mxu0 0.0
    %287 = vmatpush1.msra.mxu0 0.0
    %288 = vmatprep.subr.mxu0 0.0
    %289 = vmatpush1.msra.mxu0 0.0
    %290 = vmatprep.subr.mxu0 0.0
    %291 = vmatpush1.msra.mxu0 0.0
    %292 = vmatprep.subr.mxu0 0.0
    %293 = vmatpush1.msra.mxu0 0.0
    %294 = vmatprep.subr.mxu0 0.0
    %295 = vmatpush1.msra.mxu0 0.0
    %296 = vmatprep.subr.mxu0 0.0
    %297 = vmatpush1.msra.mxu0 0.0
    %298 = vmatprep.mubr.f32.mxu0 0.0
    %299 = vmatmul.mubr.f32.gmra.mrb[0].mxu0 %v134
    %v300 = vpop.f32.mrb[0].mxu0
    %v301 = vadd.f32 %v113, %v300
    %v302 = vpop.f32.mrb[0].mxu0
    %v303 = vadd.f32 %v117, %v302
    %304 = vmatprep.mubr.f32.mxu0 0.0
    %305 = vmatmul.mubr.f32.gmra.mrb[0].mxu0 %v137
    %v306 = vpop.f32.mrb[0].mxu0
    %v307 = vadd.f32 %v113, %v306
    %v308 = vpop.f32.mrb[0].mxu0
    %v309 = vadd.f32 %v117, %v308
    %310 = vmatprep.mubr.f32.mxu0 0.0
    %311 = vmatmul.mubr.f32.gmra.mrb[0].mxu0 %v140
    %v312 = vpop.f32.mrb[0].mxu0
    %v313 = vadd.f32 %v113, %v312
    %v314 = vpop.f32.mrb[0].mxu0
    %v315 = vadd.f32 %v117, %v314
    %316 = vmatprep.mubr.f32.mxu0 0.0
    %317 = vmatmul.mubr.f32.gmra.mrb[0].mxu0 %v143
    %v318 = vpop.f32.mrb[0].mxu0
    %v319 = vadd.f32 %v113, %v318
    %v320 = vpop.f32.mrb[0].mxu0
    %v321 = vadd.f32 %v117, %v320
    %322 = vdwg.mxu0
    %323 = vmatprep.subr.mxu0 %v57
    %324 = vmatpush1.msra.mxu0 %v56
    %325 = vmatprep.subr.mxu0 %v63
    %326 = vmatpush1.msra.mxu0 %v62
    %327 = vmatprep.subr.mxu0 %v69
    %328 = vmatpush1.msra.mxu0 %v68
    %329 = vmatprep.subr.mxu0 %v75
    %330 = vmatpush1.msra.mxu0 %v74
    %331 = vmatprep.subr.mxu0 %v81
    %332 = vmatpush1.msra.mxu0 %v80
    %333 = vmatprep.subr.mxu0 %v87
    %334 = vmatpush1.msra.mxu0 %v86
    %335 = vmatprep.subr.mxu0 %v93
    %336 = vmatpush1.msra.mxu0 %v92
    %337 = vmatprep.subr.mxu0 %v99
    %338 = vmatpush1.msra.mxu0 %v98
    %339 = vmatprep.subr.mxu0 0.0
    %340 = vmatpush1.msra.mxu0 0.0
    %341 = vmatprep.subr.mxu0 0.0
    %342 = vmatpush1.msra.mxu0 0.0
    %343 = vmatprep.subr.mxu0 0.0
    %344 = vmatpush1.msra.mxu0 0.0
    %345 = vmatprep.subr.mxu0 0.0
    %346 = vmatpush1.msra.mxu0 0.0
    %347 = vmatprep.subr.mxu0 0.0
    %348 = vmatpush1.msra.mxu0 0.0
    %349 = vmatprep.subr.mxu0 0.0
    %350 = vmatpush1.msra.mxu0 0.0
    %351 = vmatprep.subr.mxu0 0.0
    %352 = vmatpush1.msra.mxu0 0.0
    %353 = vmatprep.subr.mxu0 0.0
    %354 = vmatpush1.msra.mxu0 0.0
    %355 = vmatprep.subr.mxu0 0.0
    %356 = vmatpush1.msra.mxu0 0.0
    %357 = vmatprep.subr.mxu0 0.0
    %358 = vmatpush1.msra.mxu0 0.0
    %359 = vmatprep.subr.mxu0 0.0
    %360 = vmatpush1.msra.mxu0 0.0
    %361 = vmatprep.subr.mxu0 0.0
    %362 = vmatpush1.msra.mxu0 0.0
    %363 = vmatprep.subr.mxu0 0.0
    %364 = vmatpush1.msra.mxu0 0.0
    %365 = vmatprep.subr.mxu0 0.0
    %366 = vmatpush1.msra.mxu0 0.0
    %367 = vmatprep.subr.mxu0 0.0
    %368 = vmatpush1.msra.mxu0 0.0
    %369 = vmatprep.subr.mxu0 0.0
    %370 = vmatpush1.msra.mxu0 0.0
    %371 = vmatprep.subr.mxu0 0.0
    %372 = vmatpush1.msra.mxu0 0.0
    %373 = vmatprep.subr.mxu0 0.0
    %374 = vmatpush1.msra.mxu0 0.0
    %375 = vmatprep.subr.mxu0 0.0
    %376 = vmatpush1.msra.mxu0 0.0
    %377 = vmatprep.subr.mxu0 0.0
    %378 = vmatpush1.msra.mxu0 0.0
    %379 = vmatprep.subr.mxu0 0.0
    %380 = vmatpush1.msra.mxu0 0.0
    %381 = vmatprep.subr.mxu0 0.0
    %382 = vmatpush1.msra.mxu0 0.0
    %383 = vmatprep.subr.mxu0 0.0
    %384 = vmatpush1.msra.mxu0 0.0
    %385 = vmatprep.subr.mxu0 0.0
    %386 = vmatpush1.msra.mxu0 0.0
    %387 = vmatprep.mubr.f32.mxu0 0.0
    %388 = vmatmul.mubr.f32.gmra.mrb[0].mxu0 %v134
    %v389 = vpop.f32.mrb[0].mxu0
    %v390 = vadd.f32 %v121, %v389
    %v391 = vpop.f32.mrb[0].mxu0
    %v392 = vadd.f32 %v125, %v391
    %393 = vmatprep.mubr.f32.mxu0 0.0
    %394 = vmatmul.mubr.f32.gmra.mrb[0].mxu0 %v137
    %v395 = vpop.f32.mrb[0].mxu0
    %v396 = vadd.f32 %v121, %v395
    %v397 = vpop.f32.mrb[0].mxu0
    %v398 = vadd.f32 %v125, %v397
    %399 = vmatprep.mubr.f32.mxu0 0.0
    %400 = vmatmul.mubr.f32.gmra.mrb[0].mxu0 %v140
    %v401 = vpop.f32.mrb[0].mxu0
    %v402 = vadd.f32 %v121, %v401
    %v403 = vpop.f32.mrb[0].mxu0
    %v404 = vadd.f32 %v125, %v403
    %405 = vmatprep.mubr.f32.mxu0 0.0
    %406 = vmatmul.mubr.f32.gmra.mrb[0].mxu0 %v143
    %v407 = vpop.f32.mrb[0].mxu0
    %v408 = vadd.f32 %v121, %v407
    %v409 = vpop.f32.mrb[0].mxu0
    %v410 = vadd.f32 %v125, %v409
    %411 = vdwg.mxu0
    %v412 = vmul.f32 %v212, %v212
    %v413 = vmul.f32 %v214, %v214
    %v414 = vmul.f32 %v301, %v301
    %v415 = vmul.f32 %v303, %v303
    %v416 = vmul.f32 %v390, %v390
    %v417 = vmul.f32 %v392, %v392
    %v418 = vmul.f32 %v218, %v218
    %v419 = vmul.f32 %v220, %v220
    %v420 = vmul.f32 %v307, %v307
    %v421 = vmul.f32 %v309, %v309
    %v422 = vmul.f32 %v396, %v396
    %v423 = vmul.f32 %v398, %v398
    %v424 = vmul.f32 %v224, %v224
    %v425 = vmul.f32 %v226, %v226
    %v426 = vmul.f32 %v313, %v313
    %v427 = vmul.f32 %v315, %v315
    %v428 = vmul.f32 %v402, %v402
    %v429 = vmul.f32 %v404, %v404
    %v430 = vmul.f32 %v230, %v230
    %v431 = vmul.f32 %v232, %v232
    %v432 = vmul.f32 %v319, %v319
    %v433 = vmul.f32 %v321, %v321
    %v434 = vmul.f32 %v408, %v408
    %v435 = vmul.f32 %v410, %v410
    %v436 = vld [vmem:[%s2] sm:$0xff]
    %v437 = vld [vmem:[%s2 + $0x8] sm:$0xff]
    %v438 = vld [vmem:[%s2 + $0x10] sm:$0xff]
    %v439 = vld [vmem:[%s2 + $0x18] sm:$0xff]
    %v440 = vld [vmem:[%s2 + $0x20] sm:$0xff]
    %v441 = vld [vmem:[%s2 + $0x28] sm:$0xff]
    %v442 = vld [vmem:[%s2 + $0x30] sm:$0xff]
    %v443 = vld [vmem:[%s2 + $0x38] sm:$0xff]
    %v444 = vld [vmem:[%s2 + $0x40] sm:$0xff]
    %v445 = vld [vmem:[%s2 + $0x48] sm:$0xff]
    %v446 = vld [vmem:[%s2 + $0x50] sm:$0xff]
    %v447 = vld [vmem:[%s2 + $0x58] sm:$0xff]
    %v448 = vld [vmem:[%s2 + $0x60] sm:$0xff]
    %v449 = vld [vmem:[%s2 + $0x68] sm:$0xff]
    %v450 = vld [vmem:[%s2 + $0x70] sm:$0xff]
    %v451 = vld [vmem:[%s2 + $0x78] sm:$0xff]
    %v452 = vld [vmem:[%s2 + $0x80] sm:$0xff]
    %v453 = vld [vmem:[%s2 + $0x88] sm:$0xff]
    %v454 = vld [vmem:[%s2 + $0x90] sm:$0xff]
    %v455 = vld [vmem:[%s2 + $0x98] sm:$0xff]
    %v456 = vld [vmem:[%s2 + $0xa0] sm:$0xff]
    %v457 = vld [vmem:[%s2 + $0xa8] sm:$0xff]
    %v458 = vld [vmem:[%s2 + $0xb0] sm:$0xff]
    %v459 = vld [vmem:[%s2 + $0xb8] sm:$0xff]
    %v460 = vld [vmem:[%s2 + $0xc0] sm:$0xff]
    %v461 = vld [vmem:[%s2 + $0xc8] sm:$0xff]
    %v462 = vld [vmem:[%s2 + $0xd0] sm:$0xff]
    %v463 = vld [vmem:[%s2 + $0xd8] sm:$0xff]
    %v464 = vld [vmem:[%s2 + $0xe0] sm:$0xff]
    %v465 = vld [vmem:[%s2 + $0xe8] sm:$0xff]
    %v466 = vld [vmem:[%s2 + $0xf0] sm:$0xff]
    %v467 = vld [vmem:[%s2 + $0xf8] sm:$0xff]
    %v468 = vld [vmem:[%s2 + $0x100] sm:$0xff]
    %v469 = vld [vmem:[%s2 + $0x108] sm:$0xff]
    %v470 = vld [vmem:[%s2 + $0x110] sm:$0xff]
    %v471 = vld [vmem:[%s2 + $0x118] sm:$0xff]
    %v472 = vld [vmem:[%s2 + $0x120] sm:$0xff]
    %v473 = vld [vmem:[%s2 + $0x128] sm:$0xff]
    %v474 = vld [vmem:[%s2 + $0x130] sm:$0xff]
    %v475 = vld [vmem:[%s2 + $0x138] sm:$0xff]
    %v476 = vld [vmem:[%s2 + $0x140] sm:$0xff]
    %v477 = vld [vmem:[%s2 + $0x148] sm:$0xff]
    %v478 = vld [vmem:[%s2 + $0x150] sm:$0xff]
    %v479 = vld [vmem:[%s2 + $0x158] sm:$0xff]
    %v480 = vld [vmem:[%s2 + $0x160] sm:$0xff]
    %v481 = vld [vmem:[%s2 + $0x168] sm:$0xff]
    %v482 = vld [vmem:[%s2 + $0x170] sm:$0xff]
    %v483 = vld [vmem:[%s2 + $0x178] sm:$0xff]
    %v484 = vld [vmem:[%s2 + $0x180] sm:$0xff]
    %v485 = vld [vmem:[%s2 + $0x188] sm:$0xff]
    %v486 = vld [vmem:[%s2 + $0x190] sm:$0xff]
    %v487 = vld [vmem:[%s2 + $0x198] sm:$0xff]
    %v488 = vld [vmem:[%s2 + $0x1a0] sm:$0xff]
    %v489 = vld [vmem:[%s2 + $0x1a8] sm:$0xff]
    %v490 = vld [vmem:[%s2 + $0x1b0] sm:$0xff]
    %v491 = vld [vmem:[%s2 + $0x1b8] sm:$0xff]
    %v492 = vld [vmem:[%s2 + $0x1c0] sm:$0xff]
    %v493 = vld [vmem:[%s2 + $0x1c8] sm:$0xff]
    %v494 = vld [vmem:[%s2 + $0x1d0] sm:$0xff]
    %v495 = vld [vmem:[%s2 + $0x1d8] sm:$0xff]
    %v496 = vld [vmem:[%s2 + $0x1e0] sm:$0xff]
    %v497 = vld [vmem:[%s2 + $0x1e8] sm:$0xff]
    %v498 = vld [vmem:[%s2 + $0x1f0] sm:$0xff]
    %v499 = vld [vmem:[%s2 + $0x1f8] sm:$0xff]
    %v500 = vld [vmem:[%s2 + $0x200] sm:$0xff]
    %v501 = vld [vmem:[%s2 + $0x208] sm:$0xff]
    %v502 = vld [vmem:[%s2 + $0x210] sm:$0xff]
    %v503 = vld [vmem:[%s2 + $0x218] sm:$0xff]
    %v504 = vld [vmem:[%s2 + $0x220] sm:$0xff]
    %v505 = vld [vmem:[%s2 + $0x228] sm:$0xff]
    %v506 = vld [vmem:[%s2 + $0x230] sm:$0xff]
    %v507 = vld [vmem:[%s2 + $0x238] sm:$0xff]
    %v508 = vld [vmem:[%s2 + $0x240] sm:$0xff]
    %v509 = vld [vmem:[%s2 + $0x248] sm:$0xff]
    %v510 = vld [vmem:[%s2 + $0x250] sm:$0xff]
    %v511 = vld [vmem:[%s2 + $0x258] sm:$0xff]
    %v512 = vld [vmem:[%s2 + $0x260] sm:$0xff]
    %v513 = vld [vmem:[%s2 + $0x268] sm:$0xff]
    %v514 = vld [vmem:[%s2 + $0x270] sm:$0xff]
    %v515 = vld [vmem:[%s2 + $0x278] sm:$0xff]
    %v516 = vld [vmem:[%s2 + $0x280] sm:$0xff]
    %v517 = vld [vmem:[%s2 + $0x288] sm:$0xff]
    %v518 = vld [vmem:[%s2 + $0x290] sm:$0xff]
    %v519 = vld [vmem:[%s2 + $0x298] sm:$0xff]
    %v520 = vld [vmem:[%s2 + $0x2a0] sm:$0xff]
    %v521 = vld [vmem:[%s2 + $0x2a8] sm:$0xff]
    %v522 = vld [vmem:[%s2 + $0x2b0] sm:$0xff]
    %v523 = vld [vmem:[%s2 + $0x2b8] sm:$0xff]
    %v524 = vld [vmem:[%s2 + $0x2c0] sm:$0xff]
    %v525 = vld [vmem:[%s2 + $0x2c8] sm:$0xff]
    %v526 = vld [vmem:[%s2 + $0x2d0] sm:$0xff]
    %v527 = vld [vmem:[%s2 + $0x2d8] sm:$0xff]
    %v528 = vld [vmem:[%s2 + $0x2e0] sm:$0xff]
    %v529 = vld [vmem:[%s2 + $0x2e8] sm:$0xff]
    %v530 = vld [vmem:[%s2 + $0x2f0] sm:$0xff]
    %v531 = vld [vmem:[%s2 + $0x2f8] sm:$0xff]
    %v532 = vld [vmem:[%s2 + $0x300] sm:$0xff]
    %v533 = vld [vmem:[%s2 + $0x308] sm:$0xff]
    %v534 = vld [vmem:[%s2 + $0x310] sm:$0xff]
    %v535 = vld [vmem:[%s2 + $0x318] sm:$0xff]
    %v536 = vld [vmem:[%s2 + $0x320] sm:$0xff]
    %v537 = vld [vmem:[%s2 + $0x328] sm:$0xff]
    %v538 = vld [vmem:[%s2 + $0x330] sm:$0xff]
    %v539 = vld [vmem:[%s2 + $0x338] sm:$0xff]
    %v540 = vld [vmem:[%s2 + $0x340] sm:$0xff]
    %v541 = vld [vmem:[%s2 + $0x348] sm:$0xff]
    %v542 = vld [vmem:[%s2 + $0x350] sm:$0xff]
    %v543 = vld [vmem:[%s2 + $0x358] sm:$0xff]
    %v544 = vld [vmem:[%s2 + $0x360] sm:$0xff]
    %v545 = vld [vmem:[%s2 + $0x368] sm:$0xff]
    %v546 = vld [vmem:[%s2 + $0x370] sm:$0xff]
    %v547 = vld [vmem:[%s2 + $0x378] sm:$0xff]
    %v548 = vld [vmem:[%s2 + $0x380] sm:$0xff]
    %v549 = vld [vmem:[%s2 + $0x388] sm:$0xff]
    %v550 = vld [vmem:[%s2 + $0x390] sm:$0xff]
    %v551 = vld [vmem:[%s2 + $0x398] sm:$0xff]
    %v552 = vld [vmem:[%s2 + $0x3a0] sm:$0xff]
    %v553 = vld [vmem:[%s2 + $0x3a8] sm:$0xff]
    %v554 = vld [vmem:[%s2 + $0x3b0] sm:$0xff]
    %v555 = vld [vmem:[%s2 + $0x3b8] sm:$0xff]
    %v556 = vld [vmem:[%s2 + $0x3c0] sm:$0xff]
    %v557 = vld [vmem:[%s2 + $0x3c8] sm:$0xff]
    %v558 = vld [vmem:[%s2 + $0x3d0] sm:$0xff]
    %v559 = vld [vmem:[%s2 + $0x3d8] sm:$0xff]
    %v560 = vld [vmem:[%s2 + $0x3e0] sm:$0xff]
    %v561 = vld [vmem:[%s2 + $0x3e8] sm:$0xff]
    %v562 = vld [vmem:[%s2 + $0x3f0] sm:$0xff]
    %v563 = vld [vmem:[%s2 + $0x3f8] sm:$0xff]
    %v564 = vld [vmem:[%s2 + $0x400] sm:$0xff]
    %v565 = vld [vmem:[%s2 + $0x408] sm:$0xff]
    %v566 = vld [vmem:[%s2 + $0x410] sm:$0xff]
    %v567 = vld [vmem:[%s2 + $0x418] sm:$0xff]
    %v568 = vld [vmem:[%s2 + $0x420] sm:$0xff]
    %v569 = vld [vmem:[%s2 + $0x428] sm:$0xff]
    %v570 = vld [vmem:[%s2 + $0x430] sm:$0xff]
    %v571 = vld [vmem:[%s2 + $0x438] sm:$0xff]
    %v572 = vld [vmem:[%s2 + $0x440] sm:$0xff]
    %v573 = vld [vmem:[%s2 + $0x448] sm:$0xff]
    %v574 = vld [vmem:[%s2 + $0x450] sm:$0xff]
    %v575 = vld [vmem:[%s2 + $0x458] sm:$0xff]
    %v576 = vld [vmem:[%s2 + $0x460] sm:$0xff]
    %v577 = vld [vmem:[%s2 + $0x468] sm:$0xff]
    %v578 = vld [vmem:[%s2 + $0x470] sm:$0xff]
    %v579 = vld [vmem:[%s2 + $0x478] sm:$0xff]
    %v580 = vld [vmem:[%s2 + $0x480] sm:$0xff]
    %v581 = vld [vmem:[%s2 + $0x488] sm:$0xff]
    %v582 = vld [vmem:[%s2 + $0x490] sm:$0xff]
    %v583 = vld [vmem:[%s2 + $0x498] sm:$0xff]
    %v584 = vld [vmem:[%s2 + $0x4a0] sm:$0xff]
    %v585 = vld [vmem:[%s2 + $0x4a8] sm:$0xff]
    %v586 = vld [vmem:[%s2 + $0x4b0] sm:$0xff]
    %v587 = vld [vmem:[%s2 + $0x4b8] sm:$0xff]
    %v588 = vld [vmem:[%s2 + $0x4c0] sm:$0xff]
    %v589 = vld [vmem:[%s2 + $0x4c8] sm:$0xff]
    %v590 = vld [vmem:[%s2 + $0x4d0] sm:$0xff]
    %v591 = vld [vmem:[%s2 + $0x4d8] sm:$0xff]
    %v592 = vld [vmem:[%s2 + $0x4e0] sm:$0xff]
    %v593 = vld [vmem:[%s2 + $0x4e8] sm:$0xff]
    %v594 = vld [vmem:[%s2 + $0x4f0] sm:$0xff]
    %v595 = vld [vmem:[%s2 + $0x4f8] sm:$0xff]
    %v596 = vld [vmem:[%s2 + $0x500] sm:$0xff]
    %v597 = vld [vmem:[%s2 + $0x508] sm:$0xff]
    %v598 = vld [vmem:[%s2 + $0x510] sm:$0xff]
    %v599 = vld [vmem:[%s2 + $0x518] sm:$0xff]
    %v600 = vld [vmem:[%s2 + $0x520] sm:$0xff]
    %v601 = vld [vmem:[%s2 + $0x528] sm:$0xff]
    %v602 = vld [vmem:[%s2 + $0x530] sm:$0xff]
    %v603 = vld [vmem:[%s2 + $0x538] sm:$0xff]
    %v604 = vld [vmem:[%s2 + $0x540] sm:$0xff]
    %v605 = vld [vmem:[%s2 + $0x548] sm:$0xff]
    %v606 = vld [vmem:[%s2 + $0x550] sm:$0xff]
    %v607 = vld [vmem:[%s2 + $0x558] sm:$0xff]
    %v608 = vld [vmem:[%s2 + $0x560] sm:$0xff]
    %v609 = vld [vmem:[%s2 + $0x568] sm:$0xff]
    %v610 = vld [vmem:[%s2 + $0x570] sm:$0xff]
    %v611 = vld [vmem:[%s2 + $0x578] sm:$0xff]
    %v612 = vld [vmem:[%s2 + $0x580] sm:$0xff]
    %v613 = vld [vmem:[%s2 + $0x588] sm:$0xff]
    %v614 = vld [vmem:[%s2 + $0x590] sm:$0xff]
    %v615 = vld [vmem:[%s2 + $0x598] sm:$0xff]
    %v616 = vld [vmem:[%s2 + $0x5a0] sm:$0xff]
    %v617 = vld [vmem:[%s2 + $0x5a8] sm:$0xff]
    %v618 = vld [vmem:[%s2 + $0x5b0] sm:$0xff]
    %v619 = vld [vmem:[%s2 + $0x5b8] sm:$0xff]
    %v620 = vld [vmem:[%s2 + $0x5c0] sm:$0xff]
    %v621 = vld [vmem:[%s2 + $0x5c8] sm:$0xff]
    %v622 = vld [vmem:[%s2 + $0x5d0] sm:$0xff]
    %v623 = vld [vmem:[%s2 + $0x5d8] sm:$0xff]
    %v624 = vld [vmem:[%s2 + $0x5e0] sm:$0xff]
    %v625 = vld [vmem:[%s2 + $0x5e8] sm:$0xff]
    %v626 = vld [vmem:[%s2 + $0x5f0] sm:$0xff]
    %v627 = vld [vmem:[%s2 + $0x5f8] sm:$0xff]
    %v628 = vld [vmem:[%s2 + $0x600] sm:$0xff]
    %v629 = vld [vmem:[%s2 + $0x608] sm:$0xff]
    %v630 = vld [vmem:[%s2 + $0x610] sm:$0xff]
    %v631 = vld [vmem:[%s2 + $0x618] sm:$0xff]
    %v632 = vld [vmem:[%s2 + $0x620] sm:$0xff]
    %v633 = vld [vmem:[%s2 + $0x628] sm:$0xff]
    %v634 = vld [vmem:[%s2 + $0x630] sm:$0xff]
    %v635 = vld [vmem:[%s2 + $0x638] sm:$0xff]
    %v636 = vld [vmem:[%s2 + $0x640] sm:$0xff]
    %v637 = vld [vmem:[%s2 + $0x648] sm:$0xff]
    %v638 = vld [vmem:[%s2 + $0x650] sm:$0xff]
    %v639 = vld [vmem:[%s2 + $0x658] sm:$0xff]
    %v640 = vld [vmem:[%s2 + $0x660] sm:$0xff]
    %v641 = vld [vmem:[%s2 + $0x668] sm:$0xff]
    %v642 = vld [vmem:[%s2 + $0x670] sm:$0xff]
    %v643 = vld [vmem:[%s2 + $0x678] sm:$0xff]
    %v644 = vld [vmem:[%s2 + $0x680] sm:$0xff]
    %v645 = vld [vmem:[%s2 + $0x688] sm:$0xff]
    %v646 = vld [vmem:[%s2 + $0x690] sm:$0xff]
    %v647 = vld [vmem:[%s2 + $0x698] sm:$0xff]
    %v648 = vld [vmem:[%s2 + $0x6a0] sm:$0xff]
    %v649 = vld [vmem:[%s2 + $0x6a8] sm:$0xff]
    %v650 = vld [vmem:[%s2 + $0x6b0] sm:$0xff]
    %v651 = vld [vmem:[%s2 + $0x6b8] sm:$0xff]
    %v652 = vld [vmem:[%s2 + $0x6c0] sm:$0xff]
    %v653 = vld [vmem:[%s2 + $0x6c8] sm:$0xff]
    %v654 = vld [vmem:[%s2 + $0x6d0] sm:$0xff]
    %v655 = vld [vmem:[%s2 + $0x6d8] sm:$0xff]
    %v656 = vld [vmem:[%s2 + $0x6e0] sm:$0xff]
    %v657 = vld [vmem:[%s2 + $0x6e8] sm:$0xff]
    %v658 = vld [vmem:[%s2 + $0x6f0] sm:$0xff]
    %v659 = vld [vmem:[%s2 + $0x6f8] sm:$0xff]
    %v660 = vld [vmem:[%s2 + $0x700] sm:$0xff]
    %v661 = vld [vmem:[%s2 + $0x708] sm:$0xff]
    %v662 = vld [vmem:[%s2 + $0x710] sm:$0xff]
    %v663 = vld [vmem:[%s2 + $0x718] sm:$0xff]
    %v664 = vld [vmem:[%s2 + $0x720] sm:$0xff]
    %v665 = vld [vmem:[%s2 + $0x728] sm:$0xff]
    %v666 = vld [vmem:[%s2 + $0x730] sm:$0xff]
    %v667 = vld [vmem:[%s2 + $0x738] sm:$0xff]
    %v668 = vld [vmem:[%s2 + $0x740] sm:$0xff]
    %v669 = vld [vmem:[%s2 + $0x748] sm:$0xff]
    %v670 = vld [vmem:[%s2 + $0x750] sm:$0xff]
    %v671 = vld [vmem:[%s2 + $0x758] sm:$0xff]
    %v672 = vld [vmem:[%s2 + $0x760] sm:$0xff]
    %v673 = vld [vmem:[%s2 + $0x768] sm:$0xff]
    %v674 = vld [vmem:[%s2 + $0x770] sm:$0xff]
    %v675 = vld [vmem:[%s2 + $0x778] sm:$0xff]
    %v676 = vld [vmem:[%s2 + $0x780] sm:$0xff]
    %v677 = vld [vmem:[%s2 + $0x788] sm:$0xff]
    %v678 = vld [vmem:[%s2 + $0x790] sm:$0xff]
    %v679 = vld [vmem:[%s2 + $0x798] sm:$0xff]
    %v680 = vld [vmem:[%s2 + $0x7a0] sm:$0xff]
    %v681 = vld [vmem:[%s2 + $0x7a8] sm:$0xff]
    %v682 = vld [vmem:[%s2 + $0x7b0] sm:$0xff]
    %v683 = vld [vmem:[%s2 + $0x7b8] sm:$0xff]
    %v684 = vld [vmem:[%s2 + $0x7c0] sm:$0xff]
    %v685 = vld [vmem:[%s2 + $0x7c8] sm:$0xf]
    %v686 = vld [vmem:[%s2 + $0x7d0] sm:$0xf]
    %v687 = vld [vmem:[%s2 + $0x7d8] sm:$0xf]
    %vm688 = vcmask 228352
    %v690 = vsel %vm688, %v417, 0
    %v693 = vsel %vm688, %v423, 0
    %v696 = vsel %vm688, %v429, 0
    %v699 = vsel %vm688, %v435, 0
    %vm701 = vcmask 1043456
    %v703 = vsel %vm701, %v685, 0
    %v706 = vsel %vm701, %v686, 0
    %v709 = vsel %vm701, %v687, 0
    %711 = vmatprep.subr.mxu0 %v437
    %712 = vmatpush1.msra.mxu0 %v436
    %713 = vmatprep.subr.mxu0 %v440
    %714 = vmatpush1.msra.mxu0 %v439
    %715 = vmatprep.subr.mxu0 %v443
    %716 = vmatpush1.msra.mxu0 %v442
    %717 = vmatprep.subr.mxu0 %v446
    %718 = vmatpush1.msra.mxu0 %v445
    %719 = vmatprep.subr.mxu0 %v449
    %720 = vmatpush1.msra.mxu0 %v448
    %721 = vmatprep.subr.mxu0 %v452
    %722 = vmatpush1.msra.mxu0 %v451
    %723 = vmatprep.subr.mxu0 %v455
    %724 = vmatpush1.msra.mxu0 %v454
    %725 = vmatprep.subr.mxu0 %v458
    %726 = vmatpush1.msra.mxu0 %v457
    %727 = vmatprep.subr.mxu0 %v461
    %728 = vmatpush1.msra.mxu0 %v460
    %729 = vmatprep.subr.mxu0 %v464
    %730 = vmatpush1.msra.mxu0 %v463
    %731 = vmatprep.subr.mxu0 %v467
    %732 = vmatpush1.msra.mxu0 %v466
    %733 = vmatprep.subr.mxu0 %v470
    %734 = vmatpush1.msra.mxu0 %v469
    %735 = vmatprep.subr.mxu0 %v473
    %736 = vmatpush1.msra.mxu0 %v472
    %737 = vmatprep.subr.mxu0 %v476
    %738 = vmatpush1.msra.mxu0 %v475
    %739 = vmatprep.subr.mxu0 %v479
    %740 = vmatpush1.msra.mxu0 %v478
    %741 = vmatprep.subr.mxu0 %v482
    %742 = vmatpush1.msra.mxu0 %v481
    %743 = vmatprep.subr.mxu0 %v485
    %744 = vmatpush1.msra.mxu0 %v484
    %745 = vmatprep.subr.mxu0 %v488
    %746 = vmatpush1.msra.mxu0 %v487
    %747 = vmatprep.subr.mxu0 %v491
    %748 = vmatpush1.msra.mxu0 %v490
    %749 = vmatprep.subr.mxu0 %v494
    %750 = vmatpush1.msra.mxu0 %v493
    %751 = vmatprep.subr.mxu0 %v497
    %752 = vmatpush1.msra.mxu0 %v496
    %753 = vmatprep.subr.mxu0 %v500
    %754 = vmatpush1.msra.mxu0 %v499
    %755 = vmatprep.subr.mxu0 %v503
    %756 = vmatpush1.msra.mxu0 %v502
    %757 = vmatprep.subr.mxu0 %v506
    %758 = vmatpush1.msra.mxu0 %v505
    %759 = vmatprep.subr.mxu0 %v509
    %760 = vmatpush1.msra.mxu0 %v508
    %761 = vmatprep.subr.mxu0 %v512
    %762 = vmatpush1.msra.mxu0 %v511
    %763 = vmatprep.subr.mxu0 %v515
    %764 = vmatpush1.msra.mxu0 %v514
    %765 = vmatprep.subr.mxu0 %v518
    %766 = vmatpush1.msra.mxu0 %v517
    %767 = vmatprep.subr.mxu0 %v521
    %768 = vmatpush1.msra.mxu0 %v520
    %769 = vmatprep.subr.mxu0 %v524
    %770 = vmatpush1.msra.mxu0 %v523
    %771 = vmatprep.subr.mxu0 %v527
    %772 = vmatpush1.msra.mxu0 %v526
    %773 = vmatprep.subr.mxu0 %v530
    %774 = vmatpush1.msra.mxu0 %v529
    %775 = vmatprep.mubr.f32.mxu0 %v413
    %776 = vmatmul.mubr.f32.gmra.mrb[0].mxu0 %v412
    %v777 = vpop.f32.mrb[0].mxu0
    %v778 = vadd.f32 0.0, %v777
    %v779 = vpop.f32.mrb[0].mxu0
    %v780 = vadd.f32 0.0, %v779
    %781 = vmatprep.mubr.f32.mxu0 %v419
    %782 = vmatmul.mubr.f32.gmra.mrb[0].mxu0 %v418
    %v783 = vpop.f32.mrb[0].mxu0
    %v784 = vadd.f32 0.0, %v783
    %v785 = vpop.f32.mrb[0].mxu0
    %v786 = vadd.f32 0.0, %v785
    %787 = vmatprep.mubr.f32.mxu0 %v425
    %788 = vmatmul.mubr.f32.gmra.mrb[0].mxu0 %v424
    %v789 = vpop.f32.mrb[0].mxu0
    %v790 = vadd.f32 0.0, %v789
    %v791 = vpop.f32.mrb[0].mxu0
    %v792 = vadd.f32 0.0, %v791
    %793 = vmatprep.mubr.f32.mxu0 %v431
    %794 = vmatmul.mubr.f32.gmra.mrb[0].mxu0 %v430
    %v795 = vpop.f32.mrb[0].mxu0
    %v796 = vadd.f32 0.0, %v795
    %v797 = vpop.f32.mrb[0].mxu0
    %v798 = vadd.f32 0.0, %v797
    %799 = vdwg.mxu0
    %800 = vmatprep.subr.mxu0 %v533
    %801 = vmatpush1.msra.mxu0 %v532
    %802 = vmatprep.subr.mxu0 %v536
    %803 = vmatpush1.msra.mxu0 %v535
    %804 = vmatprep.subr.mxu0 %v539
    %805 = vmatpush1.msra.mxu0 %v538
    %806 = vmatprep.subr.mxu0 %v542
    %807 = vmatpush1.msra.mxu0 %v541
    %808 = vmatprep.subr.mxu0 %v545
    %809 = vmatpush1.msra.mxu0 %v544
    %810 = vmatprep.subr.mxu0 %v548
    %811 = vmatpush1.msra.mxu0 %v547
    %812 = vmatprep.subr.mxu0 %v551
    %813 = vmatpush1.msra.mxu0 %v550
    %814 = vmatprep.subr.mxu0 %v554
    %815 = vmatpush1.msra.mxu0 %v553
    %816 = vmatprep.subr.mxu0 %v557
    %817 = vmatpush1.msra.mxu0 %v556
    %818 = vmatprep.subr.mxu0 %v560
    %819 = vmatpush1.msra.mxu0 %v559
    %820 = vmatprep.subr.mxu0 %v563
    %821 = vmatpush1.msra.mxu0 %v562
    %822 = vmatprep.subr.mxu0 %v566
    %823 = vmatpush1.msra.mxu0 %v565
    %824 = vmatprep.subr.mxu0 %v569
    %825 = vmatpush1.msra.mxu0 %v568
    %826 = vmatprep.subr.mxu0 %v572
    %827 = vmatpush1.msra.mxu0 %v571
    %828 = vmatprep.subr.mxu0 %v575
    %829 = vmatpush1.msra.mxu0 %v574
    %830 = vmatprep.subr.mxu0 %v578
    %831 = vmatpush1.msra.mxu0 %v577
    %832 = vmatprep.subr.mxu0 %v581
    %833 = vmatpush1.msra.mxu0 %v580
    %834 = vmatprep.subr.mxu0 %v584
    %835 = vmatpush1.msra.mxu0 %v583
    %836 = vmatprep.subr.mxu0 %v587
    %837 = vmatpush1.msra.mxu0 %v586
    %838 = vmatprep.subr.mxu0 %v590
    %839 = vmatpush1.msra.mxu0 %v589
    %840 = vmatprep.subr.mxu0 %v593
    %841 = vmatpush1.msra.mxu0 %v592
    %842 = vmatprep.subr.mxu0 %v596
    %843 = vmatpush1.msra.mxu0 %v595
    %844 = vmatprep.subr.mxu0 %v599
    %845 = vmatpush1.msra.mxu0 %v598
    %846 = vmatprep.subr.mxu0 %v602
    %847 = vmatpush1.msra.mxu0 %v601
    %848 = vmatprep.subr.mxu0 %v605
    %849 = vmatpush1.msra.mxu0 %v604
    %850 = vmatprep.subr.mxu0 %v608
    %851 = vmatpush1.msra.mxu0 %v607
    %852 = vmatprep.subr.mxu0 %v611
    %853 = vmatpush1.msra.mxu0 %v610
    %854 = vmatprep.subr.mxu0 %v614
    %855 = vmatpush1.msra.mxu0 %v613
    %856 = vmatprep.subr.mxu0 %v617
    %857 = vmatpush1.msra.mxu0 %v616
    %858 = vmatprep.subr.mxu0 %v620
    %859 = vmatpush1.msra.mxu0 %v619
    %860 = vmatprep.subr.mxu0 %v623
    %861 = vmatpush1.msra.mxu0 %v622
    %862 = vmatprep.subr.mxu0 %v626
    %863 = vmatpush1.msra.mxu0 %v625
    %864 = vmatprep.mubr.f32.mxu0 %v415
    %865 = vmatmul.mubr.f32.gmra.mrb[0].mxu0 %v414
    %v866 = vpop.f32.mrb[0].mxu0
    %v867 = vadd.f32 %v778, %v866
    %v868 = vpop.f32.mrb[0].mxu0
    %v869 = vadd.f32 %v780, %v868
    %870 = vmatprep.mubr.f32.mxu0 %v421
    %871 = vmatmul.mubr.f32.gmra.mrb[0].mxu0 %v420
    %v872 = vpop.f32.mrb[0].mxu0
    %v873 = vadd.f32 %v784, %v872
    %v874 = vpop.f32.mrb[0].mxu0
    %v875 = vadd.f32 %v786, %v874
    %876 = vmatprep.mubr.f32.mxu0 %v427
    %877 = vmatmul.mubr.f32.gmra.mrb[0].mxu0 %v426
    %v878 = vpop.f32.mrb[0].mxu0
    %v879 = vadd.f32 %v790, %v878
    %v880 = vpop.f32.mrb[0].mxu0
    %v881 = vadd.f32 %v792, %v880
    %882 = vmatprep.mubr.f32.mxu0 %v433
    %883 = vmatmul.mubr.f32.gmra.mrb[0].mxu0 %v432
    %v884 = vpop.f32.mrb[0].mxu0
    %v885 = vadd.f32 %v796, %v884
    %v886 = vpop.f32.mrb[0].mxu0
    %v887 = vadd.f32 %v798, %v886
    %888 = vdwg.mxu0
    %889 = vmatprep.subr.mxu0 %v629
    %890 = vmatpush1.msra.mxu0 %v628
    %891 = vmatprep.subr.mxu0 %v632
    %892 = vmatpush1.msra.mxu0 %v631
    %893 = vmatprep.subr.mxu0 %v635
    %894 = vmatpush1.msra.mxu0 %v634
    %895 = vmatprep.subr.mxu0 %v638
    %896 = vmatpush1.msra.mxu0 %v637
    %897 = vmatprep.subr.mxu0 %v641
    %898 = vmatpush1.msra.mxu0 %v640
    %899 = vmatprep.subr.mxu0 %v644
    %900 = vmatpush1.msra.mxu0 %v643
    %901 = vmatprep.subr.mxu0 %v647
    %902 = vmatpush1.msra.mxu0 %v646
    %903 = vmatprep.subr.mxu0 %v650
    %904 = vmatpush1.msra.mxu0 %v649
    %905 = vmatprep.subr.mxu0 %v653
    %906 = vmatpush1.msra.mxu0 %v652
    %907 = vmatprep.subr.mxu0 %v656
    %908 = vmatpush1.msra.mxu0 %v655
    %909 = vmatprep.subr.mxu0 %v659
    %910 = vmatpush1.msra.mxu0 %v658
    %911 = vmatprep.subr.mxu0 %v662
    %912 = vmatpush1.msra.mxu0 %v661
    %913 = vmatprep.subr.mxu0 %v665
    %914 = vmatpush1.msra.mxu0 %v664
    %915 = vmatprep.subr.mxu0 %v668
    %916 = vmatpush1.msra.mxu0 %v667
    %917 = vmatprep.subr.mxu0 %v671
    %918 = vmatpush1.msra.mxu0 %v670
    %919 = vmatprep.subr.mxu0 %v674
    %920 = vmatpush1.msra.mxu0 %v673
    %921 = vmatprep.subr.mxu0 %v677
    %922 = vmatpush1.msra.mxu0 %v676
    %923 = vmatprep.subr.mxu0 %v680
    %924 = vmatpush1.msra.mxu0 %v679
    %925 = vmatprep.subr.mxu0 %v683
    %926 = vmatpush1.msra.mxu0 %v682
    %927 = vmatprep.subr.mxu0 %v706
    %928 = vmatpush1.msra.mxu0 %v703
    %929 = vmatprep.subr.mxu0 0.0
    %930 = vmatpush1.msra.mxu0 0.0
    %931 = vmatprep.subr.mxu0 0.0
    %932 = vmatpush1.msra.mxu0 0.0
    %933 = vmatprep.subr.mxu0 0.0
    %934 = vmatpush1.msra.mxu0 0.0
    %935 = vmatprep.subr.mxu0 0.0
    %936 = vmatpush1.msra.mxu0 0.0
    %937 = vmatprep.subr.mxu0 0.0
    %938 = vmatpush1.msra.mxu0 0.0
    %939 = vmatprep.subr.mxu0 0.0
    %940 = vmatpush1.msra.mxu0 0.0
    %941 = vmatprep.subr.mxu0 0.0
    %942 = vmatpush1.msra.mxu0 0.0
    %943 = vmatprep.subr.mxu0 0.0
    %944 = vmatpush1.msra.mxu0 0.0
    %945 = vmatprep.subr.mxu0 0.0
    %946 = vmatpush1.msra.mxu0 0.0
    %947 = vmatprep.subr.mxu0 0.0
    %948 = vmatpush1.msra.mxu0 0.0
    %949 = vmatprep.subr.mxu0 0.0
    %950 = vmatpush1.msra.mxu0 0.0
    %951 = vmatprep.subr.mxu0 0.0
    %952 = vmatpush1.msra.mxu0 0.0
    %953 = vmatprep.mubr.f32.mxu0 %v690
    %954 = vmatmul.mubr.f32.gmra.mrb[0].mxu0 %v416
    %v955 = vpop.f32.mrb[0].mxu0
    %v956 = vadd.f32 %v867, %v955
    %v957 = vpop.f32.mrb[0].mxu0
    %v958 = vadd.f32 %v869, %v957
    %959 = vmatprep.mubr.f32.mxu0 %v693
    %960 = vmatmul.mubr.f32.gmra.mrb[0].mxu0 %v422
    %v961 = vpop.f32.mrb[0].mxu0
    %v962 = vadd.f32 %v873, %v961
    %v963 = vpop.f32.mrb[0].mxu0
    %v964 = vadd.f32 %v875, %v963
    %965 = vmatprep.mubr.f32.mxu0 %v696
    %966 = vmatmul.mubr.f32.gmra.mrb[0].mxu0 %v428
    %v967 = vpop.f32.mrb[0].mxu0
    %v968 = vadd.f32 %v879, %v967
    %v969 = vpop.f32.mrb[0].mxu0
    %v970 = vadd.f32 %v881, %v969
    %971 = vmatprep.mubr.f32.mxu0 %v699
    %972 = vmatmul.mubr.f32.gmra.mrb[0].mxu0 %v434
    %v973 = vpop.f32.mrb[0].mxu0
    %v974 = vadd.f32 %v885, %v973
    %v975 = vpop.f32.mrb[0].mxu0
    %v976 = vadd.f32 %v887, %v975
    %977 = vdwg.mxu0
    %978 = vmatprep.subr.mxu0 0.0
    %979 = vmatpush1.msra.mxu0 %v438
    %980 = vmatprep.subr.mxu0 0.0
    %981 = vmatpush1.msra.mxu0 %v441
    %982 = vmatprep.subr.mxu0 0.0
    %983 = vmatpush1.msra.mxu0 %v444
    %984 = vmatprep.subr.mxu0 0.0
    %985 = vmatpush1.msra.mxu0 %v447
    %986 = vmatprep.subr.mxu0 0.0
    %987 = vmatpush1.msra.mxu0 %v450
    %988 = vmatprep.subr.mxu0 0.0
    %989 = vmatpush1.msra.mxu0 %v453
    %990 = vmatprep.subr.mxu0 0.0
    %991 = vmatpush1.msra.mxu0 %v456
    %992 = vmatprep.subr.mxu0 0.0
    %993 = vmatpush1.msra.mxu0 %v459
    %994 = vmatprep.subr.mxu0 0.0
    %995 = vmatpush1.msra.mxu0 %v462
    %996 = vmatprep.subr.mxu0 0.0
    %997 = vmatpush1.msra.mxu0 %v465
    %998 = vmatprep.subr.mxu0 0.0
    %999 = vmatpush1.msra.mxu0 %v468
    %1000 = vmatprep.subr.mxu0 0.0
    %1001 = vmatpush1.msra.mxu0 %v471
    %1002 = vmatprep.subr.mxu0 0.0
    %1003 = vmatpush1.msra.mxu0 %v474
    %1004 = vmatprep.subr.mxu0 0.0
    %1005 = vmatpush1.msra.mxu0 %v477
    %1006 = vmatprep.subr.mxu0 0.0
    %1007 = vmatpush1.msra.mxu0 %v480
    %1008 = vmatprep.subr.mxu0 0.0
    %1009 = vmatpush1.msra.mxu0 %v483
    %1010 = vmatprep.subr.mxu0 0.0
    %1011 = vmatpush1.msra.mxu0 %v486
    %1012 = vmatprep.subr.mxu0 0.0
    %1013 = vmatpush1.msra.mxu0 %v489
    %1014 = vmatprep.subr.mxu0 0.0
    %1015 = vmatpush1.msra.mxu0 %v492
    %1016 = vmatprep.subr.mxu0 0.0
    %1017 = vmatpush1.msra.mxu0 %v495
    %1018 = vmatprep.subr.mxu0 0.0
    %1019 = vmatpush1.msra.mxu0 %v498
    %1020 = vmatprep.subr.mxu0 0.0
    %1021 = vmatpush1.msra.mxu0 %v501
    %1022 = vmatprep.subr.mxu0 0.0
    %1023 = vmatpush1.msra.mxu0 %v504
    %1024 = vmatprep.subr.mxu0 0.0
    %1025 = vmatpush1.msra.mxu0 %v507
    %1026 = vmatprep.subr.mxu0 0.0
    %1027 = vmatpush1.msra.mxu0 %v510
    %1028 = vmatprep.subr.mxu0 0.0
    %1029 = vmatpush1.msra.mxu0 %v513
    %1030 = vmatprep.subr.mxu0 0.0
    %1031 = vmatpush1.msra.mxu0 %v516
    %1032 = vmatprep.subr.mxu0 0.0
    %1033 = vmatpush1.msra.mxu0 %v519
    %1034 = vmatprep.subr.mxu0 0.0
    %1035 = vmatpush1.msra.mxu0 %v522
    %1036 = vmatprep.subr.mxu0 0.0
    %1037 = vmatpush1.msra.mxu0 %v525
    %1038 = vmatprep.subr.mxu0 0.0
    %1039 = vmatpush1.msra.mxu0 %v528
    %1040 = vmatprep.subr.mxu0 0.0
    %1041 = vmatpush1.msra.mxu0 %v531
    %1042 = vmatprep.mubr.f32.mxu0 %v413
    %1043 = vmatmul.mubr.f32.gmra.mrb[0].mxu0 %v412
    %v1044 = vpop.f32.mrb[0].mxu0
    %v1045 = vadd.f32 0.0, %v1044
    %v1046 = vpop.f32.mrb[0].mxu0
    %1047 = vmatprep.mubr.f32.mxu0 %v419
    %1048 = vmatmul.mubr.f32.gmra.mrb[0].mxu0 %v418
    %v1049 = vpop.f32.mrb[0].mxu0
    %v1050 = vadd.f32 0.0, %v1049
    %v1051 = vpop.f32.mrb[0].mxu0
    %1052 = vmatprep.mubr.f32.mxu0 %v425
    %1053 = vmatmul.mubr.f32.gmra.mrb[0].mxu0 %v424
    %v1054 = vpop.f32.mrb[0].mxu0
    %v1055 = vadd.f32 0.0, %v1054
    %v1056 = vpop.f32.mrb[0].mxu0
    %1057 = vmatprep.mubr.f32.mxu0 %v431
    %1058 = vmatmul.mubr.f32.gmra.mrb[0].mxu0 %v430
    %v1059 = vpop.f32.mrb[0].mxu0
    %v1060 = vadd.f32 0.0, %v1059
    %v1061 = vpop.f32.mrb[0].mxu0
    %1062 = vdwg.mxu0
    %1063 = vmatprep.subr.mxu0 0.0
    %1064 = vmatpush1.msra.mxu0 %v534
    %1065 = vmatprep.subr.mxu0 0.0
    %1066 = vmatpush1.msra.mxu0 %v537
    %1067 = vmatprep.subr.mxu0 0.0
    %1068 = vmatpush1.msra.mxu0 %v540
    %1069 = vmatprep.subr.mxu0 0.0
    %1070 = vmatpush1.msra.mxu0 %v543
    %1071 = vmatprep.subr.mxu0 0.0
    %1072 = vmatpush1.msra.mxu0 %v546
    %1073 = vmatprep.subr.mxu0 0.0
    %1074 = vmatpush1.msra.mxu0 %v549
    %1075 = vmatprep.subr.mxu0 0.0
    %1076 = vmatpush1.msra.mxu0 %v552
    %1077 = vmatprep.subr.mxu0 0.0
    %1078 = vmatpush1.msra.mxu0 %v555
    %1079 = vmatprep.subr.mxu0 0.0
    %1080 = vmatpush1.msra.mxu0 %v558
    %1081 = vmatprep.subr.mxu0 0.0
    %1082 = vmatpush1.msra.mxu0 %v561
    %1083 = vmatprep.subr.mxu0 0.0
    %1084 = vmatpush1.msra.mxu0 %v564
    %1085 = vmatprep.subr.mxu0 0.0
    %1086 = vmatpush1.msra.mxu0 %v567
    %1087 = vmatprep.subr.mxu0 0.0
    %1088 = vmatpush1.msra.mxu0 %v570
    %1089 = vmatprep.subr.mxu0 0.0
    %1090 = vmatpush1.msra.mxu0 %v573
    %1091 = vmatprep.subr.mxu0 0.0
    %1092 = vmatpush1.msra.mxu0 %v576
    %1093 = vmatprep.subr.mxu0 0.0
    %1094 = vmatpush1.msra.mxu0 %v579
    %1095 = vmatprep.subr.mxu0 0.0
    %1096 = vmatpush1.msra.mxu0 %v582
    %1097 = vmatprep.subr.mxu0 0.0
    %1098 = vmatpush1.msra.mxu0 %v585
    %1099 = vmatprep.subr.mxu0 0.0
    %1100 = vmatpush1.msra.mxu0 %v588
    %1101 = vmatprep.subr.mxu0 0.0
    %1102 = vmatpush1.msra.mxu0 %v591
    %1103 = vmatprep.subr.mxu0 0.0
    %1104 = vmatpush1.msra.mxu0 %v594
    %1105 = vmatprep.subr.mxu0 0.0
    %1106 = vmatpush1.msra.mxu0 %v597
    %1107 = vmatprep.subr.mxu0 0.0
    %1108 = vmatpush1.msra.mxu0 %v600
    %1109 = vmatprep.subr.mxu0 0.0
    %1110 = vmatpush1.msra.mxu0 %v603
    %1111 = vmatprep.subr.mxu0 0.0
    %1112 = vmatpush1.msra.mxu0 %v606
    %1113 = vmatprep.subr.mxu0 0.0
    %1114 = vmatpush1.msra.mxu0 %v609
    %1115 = vmatprep.subr.mxu0 0.0
    %1116 = vmatpush1.msra.mxu0 %v612
    %1117 = vmatprep.subr.mxu0 0.0
    %1118 = vmatpush1.msra.mxu0 %v615
    %1119 = vmatprep.subr.mxu0 0.0
    %1120 = vmatpush1.msra.mxu0 %v618
    %1121 = vmatprep.subr.mxu0 0.0
    %1122 = vmatpush1.msra.mxu0 %v621
    %1123 = vmatprep.subr.mxu0 0.0
    %1124 = vmatpush1.msra.mxu0 %v624
    %1125 = vmatprep.subr.mxu0 0.0
    %1126 = vmatpush1.msra.mxu0 %v627
    %1127 = vmatprep.mubr.f32.mxu0 %v415
    %1128 = vmatmul.mubr.f32.gmra.mrb[0].mxu0 %v414
    %v1129 = vpop.f32.mrb[0].mxu0
    %v1130 = vadd.f32 %v1045, %v1129
    %v1131 = vpop.f32.mrb[0].mxu0
    %1132 = vmatprep.mubr.f32.mxu0 %v421
    %1133 = vmatmul.mubr.f32.gmra.mrb[0].mxu0 %v420
    %v1134 = vpop.f32.mrb[0].mxu0
    %v1135 = vadd.f32 %v1050, %v1134
    %v1136 = vpop.f32.mrb[0].mxu0
    %1137 = vmatprep.mubr.f32.mxu0 %v427
    %1138 = vmatmul.mubr.f32.gmra.mrb[0].mxu0 %v426
    %v1139 = vpop.f32.mrb[0].mxu0
    %v1140 = vadd.f32 %v1055, %v1139
    %v1141 = vpop.f32.mrb[0].mxu0
    %1142 = vmatprep.mubr.f32.mxu0 %v433
    %1143 = vmatmul.mubr.f32.gmra.mrb[0].mxu0 %v432
    %v1144 = vpop.f32.mrb[0].mxu0
    %v1145 = vadd.f32 %v1060, %v1144
    %v1146 = vpop.f32.mrb[0].mxu0
    %1147 = vdwg.mxu0
    %1148 = vmatprep.subr.mxu0 0.0
    %1149 = vmatpush1.msra.mxu0 %v630
    %1150 = vmatprep.subr.mxu0 0.0
    %1151 = vmatpush1.msra.mxu0 %v633
    %1152 = vmatprep.subr.mxu0 0.0
    %1153 = vmatpush1.msra.mxu0 %v636
    %1154 = vmatprep.subr.mxu0 0.0
    %1155 = vmatpush1.msra.mxu0 %v639
    %1156 = vmatprep.subr.mxu0 0.0
    %1157 = vmatpush1.msra.mxu0 %v642
    %1158 = vmatprep.subr.mxu0 0.0
    %1159 = vmatpush1.msra.mxu0 %v645
    %1160 = vmatprep.subr.mxu0 0.0
    %1161 = vmatpush1.msra.mxu0 %v648
    %1162 = vmatprep.subr.mxu0 0.0
    %1163 = vmatpush1.msra.mxu0 %v651
    %1164 = vmatprep.subr.mxu0 0.0
    %1165 = vmatpush1.msra.mxu0 %v654
    %1166 = vmatprep.subr.mxu0 0.0
    %1167 = vmatpush1.msra.mxu0 %v657
    %1168 = vmatprep.subr.mxu0 0.0
    %1169 = vmatpush1.msra.mxu0 %v660
    %1170 = vmatprep.subr.mxu0 0.0
    %1171 = vmatpush1.msra.mxu0 %v663
    %1172 = vmatprep.subr.mxu0 0.0
    %1173 = vmatpush1.msra.mxu0 %v666
    %1174 = vmatprep.subr.mxu0 0.0
    %1175 = vmatpush1.msra.mxu0 %v669
    %1176 = vmatprep.subr.mxu0 0.0
    %1177 = vmatpush1.msra.mxu0 %v672
    %1178 = vmatprep.subr.mxu0 0.0
    %1179 = vmatpush1.msra.mxu0 %v675
    %1180 = vmatprep.subr.mxu0 0.0
    %1181 = vmatpush1.msra.mxu0 %v678
    %1182 = vmatprep.subr.mxu0 0.0
    %1183 = vmatpush1.msra.mxu0 %v681
    %1184 = vmatprep.subr.mxu0 0.0
    %1185 = vmatpush1.msra.mxu0 %v684
    %1186 = vmatprep.subr.mxu0 0.0
    %1187 = vmatpush1.msra.mxu0 %v709
    %1188 = vmatprep.subr.mxu0 0.0
    %1189 = vmatpush1.msra.mxu0 0.0
    %1190 = vmatprep.subr.mxu0 0.0
    %1191 = vmatpush1.msra.mxu0 0.0
    %1192 = vmatprep.subr.mxu0 0.0
    %1193 = vmatpush1.msra.mxu0 0.0
    %1194 = vmatprep.subr.mxu0 0.0
    %1195 = vmatpush1.msra.mxu0 0.0
    %1196 = vmatprep.subr.mxu0 0.0
    %1197 = vmatpush1.msra.mxu0 0.0
    %1198 = vmatprep.subr.mxu0 0.0
    %1199 = vmatpush1.msra.mxu0 0.0
    %1200 = vmatprep.subr.mxu0 0.0
    %1201 = vmatpush1.msra.mxu0 0.0
    %1202 = vmatprep.subr.mxu0 0.0
    %1203 = vmatpush1.msra.mxu0 0.0
    %1204 = vmatprep.subr.mxu0 0.0
    %1205 = vmatpush1.msra.mxu0 0.0
    %1206 = vmatprep.subr.mxu0 0.0
    %1207 = vmatpush1.msra.mxu0 0.0
    %1208 = vmatprep.subr.mxu0 0.0
    %1209 = vmatpush1.msra.mxu0 0.0
    %1210 = vmatprep.subr.mxu0 0.0
    %1211 = vmatpush1.msra.mxu0 0.0
    %1212 = vmatprep.mubr.f32.mxu0 %v690
    %1213 = vmatmul.mubr.f32.gmra.mrb[0].mxu0 %v416
    %v1214 = vpop.f32.mrb[0].mxu0
    %v1215 = vadd.f32 %v1130, %v1214
    %v1216 = vpop.f32.mrb[0].mxu0
    %1217 = vmatprep.mubr.f32.mxu0 %v693
    %1218 = vmatmul.mubr.f32.gmra.mrb[0].mxu0 %v422
    %v1219 = vpop.f32.mrb[0].mxu0
    %v1220 = vadd.f32 %v1135, %v1219
    %v1221 = vpop.f32.mrb[0].mxu0
    %1222 = vmatprep.mubr.f32.mxu0 %v696
    %1223 = vmatmul.mubr.f32.gmra.mrb[0].mxu0 %v428
    %v1224 = vpop.f32.mrb[0].mxu0
    %v1225 = vadd.f32 %v1140, %v1224
    %v1226 = vpop.f32.mrb[0].mxu0
    %1227 = vmatprep.mubr.f32.mxu0 %v699
    %1228 = vmatmul.mubr.f32.gmra.mrb[0].mxu0 %v434
    %v1229 = vpop.f32.mrb[0].mxu0
    %v1230 = vadd.f32 %v1145, %v1229
    %v1231 = vpop.f32.mrb[0].mxu0
    %1232 = vdwg.mxu0
    %v1233 = vlog2.pop %v956
    %v1234 = vmul.f32 %v1233, 0.6931472
    %v1235 = vlog2.pop %v958
    %v1236 = vmul.f32 %v1235, 0.6931472
    %v1237 = vlog2.pop %v1215
    %v1238 = vmul.f32 %v1237, 0.6931472
    %v1239 = vlog2.pop %v962
    %v1240 = vmul.f32 %v1239, 0.6931472
    %v1241 = vlog2.pop %v964
    %v1242 = vmul.f32 %v1241, 0.6931472
    %v1243 = vlog2.pop %v1220
    %v1244 = vmul.f32 %v1243, 0.6931472
    %v1245 = vlog2.pop %v968
    %v1246 = vmul.f32 %v1245, 0.6931472
    %v1247 = vlog2.pop %v970
    %v1248 = vmul.f32 %v1247, 0.6931472
    %v1249 = vlog2.pop %v1225
    %v1250 = vmul.f32 %v1249, 0.6931472
    %v1251 = vlog2.pop %v974
    %v1252 = vmul.f32 %v1251, 0.6931472
    %v1253 = vlog2.pop %v976
    %v1254 = vmul.f32 %v1253, 0.6931472
    %v1255 = vlog2.pop %v1230
    %v1256 = vmul.f32 %v1255, 0.6931472
    %v1257 = vld [vmem:[%s3] sm:$0xff]
    %v1258 = vld [vmem:[%s3 + $0x8] sm:$0xff]
    %v1259 = vld [vmem:[%s3 + $0x10] sm:$0xff]
    %v1260 = vld [vmem:[%s3 + $0x18] sm:$0xff]
    %v1261 = vld [vmem:[%s3 + $0x20] sm:$0xff]
    %v1262 = vld [vmem:[%s3 + $0x28] sm:$0xff]
    %v1263 = vld [vmem:[%s3 + $0x30] sm:$0xff]
    %v1264 = vld [vmem:[%s3 + $0x38] sm:$0xff]
    %v1265 = vld [vmem:[%s3 + $0x40] sm:$0xff]
    %v1266 = vld [vmem:[%s3 + $0x48] sm:$0xff]
    %v1267 = vld [vmem:[%s3 + $0x50] sm:$0xff]
    %v1268 = vld [vmem:[%s3 + $0x58] sm:$0xff]
    %v1269 = vld [vmem:[%s3 + $0x60] sm:$0xff]
    %v1270 = vld [vmem:[%s3 + $0x68] sm:$0xff]
    %v1271 = vld [vmem:[%s3 + $0x70] sm:$0xff]
    %v1272 = vld [vmem:[%s3 + $0x78] sm:$0xff]
    %v1273 = vld [vmem:[%s3 + $0x80] sm:$0xff]
    %v1274 = vld [vmem:[%s3 + $0x88] sm:$0xff]
    %v1275 = vld [vmem:[%s3 + $0x90] sm:$0xff]
    %v1276 = vld [vmem:[%s3 + $0x98] sm:$0xff]
    %v1277 = vld [vmem:[%s3 + $0xa0] sm:$0xff]
    %v1278 = vld [vmem:[%s3 + $0xa8] sm:$0xff]
    %v1279 = vld [vmem:[%s3 + $0xb0] sm:$0xff]
    %v1280 = vld [vmem:[%s3 + $0xb8] sm:$0xff]
    %v1281 = vld [vmem:[%s3 + $0xc0] sm:$0xff]
    %v1282 = vld [vmem:[%s3 + $0xc8] sm:$0xff]
    %v1283 = vld [vmem:[%s3 + $0xd0] sm:$0xff]
    %v1284 = vld [vmem:[%s3 + $0xd8] sm:$0xff]
    %v1285 = vld [vmem:[%s3 + $0xe0] sm:$0xff]
    %v1286 = vld [vmem:[%s3 + $0xe8] sm:$0xff]
    %v1287 = vld [vmem:[%s3 + $0xf0] sm:$0xff]
    %v1288 = vld [vmem:[%s3 + $0xf8] sm:$0xff]
    %v1289 = vld [vmem:[%s3 + $0x100] sm:$0xff]
    %v1290 = vld [vmem:[%s3 + $0x108] sm:$0xff]
    %v1291 = vld [vmem:[%s3 + $0x110] sm:$0xff]
    %v1292 = vld [vmem:[%s3 + $0x118] sm:$0xff]
    %v1293 = vld [vmem:[%s3 + $0x120] sm:$0xff]
    %v1294 = vld [vmem:[%s3 + $0x128] sm:$0xff]
    %v1295 = vld [vmem:[%s3 + $0x130] sm:$0xff]
    %v1296 = vld [vmem:[%s3 + $0x138] sm:$0xff]
    %v1297 = vld [vmem:[%s3 + $0x140] sm:$0xff]
    %v1298 = vld [vmem:[%s3 + $0x148] sm:$0xff]
    %v1299 = vld [vmem:[%s3 + $0x150] sm:$0xff]
    %v1300 = vld [vmem:[%s3 + $0x158] sm:$0xff]
    %v1301 = vld [vmem:[%s3 + $0x160] sm:$0xff]
    %v1302 = vld [vmem:[%s3 + $0x168] sm:$0xff]
    %v1303 = vld [vmem:[%s3 + $0x170] sm:$0xff]
    %v1304 = vld [vmem:[%s3 + $0x178] sm:$0xff]
    %v1305 = vld [vmem:[%s3 + $0x180] sm:$0xff]
    %v1306 = vld [vmem:[%s3 + $0x188] sm:$0xff]
    %v1307 = vld [vmem:[%s3 + $0x190] sm:$0xff]
    %v1308 = vld [vmem:[%s3 + $0x198] sm:$0xff]
    %v1309 = vld [vmem:[%s3 + $0x1a0] sm:$0xff]
    %v1310 = vld [vmem:[%s3 + $0x1a8] sm:$0xff]
    %v1311 = vld [vmem:[%s3 + $0x1b0] sm:$0xff]
    %v1312 = vld [vmem:[%s3 + $0x1b8] sm:$0xff]
    %v1313 = vld [vmem:[%s3 + $0x1c0] sm:$0xff]
    %v1314 = vld [vmem:[%s3 + $0x1c8] sm:$0xff]
    %v1315 = vld [vmem:[%s3 + $0x1d0] sm:$0xff]
    %v1316 = vld [vmem:[%s3 + $0x1d8] sm:$0xff]
    %v1317 = vld [vmem:[%s3 + $0x1e0] sm:$0xff]
    %v1318 = vld [vmem:[%s3 + $0x1e8] sm:$0xff]
    %v1319 = vld [vmem:[%s3 + $0x1f0] sm:$0xff]
    %v1320 = vld [vmem:[%s3 + $0x1f8] sm:$0xff]
    %v1321 = vld [vmem:[%s3 + $0x200] sm:$0xff]
    %v1322 = vld [vmem:[%s3 + $0x208] sm:$0xff]
    %v1323 = vld [vmem:[%s3 + $0x210] sm:$0xff]
    %v1324 = vld [vmem:[%s3 + $0x218] sm:$0xff]
    %v1325 = vld [vmem:[%s3 + $0x220] sm:$0xff]
    %v1326 = vld [vmem:[%s3 + $0x228] sm:$0xff]
    %v1327 = vld [vmem:[%s3 + $0x230] sm:$0xff]
    %v1328 = vld [vmem:[%s3 + $0x238] sm:$0xff]
    %v1329 = vld [vmem:[%s3 + $0x240] sm:$0xff]
    %v1330 = vld [vmem:[%s3 + $0x248] sm:$0xff]
    %v1331 = vld [vmem:[%s3 + $0x250] sm:$0xff]
    %v1332 = vld [vmem:[%s3 + $0x258] sm:$0xff]
    %v1333 = vld [vmem:[%s3 + $0x260] sm:$0xff]
    %v1334 = vld [vmem:[%s3 + $0x268] sm:$0xff]
    %v1335 = vld [vmem:[%s3 + $0x270] sm:$0xff]
    %v1336 = vld [vmem:[%s3 + $0x278] sm:$0xff]
    %v1337 = vld [vmem:[%s3 + $0x280] sm:$0xff]
    %v1338 = vld [vmem:[%s3 + $0x288] sm:$0xff]
    %v1339 = vld [vmem:[%s3 + $0x290] sm:$0xff]
    %v1340 = vld [vmem:[%s3 + $0x298] sm:$0xff]
    %v1341 = vld [vmem:[%s3 + $0x2a0] sm:$0xff]
    %v1342 = vld [vmem:[%s3 + $0x2a8] sm:$0xff]
    %v1343 = vld [vmem:[%s3 + $0x2b0] sm:$0xff]
    %v1344 = vld [vmem:[%s3 + $0x2b8] sm:$0xff]
    %v1345 = vld [vmem:[%s3 + $0x2c0] sm:$0xff]
    %v1346 = vld [vmem:[%s3 + $0x2c8] sm:$0xff]
    %v1347 = vld [vmem:[%s3 + $0x2d0] sm:$0xff]
    %v1348 = vld [vmem:[%s3 + $0x2d8] sm:$0xff]
    %v1349 = vld [vmem:[%s3 + $0x2e0] sm:$0xff]
    %v1350 = vld [vmem:[%s3 + $0x2e8] sm:$0xff]
    %v1351 = vld [vmem:[%s3 + $0x2f0] sm:$0xff]
    %v1352 = vld [vmem:[%s3 + $0x2f8] sm:$0xff]
    %v1353 = vld [vmem:[%s3 + $0x300] sm:$0xff]
    %v1354 = vld [vmem:[%s3 + $0x308] sm:$0xff]
    %v1355 = vld [vmem:[%s3 + $0x310] sm:$0xff]
    %v1356 = vld [vmem:[%s3 + $0x318] sm:$0xff]
    %v1357 = vld [vmem:[%s3 + $0x320] sm:$0xff]
    %v1358 = vld [vmem:[%s3 + $0x328] sm:$0xff]
    %v1359 = vld [vmem:[%s3 + $0x330] sm:$0xff]
    %v1360 = vld [vmem:[%s3 + $0x338] sm:$0xff]
    %v1361 = vld [vmem:[%s3 + $0x340] sm:$0xff]
    %v1362 = vld [vmem:[%s3 + $0x348] sm:$0xff]
    %v1363 = vld [vmem:[%s3 + $0x350] sm:$0xff]
    %v1364 = vld [vmem:[%s3 + $0x358] sm:$0xff]
    %v1365 = vld [vmem:[%s3 + $0x360] sm:$0xff]
    %v1366 = vld [vmem:[%s3 + $0x368] sm:$0xff]
    %v1367 = vld [vmem:[%s3 + $0x370] sm:$0xff]
    %v1368 = vld [vmem:[%s3 + $0x378] sm:$0xff]
    %v1369 = vld [vmem:[%s3 + $0x380] sm:$0xff]
    %v1370 = vld [vmem:[%s3 + $0x388] sm:$0xff]
    %v1371 = vld [vmem:[%s3 + $0x390] sm:$0xff]
    %v1372 = vld [vmem:[%s3 + $0x398] sm:$0xff]
    %v1373 = vld [vmem:[%s3 + $0x3a0] sm:$0xff]
    %v1374 = vld [vmem:[%s3 + $0x3a8] sm:$0xf]
    %v1375 = vld [vmem:[%s3 + $0x3b0] sm:$0xf]
    %v1376 = vld [vmem:[%s3 + $0x3b8] sm:$0xf]
    %v1377 = vld [vmem:[%s13 + $0x6] sm:$0x7]
    %v1379 = vlaneseq
    %v1380 = vshrl.u32 %v1379, 7
    %v1381 = vsub.s32 0, %v1380
    %v1382 = vrot.slane %v1377, %v1381
    %v1383 = vlaneseq
    %v1384 = vshrl.u32 %v1383, 7
    %v1385 = vsub.s32 1, %v1384
    %v1386 = vrot.slane %v1377, %v1385
    %v1387 = vlaneseq
    %v1388 = vshrl.u32 %v1387, 7
    %v1389 = vsub.s32 2, %v1388
    %v1390 = vrot.slane %v1377, %v1389
    %vm1394 = vcmask 490496
    %v1396 = vsel %vm1394, %v1238, 0
    %v1399 = vsel %vm1394, %v1244, 0
    %v1402 = vsel %vm1394, %v1250, 0
    %v1405 = vsel %vm1394, %v1256, 0
    %v1408 = vsel %vm701, %v1374, 0
    %v1411 = vsel %vm701, %v1375, 0
    %v1414 = vsel %vm701, %v1376, 0
    %1416 = vmatprep.subr.mxu0 %v1258
    %1417 = vmatpush1.msra.mxu0 %v1257
    %1418 = vmatprep.subr.mxu0 %v1261
    %1419 = vmatpush1.msra.mxu0 %v1260
    %1420 = vmatprep.subr.mxu0 %v1264
    %1421 = vmatpush1.msra.mxu0 %v1263
    %1422 = vmatprep.subr.mxu0 %v1267
    %1423 = vmatpush1.msra.mxu0 %v1266
    %1424 = vmatprep.subr.mxu0 %v1270
    %1425 = vmatpush1.msra.mxu0 %v1269
    %1426 = vmatprep.subr.mxu0 %v1273
    %1427 = vmatpush1.msra.mxu0 %v1272
    %1428 = vmatprep.subr.mxu0 %v1276
    %1429 = vmatpush1.msra.mxu0 %v1275
    %1430 = vmatprep.subr.mxu0 %v1279
    %1431 = vmatpush1.msra.mxu0 %v1278
    %1432 = vmatprep.subr.mxu0 %v1282
    %1433 = vmatpush1.msra.mxu0 %v1281
    %1434 = vmatprep.subr.mxu0 %v1285
    %1435 = vmatpush1.msra.mxu0 %v1284
    %1436 = vmatprep.subr.mxu0 %v1288
    %1437 = vmatpush1.msra.mxu0 %v1287
    %1438 = vmatprep.subr.mxu0 %v1291
    %1439 = vmatpush1.msra.mxu0 %v1290
    %1440 = vmatprep.subr.mxu0 %v1294
    %1441 = vmatpush1.msra.mxu0 %v1293
    %1442 = vmatprep.subr.mxu0 %v1297
    %1443 = vmatpush1.msra.mxu0 %v1296
    %1444 = vmatprep.subr.mxu0 %v1300
    %1445 = vmatpush1.msra.mxu0 %v1299
    %1446 = vmatprep.subr.mxu0 %v1303
    %1447 = vmatpush1.msra.mxu0 %v1302
    %1448 = vmatprep.subr.mxu0 %v1306
    %1449 = vmatpush1.msra.mxu0 %v1305
    %1450 = vmatprep.subr.mxu0 %v1309
    %1451 = vmatpush1.msra.mxu0 %v1308
    %1452 = vmatprep.subr.mxu0 %v1312
    %1453 = vmatpush1.msra.mxu0 %v1311
    %1454 = vmatprep.subr.mxu0 %v1315
    %1455 = vmatpush1.msra.mxu0 %v1314
    %1456 = vmatprep.subr.mxu0 %v1318
    %1457 = vmatpush1.msra.mxu0 %v1317
    %1458 = vmatprep.subr.mxu0 %v1321
    %1459 = vmatpush1.msra.mxu0 %v1320
    %1460 = vmatprep.subr.mxu0 %v1324
    %1461 = vmatpush1.msra.mxu0 %v1323
    %1462 = vmatprep.subr.mxu0 %v1327
    %1463 = vmatpush1.msra.mxu0 %v1326
    %1464 = vmatprep.subr.mxu0 %v1330
    %1465 = vmatpush1.msra.mxu0 %v1329
    %1466 = vmatprep.subr.mxu0 %v1333
    %1467 = vmatpush1.msra.mxu0 %v1332
    %1468 = vmatprep.subr.mxu0 %v1336
    %1469 = vmatpush1.msra.mxu0 %v1335
    %1470 = vmatprep.subr.mxu0 %v1339
    %1471 = vmatpush1.msra.mxu0 %v1338
    %1472 = vmatprep.subr.mxu0 %v1342
    %1473 = vmatpush1.msra.mxu0 %v1341
    %1474 = vmatprep.subr.mxu0 %v1345
    %1475 = vmatpush1.msra.mxu0 %v1344
    %1476 = vmatprep.subr.mxu0 %v1348
    %1477 = vmatpush1.msra.mxu0 %v1347
    %1478 = vmatprep.subr.mxu0 %v1351
    %1479 = vmatpush1.msra.mxu0 %v1350
    %1480 = vmatprep.mubr.f32.mxu0 %v1236
    %1481 = vmatmul.mubr.f32.gmra.mrb[0].mxu0 %v1234
    %v1482 = vpop.f32.mrb[0].mxu0
    %v1483 = vadd.f32 %v1382, %v1482
    %v1484 = vpop.f32.mrb[0].mxu0
    %v1485 = vadd.f32 %v1386, %v1484
    %1486 = vmatprep.mubr.f32.mxu0 %v1242
    %1487 = vmatmul.mubr.f32.gmra.mrb[0].mxu0 %v1240
    %v1488 = vpop.f32.mrb[0].mxu0
    %v1489 = vadd.f32 %v1382, %v1488
    %v1490 = vpop.f32.mrb[0].mxu0
    %v1491 = vadd.f32 %v1386, %v1490
    %1492 = vmatprep.mubr.f32.mxu0 %v1248
    %1493 = vmatmul.mubr.f32.gmra.mrb[0].mxu0 %v1246
    %v1494 = vpop.f32.mrb[0].mxu0
    %v1495 = vadd.f32 %v1382, %v1494
    %v1496 = vpop.f32.mrb[0].mxu0
    %v1497 = vadd.f32 %v1386, %v1496
    %1498 = vmatprep.mubr.f32.mxu0 %v1254
    %1499 = vmatmul.mubr.f32.gmra.mrb[0].mxu0 %v1252
    %v1500 = vpop.f32.mrb[0].mxu0
    %v1501 = vadd.f32 %v1382, %v1500
    %v1502 = vpop.f32.mrb[0].mxu0
    %v1503 = vadd.f32 %v1386, %v1502
    %1504 = vdwg.mxu0
    %1505 = vmatprep.subr.mxu0 %v1354
    %1506 = vmatpush1.msra.mxu0 %v1353
    %1507 = vmatprep.subr.mxu0 %v1357
    %1508 = vmatpush1.msra.mxu0 %v1356
    %1509 = vmatprep.subr.mxu0 %v1360
    %1510 = vmatpush1.msra.mxu0 %v1359
    %1511 = vmatprep.subr.mxu0 %v1363
    %1512 = vmatpush1.msra.mxu0 %v1362
    %1513 = vmatprep.subr.mxu0 %v1366
    %1514 = vmatpush1.msra.mxu0 %v1365
    %1515 = vmatprep.subr.mxu0 %v1369
    %1516 = vmatpush1.msra.mxu0 %v1368
    %1517 = vmatprep.subr.mxu0 %v1372
    %1518 = vmatpush1.msra.mxu0 %v1371
    %1519 = vmatprep.subr.mxu0 %v1411
    %1520 = vmatpush1.msra.mxu0 %v1408
    %1521 = vmatprep.subr.mxu0 0.0
    %1522 = vmatpush1.msra.mxu0 0.0
    %1523 = vmatprep.subr.mxu0 0.0
    %1524 = vmatpush1.msra.mxu0 0.0
    %1525 = vmatprep.subr.mxu0 0.0
    %1526 = vmatpush1.msra.mxu0 0.0
    %1527 = vmatprep.subr.mxu0 0.0
    %1528 = vmatpush1.msra.mxu0 0.0
    %1529 = vmatprep.subr.mxu0 0.0
    %1530 = vmatpush1.msra.mxu0 0.0
    %1531 = vmatprep.subr.mxu0 0.0
    %1532 = vmatpush1.msra.mxu0 0.0
    %1533 = vmatprep.subr.mxu0 0.0
    %1534 = vmatpush1.msra.mxu0 0.0
    %1535 = vmatprep.subr.mxu0 0.0
    %1536 = vmatpush1.msra.mxu0 0.0
    %1537 = vmatprep.subr.mxu0 0.0
    %1538 = vmatpush1.msra.mxu0 0.0
    %1539 = vmatprep.subr.mxu0 0.0
    %1540 = vmatpush1.msra.mxu0 0.0
    %1541 = vmatprep.subr.mxu0 0.0
    %1542 = vmatpush1.msra.mxu0 0.0
    %1543 = vmatprep.subr.mxu0 0.0
    %1544 = vmatpush1.msra.mxu0 0.0
    %1545 = vmatprep.subr.mxu0 0.0
    %1546 = vmatpush1.msra.mxu0 0.0
    %1547 = vmatprep.subr.mxu0 0.0
    %1548 = vmatpush1.msra.mxu0 0.0
    %1549 = vmatprep.subr.mxu0 0.0
    %1550 = vmatpush1.msra.mxu0 0.0
    %1551 = vmatprep.subr.mxu0 0.0
    %1552 = vmatpush1.msra.mxu0 0.0
    %1553 = vmatprep.subr.mxu0 0.0
    %1554 = vmatpush1.msra.mxu0 0.0
    %1555 = vmatprep.subr.mxu0 0.0
    %1556 = vmatpush1.msra.mxu0 0.0
    %1557 = vmatprep.subr.mxu0 0.0
    %1558 = vmatpush1.msra.mxu0 0.0
    %1559 = vmatprep.subr.mxu0 0.0
    %1560 = vmatpush1.msra.mxu0 0.0
    %1561 = vmatprep.subr.mxu0 0.0
    %1562 = vmatpush1.msra.mxu0 0.0
    %1563 = vmatprep.subr.mxu0 0.0
    %1564 = vmatpush1.msra.mxu0 0.0
    %1565 = vmatprep.subr.mxu0 0.0
    %1566 = vmatpush1.msra.mxu0 0.0
    %1567 = vmatprep.subr.mxu0 0.0
    %1568 = vmatpush1.msra.mxu0 0.0
    %1569 = vmatprep.mubr.f32.mxu0 0.0
    %1570 = vmatmul.mubr.f32.gmra.mrb[0].mxu0 %v1396
    %v1571 = vpop.f32.mrb[0].mxu0
    %v1572 = vadd.f32 %v1483, %v1571
    %v1573 = vpop.f32.mrb[0].mxu0
    %v1574 = vadd.f32 %v1485, %v1573
    %1575 = vmatprep.mubr.f32.mxu0 0.0
    %1576 = vmatmul.mubr.f32.gmra.mrb[0].mxu0 %v1399
    %v1577 = vpop.f32.mrb[0].mxu0
    %v1578 = vadd.f32 %v1489, %v1577
    %v1579 = vpop.f32.mrb[0].mxu0
    %v1580 = vadd.f32 %v1491, %v1579
    %1581 = vmatprep.mubr.f32.mxu0 0.0
    %1582 = vmatmul.mubr.f32.gmra.mrb[0].mxu0 %v1402
    %v1583 = vpop.f32.mrb[0].mxu0
    %v1584 = vadd.f32 %v1495, %v1583
    %v1585 = vpop.f32.mrb[0].mxu0
    %v1586 = vadd.f32 %v1497, %v1585
    %1587 = vmatprep.mubr.f32.mxu0 0.0
    %1588 = vmatmul.mubr.f32.gmra.mrb[0].mxu0 %v1405
    %v1589 = vpop.f32.mrb[0].mxu0
    %v1590 = vadd.f32 %v1501, %v1589
    %v1591 = vpop.f32.mrb[0].mxu0
    %v1592 = vadd.f32 %v1503, %v1591
    %1593 = vdwg.mxu0
    %1594 = vmatprep.subr.mxu0 0.0
    %1595 = vmatpush1.msra.mxu0 %v1259
    %1596 = vmatprep.subr.mxu0 0.0
    %1597 = vmatpush1.msra.mxu0 %v1262
    %1598 = vmatprep.subr.mxu0 0.0
    %1599 = vmatpush1.msra.mxu0 %v1265
    %1600 = vmatprep.subr.mxu0 0.0
    %1601 = vmatpush1.msra.mxu0 %v1268
    %1602 = vmatprep.subr.mxu0 0.0
    %1603 = vmatpush1.msra.mxu0 %v1271
    %1604 = vmatprep.subr.mxu0 0.0
    %1605 = vmatpush1.msra.mxu0 %v1274
    %1606 = vmatprep.subr.mxu0 0.0
    %1607 = vmatpush1.msra.mxu0 %v1277
    %1608 = vmatprep.subr.mxu0 0.0
    %1609 = vmatpush1.msra.mxu0 %v1280
    %1610 = vmatprep.subr.mxu0 0.0
    %1611 = vmatpush1.msra.mxu0 %v1283
    %1612 = vmatprep.subr.mxu0 0.0
    %1613 = vmatpush1.msra.mxu0 %v1286
    %1614 = vmatprep.subr.mxu0 0.0
    %1615 = vmatpush1.msra.mxu0 %v1289
    %1616 = vmatprep.subr.mxu0 0.0
    %1617 = vmatpush1.msra.mxu0 %v1292
    %1618 = vmatprep.subr.mxu0 0.0
    %1619 = vmatpush1.msra.mxu0 %v1295
    %1620 = vmatprep.subr.mxu0 0.0
    %1621 = vmatpush1.msra.mxu0 %v1298
    %1622 = vmatprep.subr.mxu0 0.0
    %1623 = vmatpush1.msra.mxu0 %v1301
    %1624 = vmatprep.subr.mxu0 0.0
    %1625 = vmatpush1.msra.mxu0 %v1304
    %1626 = vmatprep.subr.mxu0 0.0
    %1627 = vmatpush1.msra.mxu0 %v1307
    %1628 = vmatprep.subr.mxu0 0.0
    %1629 = vmatpush1.msra.mxu0 %v1310
    %1630 = vmatprep.subr.mxu0 0.0
    %1631 = vmatpush1.msra.mxu0 %v1313
    %1632 = vmatprep.subr.mxu0 0.0
    %1633 = vmatpush1.msra.mxu0 %v1316
    %1634 = vmatprep.subr.mxu0 0.0
    %1635 = vmatpush1.msra.mxu0 %v1319
    %1636 = vmatprep.subr.mxu0 0.0
    %1637 = vmatpush1.msra.mxu0 %v1322
    %1638 = vmatprep.subr.mxu0 0.0
    %1639 = vmatpush1.msra.mxu0 %v1325
    %1640 = vmatprep.subr.mxu0 0.0
    %1641 = vmatpush1.msra.mxu0 %v1328
    %1642 = vmatprep.subr.mxu0 0.0
    %1643 = vmatpush1.msra.mxu0 %v1331
    %1644 = vmatprep.subr.mxu0 0.0
    %1645 = vmatpush1.msra.mxu0 %v1334
    %1646 = vmatprep.subr.mxu0 0.0
    %1647 = vmatpush1.msra.mxu0 %v1337
    %1648 = vmatprep.subr.mxu0 0.0
    %1649 = vmatpush1.msra.mxu0 %v1340
    %1650 = vmatprep.subr.mxu0 0.0
    %1651 = vmatpush1.msra.mxu0 %v1343
    %1652 = vmatprep.subr.mxu0 0.0
    %1653 = vmatpush1.msra.mxu0 %v1346
    %1654 = vmatprep.subr.mxu0 0.0
    %1655 = vmatpush1.msra.mxu0 %v1349
    %1656 = vmatprep.subr.mxu0 0.0
    %1657 = vmatpush1.msra.mxu0 %v1352
    %1658 = vmatprep.mubr.f32.mxu0 %v1236
    %1659 = vmatmul.mubr.f32.gmra.mrb[0].mxu0 %v1234
    %v1660 = vpop.f32.mrb[0].mxu0
    %v1661 = vadd.f32 %v1390, %v1660
    %v1662 = vpop.f32.mrb[0].mxu0
    %1663 = vmatprep.mubr.f32.mxu0 %v1242
    %1664 = vmatmul.mubr.f32.gmra.mrb[0].mxu0 %v1240
    %v1665 = vpop.f32.mrb[0].mxu0
    %v1666 = vadd.f32 %v1390, %v1665
    %v1667 = vpop.f32.mrb[0].mxu0
    %1668 = vmatprep.mubr.f32.mxu0 %v1248
    %1669 = vmatmul.mubr.f32.gmra.mrb[0].mxu0 %v1246
    %v1670 = vpop.f32.mrb[0].mxu0
    %v1671 = vadd.f32 %v1390, %v1670
    %v1672 = vpop.f32.mrb[0].mxu0
    %1673 = vmatprep.mubr.f32.mxu0 %v1254
    %1674 = vmatmul.mubr.f32.gmra.mrb[0].mxu0 %v1252
    %v1675 = vpop.f32.mrb[0].mxu0
    %v1676 = vadd.f32 %v1390, %v1675
    %v1677 = vpop.f32.mrb[0].mxu0
    %1678 = vdwg.mxu0
    %1679 = vmatprep.subr.mxu0 0.0
    %1680 = vmatpush1.msra.mxu0 %v1355
    %1681 = vmatprep.subr.mxu0 0.0
    %1682 = vmatpush1.msra.mxu0 %v1358
    %1683 = vmatprep.subr.mxu0 0.0
    %1684 = vmatpush1.msra.mxu0 %v1361
    %1685 = vmatprep.subr.mxu0 0.0
    %1686 = vmatpush1.msra.mxu0 %v1364
    %1687 = vmatprep.subr.mxu0 0.0
    %1688 = vmatpush1.msra.mxu0 %v1367
    %1689 = vmatprep.subr.mxu0 0.0
    %1690 = vmatpush1.msra.mxu0 %v1370
    %1691 = vmatprep.subr.mxu0 0.0
    %1692 = vmatpush1.msra.mxu0 %v1373
    %1693 = vmatprep.subr.mxu0 0.0
    %1694 = vmatpush1.msra.mxu0 %v1414
    %1695 = vmatprep.subr.mxu0 0.0
    %1696 = vmatpush1.msra.mxu0 0.0
    %1697 = vmatprep.subr.mxu0 0.0
    %1698 = vmatpush1.msra.mxu0 0.0
    %1699 = vmatprep.subr.mxu0 0.0
    %1700 = vmatpush1.msra.mxu0 0.0
    %1701 = vmatprep.subr.mxu0 0.0
    %1702 = vmatpush1.msra.mxu0 0.0
    %1703 = vmatprep.subr.mxu0 0.0
    %1704 = vmatpush1.msra.mxu0 0.0
    %1705 = vmatprep.subr.mxu0 0.0
    %1706 = vmatpush1.msra.mxu0 0.0
    %1707 = vmatprep.subr.mxu0 0.0
    %1708 = vmatpush1.msra.mxu0 0.0
    %1709 = vmatprep.subr.mxu0 0.0
    %1710 = vmatpush1.msra.mxu0 0.0
    %1711 = vmatprep.subr.mxu0 0.0
    %1712 = vmatpush1.msra.mxu0 0.0
    %1713 = vmatprep.subr.mxu0 0.0
    %1714 = vmatpush1.msra.mxu0 0.0
    %1715 = vmatprep.subr.mxu0 0.0
    %1716 = vmatpush1.msra.mxu0 0.0
    %1717 = vmatprep.subr.mxu0 0.0
    %1718 = vmatpush1.msra.mxu0 0.0
    %1719 = vmatprep.subr.mxu0 0.0
    %1720 = vmatpush1.msra.mxu0 0.0
    %1721 = vmatprep.subr.mxu0 0.0
    %1722 = vmatpush1.msra.mxu0 0.0
    %1723 = vmatprep.subr.mxu0 0.0
    %1724 = vmatpush1.msra.mxu0 0.0
    %1725 = vmatprep.subr.mxu0 0.0
    %1726 = vmatpush1.msra.mxu0 0.0
    %1727 = vmatprep.subr.mxu0 0.0
    %1728 = vmatpush1.msra.mxu0 0.0
    %1729 = vmatprep.subr.mxu0 0.0
    %1730 = vmatpush1.msra.mxu0 0.0
    %1731 = vmatprep.subr.mxu0 0.0
    %1732 = vmatpush1.msra.mxu0 0.0
    %1733 = vmatprep.subr.mxu0 0.0
    %1734 = vmatpush1.msra.mxu0 0.0
    %1735 = vmatprep.subr.mxu0 0.0
    %1736 = vmatpush1.msra.mxu0 0.0
    %1737 = vmatprep.subr.mxu0 0.0
    %1738 = vmatpush1.msra.mxu0 0.0
    %1739 = vmatprep.subr.mxu0 0.0
    %1740 = vmatpush1.msra.mxu0 0.0
    %1741 = vmatprep.subr.mxu0 0.0
    %1742 = vmatpush1.msra.mxu0 0.0
    %1743 = vmatprep.mubr.f32.mxu0 0.0
    %1744 = vmatmul.mubr.f32.gmra.mrb[0].mxu0 %v1396
    %v1745 = vpop.f32.mrb[0].mxu0
    %v1746 = vadd.f32 %v1661, %v1745
    %v1747 = vpop.f32.mrb[0].mxu0
    %1748 = vmatprep.mubr.f32.mxu0 0.0
    %1749 = vmatmul.mubr.f32.gmra.mrb[0].mxu0 %v1399
    %v1750 = vpop.f32.mrb[0].mxu0
    %v1751 = vadd.f32 %v1666, %v1750
    %v1752 = vpop.f32.mrb[0].mxu0
    %1753 = vmatprep.mubr.f32.mxu0 0.0
    %1754 = vmatmul.mubr.f32.gmra.mrb[0].mxu0 %v1402
    %v1755 = vpop.f32.mrb[0].mxu0
    %v1756 = vadd.f32 %v1671, %v1755
    %v1757 = vpop.f32.mrb[0].mxu0
    %1758 = vmatprep.mubr.f32.mxu0 0.0
    %1759 = vmatmul.mubr.f32.gmra.mrb[0].mxu0 %v1405
    %v1760 = vpop.f32.mrb[0].mxu0
    %v1761 = vadd.f32 %v1676, %v1760
    %v1762 = vpop.f32.mrb[0].mxu0
    %1763 = vdwg.mxu0
    %vm1764 = vcmp.ge.f32.partialorder %v1572, 0.0
    %vm1765 = vcmp.ge.f32.partialorder %v1574, 0.0
    %vm1766 = vcmp.ge.f32.partialorder %v1746, 0.0
    %vm1767 = vcmp.ge.f32.partialorder %v1578, 0.0
    %vm1768 = vcmp.ge.f32.partialorder %v1580, 0.0
    %vm1769 = vcmp.ge.f32.partialorder %v1751, 0.0
    %vm1770 = vcmp.ge.f32.partialorder %v1584, 0.0
    %vm1771 = vcmp.ge.f32.partialorder %v1586, 0.0
    %vm1772 = vcmp.ge.f32.partialorder %v1756, 0.0
    %vm1773 = vcmp.ge.f32.partialorder %v1590, 0.0
    %vm1774 = vcmp.ge.f32.partialorder %v1592, 0.0
    %vm1775 = vcmp.ge.f32.partialorder %v1761, 0.0
    %v1776 = vmul.f32 %v1572, 0.01
    %v1777 = vmul.f32 %v1574, 0.01
    %v1778 = vmul.f32 %v1746, 0.01
    %v1779 = vmul.f32 %v1578, 0.01
    %v1780 = vmul.f32 %v1580, 0.01
    %v1781 = vmul.f32 %v1751, 0.01
    %v1782 = vmul.f32 %v1584, 0.01
    %v1783 = vmul.f32 %v1586, 0.01
    %v1784 = vmul.f32 %v1756, 0.01
    %v1785 = vmul.f32 %v1590, 0.01
    %v1786 = vmul.f32 %v1592, 0.01
    %v1787 = vmul.f32 %v1761, 0.01
    %v1788 = vsel %vm1764, %v1572, %v1776
    %v1789 = vsel %vm1765, %v1574, %v1777
    %v1790 = vsel %vm1766, %v1746, %v1778
    %v1791 = vsel %vm1767, %v1578, %v1779
    %v1792 = vsel %vm1768, %v1580, %v1780
    %v1793 = vsel %vm1769, %v1751, %v1781
    %v1794 = vsel %vm1770, %v1584, %v1782
    %v1795 = vsel %vm1771, %v1586, %v1783
    %v1796 = vsel %vm1772, %v1756, %v1784
    %v1797 = vsel %vm1773, %v1590, %v1785
    %v1798 = vsel %vm1774, %v1592, %v1786
    %v1799 = vsel %vm1775, %v1761, %v1787
    %v1800 = vld [vmem:[%s4] sm:$0xff]
    %v1801 = vld [vmem:[%s4 + $0x8] sm:$0xff]
    %v1802 = vld [vmem:[%s4 + $0x10] sm:$0xff]
    %v1803 = vld [vmem:[%s4 + $0x18] sm:$0xff]
    %v1804 = vld [vmem:[%s4 + $0x20] sm:$0xff]
    %v1805 = vld [vmem:[%s4 + $0x28] sm:$0xff]
    %v1806 = vld [vmem:[%s4 + $0x30] sm:$0xff]
    %v1807 = vld [vmem:[%s4 + $0x38] sm:$0xff]
    %v1808 = vld [vmem:[%s4 + $0x40] sm:$0xff]
    %v1809 = vld [vmem:[%s4 + $0x48] sm:$0xff]
    %v1810 = vld [vmem:[%s4 + $0x50] sm:$0xff]
    %v1811 = vld [vmem:[%s4 + $0x58] sm:$0xff]
    %v1812 = vld [vmem:[%s4 + $0x60] sm:$0xff]
    %v1813 = vld [vmem:[%s4 + $0x68] sm:$0xff]
    %v1814 = vld [vmem:[%s4 + $0x70] sm:$0xff]
    %v1815 = vld [vmem:[%s4 + $0x78] sm:$0xff]
    %v1816 = vld [vmem:[%s4 + $0x80] sm:$0xff]
    %v1817 = vld [vmem:[%s4 + $0x88] sm:$0xff]
    %v1818 = vld [vmem:[%s4 + $0x90] sm:$0xff]
    %v1819 = vld [vmem:[%s4 + $0x98] sm:$0xff]
    %v1820 = vld [vmem:[%s4 + $0xa0] sm:$0xff]
    %v1821 = vld [vmem:[%s4 + $0xa8] sm:$0xff]
    %v1822 = vld [vmem:[%s4 + $0xb0] sm:$0xff]
    %v1823 = vld [vmem:[%s4 + $0xb8] sm:$0xff]
    %v1824 = vld [vmem:[%s4 + $0xc0] sm:$0xff]
    %v1825 = vld [vmem:[%s4 + $0xc8] sm:$0xff]
    %v1826 = vld [vmem:[%s4 + $0xd0] sm:$0xff]
    %v1827 = vld [vmem:[%s4 + $0xd8] sm:$0xff]
    %v1828 = vld [vmem:[%s4 + $0xe0] sm:$0xff]
    %v1829 = vld [vmem:[%s4 + $0xe8] sm:$0xff]
    %v1830 = vld [vmem:[%s4 + $0xf0] sm:$0xff]
    %v1831 = vld [vmem:[%s4 + $0xf8] sm:$0xff]
    %v1832 = vld [vmem:[%s4 + $0x100] sm:$0xff]
    %v1833 = vld [vmem:[%s4 + $0x108] sm:$0xff]
    %v1834 = vld [vmem:[%s4 + $0x110] sm:$0xff]
    %v1835 = vld [vmem:[%s4 + $0x118] sm:$0xff]
    %v1836 = vld [vmem:[%s4 + $0x120] sm:$0xff]
    %v1837 = vld [vmem:[%s4 + $0x128] sm:$0xff]
    %v1838 = vld [vmem:[%s4 + $0x130] sm:$0xff]
    %v1839 = vld [vmem:[%s4 + $0x138] sm:$0xff]
    %v1840 = vld [vmem:[%s4 + $0x140] sm:$0xff]
    %v1841 = vld [vmem:[%s4 + $0x148] sm:$0xff]
    %v1842 = vld [vmem:[%s4 + $0x150] sm:$0xff]
    %v1843 = vld [vmem:[%s4 + $0x158] sm:$0xff]
    %v1844 = vld [vmem:[%s4 + $0x160] sm:$0xff]
    %v1845 = vld [vmem:[%s4 + $0x168] sm:$0xff]
    %v1846 = vld [vmem:[%s4 + $0x170] sm:$0xff]
    %v1847 = vld [vmem:[%s4 + $0x178] sm:$0xff]
    %v1848 = vld [vmem:[%s4 + $0x180] sm:$0xff]
    %v1849 = vld [vmem:[%s4 + $0x188] sm:$0xff]
    %v1850 = vld [vmem:[%s4 + $0x190] sm:$0xff]
    %v1851 = vld [vmem:[%s4 + $0x198] sm:$0xff]
    %v1852 = vld [vmem:[%s4 + $0x1a0] sm:$0xff]
    %v1853 = vld [vmem:[%s4 + $0x1a8] sm:$0xff]
    %v1854 = vld [vmem:[%s4 + $0x1b0] sm:$0xff]
    %v1855 = vld [vmem:[%s4 + $0x1b8] sm:$0xff]
    %v1856 = vld [vmem:[%s4 + $0x1c0] sm:$0xff]
    %v1857 = vld [vmem:[%s4 + $0x1c8] sm:$0xff]
    %v1858 = vld [vmem:[%s4 + $0x1d0] sm:$0xff]
    %v1859 = vld [vmem:[%s4 + $0x1d8] sm:$0xff]
    %v1860 = vld [vmem:[%s4 + $0x1e0] sm:$0xff]
    %v1861 = vld [vmem:[%s4 + $0x1e8] sm:$0xff]
    %v1862 = vld [vmem:[%s4 + $0x1f0] sm:$0xff]
    %v1863 = vld [vmem:[%s4 + $0x1f8] sm:$0xff]
    %v1864 = vld [vmem:[%s4 + $0x200] sm:$0xff]
    %v1865 = vld [vmem:[%s4 + $0x208] sm:$0xff]
    %v1866 = vld [vmem:[%s4 + $0x210] sm:$0xff]
    %v1867 = vld [vmem:[%s4 + $0x218] sm:$0xff]
    %v1868 = vld [vmem:[%s4 + $0x220] sm:$0xff]
    %v1869 = vld [vmem:[%s4 + $0x228] sm:$0xff]
    %v1870 = vld [vmem:[%s4 + $0x230] sm:$0xff]
    %v1871 = vld [vmem:[%s4 + $0x238] sm:$0xff]
    %v1872 = vld [vmem:[%s4 + $0x240] sm:$0xff]
    %v1873 = vld [vmem:[%s4 + $0x248] sm:$0xff]
    %v1874 = vld [vmem:[%s4 + $0x250] sm:$0xff]
    %v1875 = vld [vmem:[%s4 + $0x258] sm:$0xff]
    %v1876 = vld [vmem:[%s4 + $0x260] sm:$0xff]
    %v1877 = vld [vmem:[%s4 + $0x268] sm:$0xff]
    %v1878 = vld [vmem:[%s4 + $0x270] sm:$0xf]
    %v1879 = vld [vmem:[%s4 + $0x278] sm:$0xf]
    %v1880 = vld [vmem:[%s13 + $0x9] sm:$0x3]
    %v1882 = vlaneseq
    %v1883 = vshrl.u32 %v1882, 7
    %v1884 = vsub.s32 0, %v1883
    %v1885 = vrot.slane %v1880, %v1884
    %v1886 = vlaneseq
    %v1887 = vshrl.u32 %v1886, 7
    %v1888 = vsub.s32 1, %v1887
    %v1889 = vrot.slane %v1880, %v1888
    %v1893 = vsel %vm1394, %v1790, 0
    %v1896 = vsel %vm1394, %v1793, 0
    %v1899 = vsel %vm1394, %v1796, 0
    %v1902 = vsel %vm1394, %v1799, 0
    %v1905 = vsel %vm701, %v1878, 0
    %v1908 = vsel %vm701, %v1879, 0
    %1910 = vmatprep.subr.mxu0 %v1801
    %1911 = vmatpush1.msra.mxu0 %v1800
    %1912 = vmatprep.subr.mxu0 %v1803
    %1913 = vmatpush1.msra.mxu0 %v1802
    %1914 = vmatprep.subr.mxu0 %v1805
    %1915 = vmatpush1.msra.mxu0 %v1804
    %1916 = vmatprep.subr.mxu0 %v1807
    %1917 = vmatpush1.msra.mxu0 %v1806
    %1918 = vmatprep.subr.mxu0 %v1809
    %1919 = vmatpush1.msra.mxu0 %v1808
    %1920 = vmatprep.subr.mxu0 %v1811
    %1921 = vmatpush1.msra.mxu0 %v1810
    %1922 = vmatprep.subr.mxu0 %v1813
    %1923 = vmatpush1.msra.mxu0 %v1812
    %1924 = vmatprep.subr.mxu0 %v1815
    %1925 = vmatpush1.msra.mxu0 %v1814
    %1926 = vmatprep.subr.mxu0 %v1817
    %1927 = vmatpush1.msra.mxu0 %v1816
    %1928 = vmatprep.subr.mxu0 %v1819
    %1929 = vmatpush1.msra.mxu0 %v1818
    %1930 = vmatprep.subr.mxu0 %v1821
    %1931 = vmatpush1.msra.mxu0 %v1820
    %1932 = vmatprep.subr.mxu0 %v1823
    %1933 = vmatpush1.msra.mxu0 %v1822
    %1934 = vmatprep.subr.mxu0 %v1825
    %1935 = vmatpush1.msra.mxu0 %v1824
    %1936 = vmatprep.subr.mxu0 %v1827
    %1937 = vmatpush1.msra.mxu0 %v1826
    %1938 = vmatprep.subr.mxu0 %v1829
    %1939 = vmatpush1.msra.mxu0 %v1828
    %1940 = vmatprep.subr.mxu0 %v1831
    %1941 = vmatpush1.msra.mxu0 %v1830
    %1942 = vmatprep.subr.mxu0 %v1833
    %1943 = vmatpush1.msra.mxu0 %v1832
    %1944 = vmatprep.subr.mxu0 %v1835
    %1945 = vmatpush1.msra.mxu0 %v1834
    %1946 = vmatprep.subr.mxu0 %v1837
    %1947 = vmatpush1.msra.mxu0 %v1836
    %1948 = vmatprep.subr.mxu0 %v1839
    %1949 = vmatpush1.msra.mxu0 %v1838
    %1950 = vmatprep.subr.mxu0 %v1841
    %1951 = vmatpush1.msra.mxu0 %v1840
    %1952 = vmatprep.subr.mxu0 %v1843
    %1953 = vmatpush1.msra.mxu0 %v1842
    %1954 = vmatprep.subr.mxu0 %v1845
    %1955 = vmatpush1.msra.mxu0 %v1844
    %1956 = vmatprep.subr.mxu0 %v1847
    %1957 = vmatpush1.msra.mxu0 %v1846
    %1958 = vmatprep.subr.mxu0 %v1849
    %1959 = vmatpush1.msra.mxu0 %v1848
    %1960 = vmatprep.subr.mxu0 %v1851
    %1961 = vmatpush1.msra.mxu0 %v1850
    %1962 = vmatprep.subr.mxu0 %v1853
    %1963 = vmatpush1.msra.mxu0 %v1852
    %1964 = vmatprep.subr.mxu0 %v1855
    %1965 = vmatpush1.msra.mxu0 %v1854
    %1966 = vmatprep.subr.mxu0 %v1857
    %1967 = vmatpush1.msra.mxu0 %v1856
    %1968 = vmatprep.subr.mxu0 %v1859
    %1969 = vmatpush1.msra.mxu0 %v1858
    %1970 = vmatprep.subr.mxu0 %v1861
    %1971 = vmatpush1.msra.mxu0 %v1860
    %1972 = vmatprep.subr.mxu0 %v1863
    %1973 = vmatpush1.msra.mxu0 %v1862
    %1974 = vmatprep.mubr.f32.mxu0 %v1789
    %1975 = vmatmul.mubr.f32.gmra.mrb[0].mxu0 %v1788
    %v1976 = vpop.f32.mrb[0].mxu0
    %v1977 = vadd.f32 %v1885, %v1976
    %v1978 = vpop.f32.mrb[0].mxu0
    %v1979 = vadd.f32 %v1889, %v1978
    %1980 = vmatprep.mubr.f32.mxu0 %v1792
    %1981 = vmatmul.mubr.f32.gmra.mrb[0].mxu0 %v1791
    %v1982 = vpop.f32.mrb[0].mxu0
    %v1983 = vadd.f32 %v1885, %v1982
    %v1984 = vpop.f32.mrb[0].mxu0
    %v1985 = vadd.f32 %v1889, %v1984
    %1986 = vmatprep.mubr.f32.mxu0 %v1795
    %1987 = vmatmul.mubr.f32.gmra.mrb[0].mxu0 %v1794
    %v1988 = vpop.f32.mrb[0].mxu0
    %v1989 = vadd.f32 %v1885, %v1988
    %v1990 = vpop.f32.mrb[0].mxu0
    %v1991 = vadd.f32 %v1889, %v1990
    %1992 = vmatprep.mubr.f32.mxu0 %v1798
    %1993 = vmatmul.mubr.f32.gmra.mrb[0].mxu0 %v1797
    %v1994 = vpop.f32.mrb[0].mxu0
    %v1995 = vadd.f32 %v1885, %v1994
    %v1996 = vpop.f32.mrb[0].mxu0
    %v1997 = vadd.f32 %v1889, %v1996
    %1998 = vdwg.mxu0
    %1999 = vmatprep.subr.mxu0 %v1865
    %2000 = vmatpush1.msra.mxu0 %v1864
    %2001 = vmatprep.subr.mxu0 %v1867
    %2002 = vmatpush1.msra.mxu0 %v1866
    %2003 = vmatprep.subr.mxu0 %v1869
    %2004 = vmatpush1.msra.mxu0 %v1868
    %2005 = vmatprep.subr.mxu0 %v1871
    %2006 = vmatpush1.msra.mxu0 %v1870
    %2007 = vmatprep.subr.mxu0 %v1873
    %2008 = vmatpush1.msra.mxu0 %v1872
    %2009 = vmatprep.subr.mxu0 %v1875
    %2010 = vmatpush1.msra.mxu0 %v1874
    %2011 = vmatprep.subr.mxu0 %v1877
    %2012 = vmatpush1.msra.mxu0 %v1876
    %2013 = vmatprep.subr.mxu0 %v1908
    %2014 = vmatpush1.msra.mxu0 %v1905
    %2015 = vmatprep.subr.mxu0 0.0
    %2016 = vmatpush1.msra.mxu0 0.0
    %2017 = vmatprep.subr.mxu0 0.0
    %2018 = vmatpush1.msra.mxu0 0.0
    %2019 = vmatprep.subr.mxu0 0.0
    %2020 = vmatpush1.msra.mxu0 0.0
    %2021 = vmatprep.subr.mxu0 0.0
    %2022 = vmatpush1.msra.mxu0 0.0
    %2023 = vmatprep.subr.mxu0 0.0
    %2024 = vmatpush1.msra.mxu0 0.0
    %2025 = vmatprep.subr.mxu0 0.0
    %2026 = vmatpush1.msra.mxu0 0.0
    %2027 = vmatprep.subr.mxu0 0.0
    %2028 = vmatpush1.msra.mxu0 0.0
    %2029 = vmatprep.subr.mxu0 0.0
    %2030 = vmatpush1.msra.mxu0 0.0
    %2031 = vmatprep.subr.mxu0 0.0
    %2032 = vmatpush1.msra.mxu0 0.0
    %2033 = vmatprep.subr.mxu0 0.0
    %2034 = vmatpush1.msra.mxu0 0.0
    %2035 = vmatprep.subr.mxu0 0.0
    %2036 = vmatpush1.msra.mxu0 0.0
    %2037 = vmatprep.subr.mxu0 0.0
    %2038 = vmatpush1.msra.mxu0 0.0
    %2039 = vmatprep.subr.mxu0 0.0
    %2040 = vmatpush1.msra.mxu0 0.0
    %2041 = vmatprep.subr.mxu0 0.0
    %2042 = vmatpush1.msra.mxu0 0.0
    %2043 = vmatprep.subr.mxu0 0.0
    %2044 = vmatpush1.msra.mxu0 0.0
    %2045 = vmatprep.subr.mxu0 0.0
    %2046 = vmatpush1.msra.mxu0 0.0
    %2047 = vmatprep.subr.mxu0 0.0
    %2048 = vmatpush1.msra.mxu0 0.0
    %2049 = vmatprep.subr.mxu0 0.0
    %2050 = vmatpush1.msra.mxu0 0.0
    %2051 = vmatprep.subr.mxu0 0.0
    %2052 = vmatpush1.msra.mxu0 0.0
    %2053 = vmatprep.subr.mxu0 0.0
    %2054 = vmatpush1.msra.mxu0 0.0
    %2055 = vmatprep.subr.mxu0 0.0
    %2056 = vmatpush1.msra.mxu0 0.0
    %2057 = vmatprep.subr.mxu0 0.0
    %2058 = vmatpush1.msra.mxu0 0.0
    %2059 = vmatprep.subr.mxu0 0.0
    %2060 = vmatpush1.msra.mxu0 0.0
    %2061 = vmatprep.subr.mxu0 0.0
    %2062 = vmatpush1.msra.mxu0 0.0
    %2063 = vmatprep.mubr.f32.mxu0 0.0
    %2064 = vmatmul.mubr.f32.gmra.mrb[0].mxu0 %v1893
    %v2065 = vpop.f32.mrb[0].mxu0
    %v2066 = vadd.f32 %v1977, %v2065
    %v2067 = vpop.f32.mrb[0].mxu0
    %v2068 = vadd.f32 %v1979, %v2067
    %2069 = vmatprep.mubr.f32.mxu0 0.0
    %2070 = vmatmul.mubr.f32.gmra.mrb[0].mxu0 %v1896
    %v2071 = vpop.f32.mrb[0].mxu0
    %v2072 = vadd.f32 %v1983, %v2071
    %v2073 = vpop.f32.mrb[0].mxu0
    %v2074 = vadd.f32 %v1985, %v2073
    %2075 = vmatprep.mubr.f32.mxu0 0.0
    %2076 = vmatmul.mubr.f32.gmra.mrb[0].mxu0 %v1899
    %v2077 = vpop.f32.mrb[0].mxu0
    %v2078 = vadd.f32 %v1989, %v2077
    %v2079 = vpop.f32.mrb[0].mxu0
    %v2080 = vadd.f32 %v1991, %v2079
    %2081 = vmatprep.mubr.f32.mxu0 0.0
    %2082 = vmatmul.mubr.f32.gmra.mrb[0].mxu0 %v1902
    %v2083 = vpop.f32.mrb[0].mxu0
    %v2084 = vadd.f32 %v1995, %v2083
    %v2085 = vpop.f32.mrb[0].mxu0
    %v2086 = vadd.f32 %v1997, %v2085
    %2087 = vdwg.mxu0
    %v2088 = vld [vmem:[%s5] sm:$0xff]
    %v2089 = vld [vmem:[%s5 + $0x8] sm:$0xff]
    %v2090 = vld [vmem:[%s5 + $0x10] sm:$0xff]
    %v2091 = vld [vmem:[%s5 + $0x18] sm:$0xff]
    %v2092 = vld [vmem:[%s5 + $0x20] sm:$0xff]
    %v2093 = vld [vmem:[%s5 + $0x28] sm:$0xff]
    %v2094 = vld [vmem:[%s5 + $0x30] sm:$0xff]
    %v2095 = vld [vmem:[%s5 + $0x38] sm:$0xff]
    %v2096 = vmul.f32 %v2066, %v2088
    %v2097 = vmul.f32 %v2068, %v2089
    %v2098 = vmul.f32 %v2072, %v2090
    %v2099 = vmul.f32 %v2074, %v2091
    %v2100 = vmul.f32 %v2078, %v2092
    %v2101 = vmul.f32 %v2080, %v2093
    %v2102 = vmul.f32 %v2084, %v2094
    %v2103 = vmul.f32 %v2086, %v2095
    %v2104 = vld [vmem:[%s6] sm:$0xff]
    %v2105 = vld [vmem:[%s6 + $0x8] sm:$0xff]
    %v2106 = vld [vmem:[%s6 + $0x10] sm:$0xff]
    %v2107 = vld [vmem:[%s6 + $0x18] sm:$0xff]
    %2109 = vset.pattern.permute.xlu0 0
    %2110 = vperm.xlu0 %2109, %v2104
    %v2111 = vpop.permute.xlu0 %2110
    %2114 = vset.pattern.permute.xlu0 0
    %2115 = vperm.xlu0 %2114, %v2105
    %v2116 = vpop.permute.xlu0 %2115
    %2119 = vset.pattern.permute.xlu0 0
    %2120 = vperm.xlu0 %2119, %v2106
    %v2121 = vpop.permute.xlu0 %2120
    %2124 = vset.pattern.permute.xlu0 0
    %2125 = vperm.xlu0 %2124, %v2107
    %v2126 = vpop.permute.xlu0 %2125
    %v2128 = vsub.f32 %v2096, %v2111
    %v2129 = vsub.f32 %v2097, %v2111
    %v2130 = vsub.f32 %v2098, %v2116
    %v2131 = vsub.f32 %v2099, %v2116
    %v2132 = vsub.f32 %v2100, %v2121
    %v2133 = vsub.f32 %v2101, %v2121
    %v2134 = vsub.f32 %v2102, %v2126
    %v2135 = vsub.f32 %v2103, %v2126
    %v2136 = vmax.f32 %v2128, 0.0
    %v2137 = vmax.f32 %v2129, 0.0
    %v2138 = vmax.f32 %v2130, 0.0
    %v2139 = vmax.f32 %v2131, 0.0
    %v2140 = vmax.f32 %v2132, 0.0
    %v2141 = vmax.f32 %v2133, 0.0
    %v2142 = vmax.f32 %v2134, 0.0
    %v2143 = vmax.f32 %v2135, 0.0
    %v2144 = vld [vmem:[%s7] sm:$0xff]
    %s2145 = scalar_lea.vmem %s6, 32
    %v2146 = vld [vmem:[%s2145] sm:$0xff]
    %2148 = vset.pattern.permute.xlu0 0
    %2149 = vperm.xlu0 %2148, %v2146
    %v2150 = vpop.permute.xlu0 %2149
    %vm2152 = vcmask 261120
    %v2154 = vsel %vm2152, %v2144, 0
    %2156 = vmatprep.subr.mxu0 %v2137
    %2157 = vmatpush1.msra.mxu0 %v2136
    %2158 = vmatprep.subr.mxu0 %v2139
    %2159 = vmatpush1.msra.mxu0 %v2138
    %2160 = vmatprep.subr.mxu0 %v2141
    %2161 = vmatpush1.msra.mxu0 %v2140
    %2162 = vmatprep.subr.mxu0 %v2143
    %2163 = vmatpush1.msra.mxu0 %v2142
    %2164 = vmatprep.subr.mxu0 0.0
    %2165 = vmatpush1.msra.mxu0 0.0
    %2166 = vmatprep.subr.mxu0 0.0
    %2167 = vmatpush1.msra.mxu0 0.0
    %2168 = vmatprep.subr.mxu0 0.0
    %2169 = vmatpush1.msra.mxu0 0.0
    %2170 = vmatprep.subr.mxu0 0.0
    %2171 = vmatpush1.msra.mxu0 0.0
    %2172 = vmatprep.subr.mxu0 0.0
    %2173 = vmatpush1.msra.mxu0 0.0
    %2174 = vmatprep.subr.mxu0 0.0
    %2175 = vmatpush1.msra.mxu0 0.0
    %2176 = vmatprep.subr.mxu0 0.0
    %2177 = vmatpush1.msra.mxu0 0.0
    %2178 = vmatprep.subr.mxu0 0.0
    %2179 = vmatpush1.msra.mxu0 0.0
    %2180 = vmatprep.subr.mxu0 0.0
    %2181 = vmatpush1.msra.mxu0 0.0
    %2182 = vmatprep.subr.mxu0 0.0
    %2183 = vmatpush1.msra.mxu0 0.0
    %2184 = vmatprep.subr.mxu0 0.0
    %2185 = vmatpush1.msra.mxu0 0.0
    %2186 = vmatprep.subr.mxu0 0.0
    %2187 = vmatpush1.msra.mxu0 0.0
    %2188 = vmatprep.subr.mxu0 0.0
    %2189 = vmatpush1.msra.mxu0 0.0
    %2190 = vmatprep.subr.mxu0 0.0
    %2191 = vmatpush1.msra.mxu0 0.0
    %2192 = vmatprep.subr.mxu0 0.0
    %2193 = vmatpush1.msra.mxu0 0.0
    %2194 = vmatprep.subr.mxu0 0.0
    %2195 = vmatpush1.msra.mxu0 0.0
    %2196 = vmatprep.subr.mxu0 0.0
    %2197 = vmatpush1.msra.mxu0 0.0
    %2198 = vmatprep.subr.mxu0 0.0
    %2199 = vmatpush1.msra.mxu0 0.0
    %2200 = vmatprep.subr.mxu0 0.0
    %2201 = vmatpush1.msra.mxu0 0.0
    %2202 = vmatprep.subr.mxu0 0.0
    %2203 = vmatpush1.msra.mxu0 0.0
    %2204 = vmatprep.subr.mxu0 0.0
    %2205 = vmatpush1.msra.mxu0 0.0
    %2206 = vmatprep.subr.mxu0 0.0
    %2207 = vmatpush1.msra.mxu0 0.0
    %2208 = vmatprep.subr.mxu0 0.0
    %2209 = vmatpush1.msra.mxu0 0.0
    %2210 = vmatprep.subr.mxu0 0.0
    %2211 = vmatpush1.msra.mxu0 0.0
    %2212 = vmatprep.subr.mxu0 0.0
    %2213 = vmatpush1.msra.mxu0 0.0
    %2214 = vmatprep.subr.mxu0 0.0
    %2215 = vmatpush1.msra.mxu0 0.0
    %2216 = vmatprep.subr.mxu0 0.0
    %2217 = vmatpush1.msra.mxu0 0.0
    %2218 = vmatprep.subr.mxu0 0.0
    %2219 = vmatpush1.msra.mxu0 0.0
    %2220 = vmatprep.mubr.f32.mxu0 0.0
    %2221 = vmatmul.mubr.f32.gmra.mrb[0].mxu0 %v2154
    %v2222 = vpop.f32.mrb[0].mxu0
    %v2223 = vadd.f32 %v2150, %v2222
    %v2224 = vpop.f32.mrb[0].mxu0
    %v2225 = vadd.f32 %v2150, %v2224
    %2226 = vdwg.mxu0
    %v2227 = vld [vmem:[%s12] sm:$0x3]
    %v2228 = vld [vmem:[%s12 + $0x2] sm:$0x3]
    %v2229 = vld [vmem:[%s12 + $0x4] sm:$0x3]
    %v2230 = vld [vmem:[%s12 + $0x6] sm:$0x3]
    %vm2231 = vcmask 58368
    %v2232 = vsel %vm2231, %v2227, 0.0
    %v2233 = vsel %vm2231, %v2228, 0.0
    %v2234 = vadd.f32 %v2232, %v2233
    %v2235 = vsel %vm2231, %v2229, 0.0
    %v2236 = vadd.f32 %v2234, %v2235
    %v2237 = vsel %vm2231, %v2230, 0.0
    %v2238 = vadd.f32 %v2236, %v2237
    %2239 = vxpose.xlu0.b32.start [1/16] %v2238, 128
    %2240 = vxpose.xlu0.b32.cont [2/16] 0.0, 128
    %2241 = vxpose.xlu0.b32.cont [3/16] 0.0, 128
    %2242 = vxpose.xlu0.b32.cont [4/16] 0.0, 128
    %2243 = vxpose.xlu0.b32.cont [5/16] 0.0, 128
    %2244 = vxpose.xlu0.b32.cont [6/16] 0.0, 128
    %2245 = vxpose.xlu0.b32.cont [7/16] 0.0, 128
    %2246 = vxpose.xlu0.b32.cont [8/16] 0.0, 128
    %2247 = vxpose.xlu0.b32.cont [9/16] 0.0, 128
    %2248 = vxpose.xlu0.b32.cont [10/16] 0.0, 128
    %2249 = vxpose.xlu0.b32.cont [11/16] 0.0, 128
    %2250 = vxpose.xlu0.b32.cont [12/16] 0.0, 128
    %2251 = vxpose.xlu0.b32.cont [13/16] 0.0, 128
    %2252 = vxpose.xlu0.b32.cont [14/16] 0.0, 128
    %2253 = vxpose.xlu0.b32.cont [15/16] 0.0, 128
    %2254 = vxpose.xlu0.b32.end [16/16] 0.0, 128
    %v2255 = vpop.trf.xlu0
    %v2256 = vpop.trf.xlu0
    %v2257 = vpop.trf.xlu0
    %v2258 = vpop.trf.xlu0
    %v2259 = vpop.trf.xlu0
    %v2260 = vpop.trf.xlu0
    %v2261 = vpop.trf.xlu0
    %v2262 = vpop.trf.xlu0
    %v2263 = vpop.trf.xlu0
    %v2264 = vpop.trf.xlu0
    %v2265 = vpop.trf.xlu0
    %v2266 = vpop.trf.xlu0
    %v2267 = vpop.trf.xlu0
    %v2268 = vpop.trf.xlu0
    %v2269 = vpop.trf.xlu0
    %v2270 = vpop.trf.xlu0
    %vm2271 = vcmask 15360
    %v2273 = vsel %vm2271, %v2255, 0
    %vm2275 = vcmask 1041408
    %v2277 = vsel %vm2275, %v2238, 0
    %2279 = vmatprep.subr.mxu0 0.0
    %2280 = vmatpush1.msra.mxu0 %v2277
    %2281 = vmatprep.subr.mxu0 0.0
    %2282 = vmatpush1.msra.mxu0 0.0
    %2283 = vmatprep.subr.mxu0 0.0
    %2284 = vmatpush1.msra.mxu0 0.0
    %2285 = vmatprep.subr.mxu0 0.0
    %2286 = vmatpush1.msra.mxu0 0.0
    %2287 = vmatprep.subr.mxu0 0.0
    %2288 = vmatpush1.msra.mxu0 0.0
    %2289 = vmatprep.subr.mxu0 0.0
    %2290 = vmatpush1.msra.mxu0 0.0
    %2291 = vmatprep.subr.mxu0 0.0
    %2292 = vmatpush1.msra.mxu0 0.0
    %2293 = vmatprep.subr.mxu0 0.0
    %2294 = vmatpush1.msra.mxu0 0.0
    %2295 = vmatprep.subr.mxu0 0.0
    %2296 = vmatpush1.msra.mxu0 0.0
    %2297 = vmatprep.subr.mxu0 0.0
    %2298 = vmatpush1.msra.mxu0 0.0
    %2299 = vmatprep.subr.mxu0 0.0
    %2300 = vmatpush1.msra.mxu0 0.0
    %2301 = vmatprep.subr.mxu0 0.0
    %2302 = vmatpush1.msra.mxu0 0.0
    %2303 = vmatprep.subr.mxu0 0.0
    %2304 = vmatpush1.msra.mxu0 0.0
    %2305 = vmatprep.subr.mxu0 0.0
    %2306 = vmatpush1.msra.mxu0 0.0
    %2307 = vmatprep.subr.mxu0 0.0
    %2308 = vmatpush1.msra.mxu0 0.0
    %2309 = vmatprep.subr.mxu0 0.0
    %2310 = vmatpush1.msra.mxu0 0.0
    %2311 = vmatprep.subr.mxu0 0.0
    %2312 = vmatpush1.msra.mxu0 0.0
    %2313 = vmatprep.subr.mxu0 0.0
    %2314 = vmatpush1.msra.mxu0 0.0
    %2315 = vmatprep.subr.mxu0 0.0
    %2316 = vmatpush1.msra.mxu0 0.0
    %2317 = vmatprep.subr.mxu0 0.0
    %2318 = vmatpush1.msra.mxu0 0.0
    %2319 = vmatprep.subr.mxu0 0.0
    %2320 = vmatpush1.msra.mxu0 0.0
    %2321 = vmatprep.subr.mxu0 0.0
    %2322 = vmatpush1.msra.mxu0 0.0
    %2323 = vmatprep.subr.mxu0 0.0
    %2324 = vmatpush1.msra.mxu0 0.0
    %2325 = vmatprep.subr.mxu0 0.0
    %2326 = vmatpush1.msra.mxu0 0.0
    %2327 = vmatprep.subr.mxu0 0.0
    %2328 = vmatpush1.msra.mxu0 0.0
    %2329 = vmatprep.subr.mxu0 0.0
    %2330 = vmatpush1.msra.mxu0 0.0
    %2331 = vmatprep.subr.mxu0 0.0
    %2332 = vmatpush1.msra.mxu0 0.0
    %2333 = vmatprep.subr.mxu0 0.0
    %2334 = vmatpush1.msra.mxu0 0.0
    %2335 = vmatprep.subr.mxu0 0.0
    %2336 = vmatpush1.msra.mxu0 0.0
    %2337 = vmatprep.subr.mxu0 0.0
    %2338 = vmatpush1.msra.mxu0 0.0
    %2339 = vmatprep.subr.mxu0 0.0
    %2340 = vmatpush1.msra.mxu0 0.0
    %2341 = vmatprep.subr.mxu0 0.0
    %2342 = vmatpush1.msra.mxu0 0.0
    %2343 = vmatprep.mubr.f32.mxu0 0.0
    %2344 = vmatmul.mubr.f32.gmra.mrb[0].mxu0 %v2273
    %v2345 = vpop.f32.mrb[0].mxu0
    %v2346 = vadd.f32 0.0, %v2345
    %v2347 = vpop.f32.mrb[0].mxu0
    %2348 = vdwg.mxu0
    %v2350 = vsel %vm688, %v2225, 0
    %2352 = vmatprep.subr.mxu0 %v2350
    %2353 = vmatpush1.xpose.msra.mxu0 %v2223
    %2354 = vmatprep.subr.mxu0 0.0
    %2355 = vmatpush1.xpose.msra.mxu0 0.0
    %2356 = vmatprep.subr.mxu0 0.0
    %2357 = vmatpush1.xpose.msra.mxu0 0.0
    %2358 = vmatprep.subr.mxu0 0.0
    %2359 = vmatpush1.xpose.msra.mxu0 0.0
    %2360 = vmatprep.subr.mxu0 0.0
    %2361 = vmatpush1.xpose.msra.mxu0 0.0
    %2362 = vmatprep.subr.mxu0 0.0
    %2363 = vmatpush1.xpose.msra.mxu0 0.0
    %2364 = vmatprep.subr.mxu0 0.0
    %2365 = vmatpush1.xpose.msra.mxu0 0.0
    %2366 = vmatprep.subr.mxu0 0.0
    %2367 = vmatpush1.xpose.msra.mxu0 0.0
    %2368 = vmatprep.subr.mxu0 0.0
    %2369 = vmatpush1.xpose.msra.mxu0 0.0
    %2370 = vmatprep.subr.mxu0 0.0
    %2371 = vmatpush1.xpose.msra.mxu0 0.0
    %2372 = vmatprep.subr.mxu0 0.0
    %2373 = vmatpush1.xpose.msra.mxu0 0.0
    %2374 = vmatprep.subr.mxu0 0.0
    %2375 = vmatpush1.xpose.msra.mxu0 0.0
    %2376 = vmatprep.subr.mxu0 0.0
    %2377 = vmatpush1.xpose.msra.mxu0 0.0
    %2378 = vmatprep.subr.mxu0 0.0
    %2379 = vmatpush1.xpose.msra.mxu0 0.0
    %2380 = vmatprep.subr.mxu0 0.0
    %2381 = vmatpush1.xpose.msra.mxu0 0.0
    %2382 = vmatprep.subr.mxu0 0.0
    %2383 = vmatpush1.xpose.msra.mxu0 0.0
    %2384 = vmatprep.subr.mxu0 0.0
    %2385 = vmatpush1.xpose.msra.mxu0 0.0
    %2386 = vmatprep.subr.mxu0 0.0
    %2387 = vmatpush1.xpose.msra.mxu0 0.0
    %2388 = vmatprep.subr.mxu0 0.0
    %2389 = vmatpush1.xpose.msra.mxu0 0.0
    %2390 = vmatprep.subr.mxu0 0.0
    %2391 = vmatpush1.xpose.msra.mxu0 0.0
    %2392 = vmatprep.subr.mxu0 0.0
    %2393 = vmatpush1.xpose.msra.mxu0 0.0
    %2394 = vmatprep.subr.mxu0 0.0
    %2395 = vmatpush1.xpose.msra.mxu0 0.0
    %2396 = vmatprep.subr.mxu0 0.0
    %2397 = vmatpush1.xpose.msra.mxu0 0.0
    %2398 = vmatprep.subr.mxu0 0.0
    %2399 = vmatpush1.xpose.msra.mxu0 0.0
    %2400 = vmatprep.subr.mxu0 0.0
    %2401 = vmatpush1.xpose.msra.mxu0 0.0
    %2402 = vmatprep.subr.mxu0 0.0
    %2403 = vmatpush1.xpose.msra.mxu0 0.0
    %2404 = vmatprep.subr.mxu0 0.0
    %2405 = vmatpush1.xpose.msra.mxu0 0.0
    %2406 = vmatprep.subr.mxu0 0.0
    %2407 = vmatpush1.xpose.msra.mxu0 0.0
    %2408 = vmatprep.subr.mxu0 0.0
    %2409 = vmatpush1.xpose.msra.mxu0 0.0
    %2410 = vmatprep.subr.mxu0 0.0
    %2411 = vmatpush1.xpose.msra.mxu0 0.0
    %2412 = vmatprep.subr.mxu0 0.0
    %2413 = vmatpush1.xpose.msra.mxu0 0.0
    %2414 = vmatprep.subr.mxu0 0.0
    %2415 = vmatpush1.xpose.msra.mxu0 0.0
    %2416 = vmatprep.mubr.f32.mxu0 %v2350
    %2417 = vmatmul.mubr.f32.gmra.mrb[0].mxu0 %v2223
    %v2418 = vpop.f32.mrb[0].mxu0
    %v2419 = vadd.f32 0.0, %v2418
    %v2420 = vpop.f32.mrb[0].mxu0
    %2421 = vdwg.mxu0
    %v2422 = vmul.f32 %v2346, %v2419
    %vm2423 = vcmask 64512
    %v2424 = vsel %vm2423, %v2422, 0.0
    %2425 = vadd.xlane.f32.xlu0 %v2424
    %v2426 = vpop.xlane.xlu0 %2425
    %v2427 = vadd.f32 %v2426, 1.0
    %vm2428 = vcmp.eq.f32.partialorder %v2427, 0.0
    %v2429 = vsel %vm2428, 1, 0
    %v2430 = vcvt.s32.f32 %v2429
    %v2431 = vadd.f32 %v2427, %v2430
    %v2432 = vrsqrt.pop %v2431
    %v2433 = vld [vmem:[%s8] sm:$0xff]
    %v2434 = vld [vmem:[%s8 + $0x8] sm:$0xff]
    %v2435 = vld [vmem:[%s8 + $0x10] sm:$0xff]
    %v2436 = vld [vmem:[%s8 + $0x18] sm:$0xff]
    %v2437 = vld [vmem:[%s8 + $0x20] sm:$0xff]
    %v2438 = vld [vmem:[%s8 + $0x28] sm:$0xff]
    %v2439 = vld [vmem:[%s8 + $0x30] sm:$0xff]
    %v2440 = vld [vmem:[%s8 + $0x38] sm:$0xff]
    %v2441 = vld [vmem:[%s8 + $0x40] sm:$0xff]
    %v2442 = vld [vmem:[%s8 + $0x48] sm:$0xff]
    %v2443 = vld [vmem:[%s8 + $0x50] sm:$0xff]
    %v2444 = vld [vmem:[%s8 + $0x58] sm:$0xff]
    %v2445 = vld [vmem:[%s8 + $0x60] sm:$0xff]
    %v2446 = vld [vmem:[%s8 + $0x68] sm:$0xff]
    %v2447 = vld [vmem:[%s8 + $0x70] sm:$0xff]
    %v2448 = vld [vmem:[%s8 + $0x78] sm:$0xff]
    %v2449 = vld [vmem:[%s8 + $0x80] sm:$0xff]
    %v2450 = vld [vmem:[%s8 + $0x88] sm:$0xff]
    %v2451 = vld [vmem:[%s8 + $0x90] sm:$0xff]
    %v2452 = vld [vmem:[%s8 + $0x98] sm:$0xf]
    %v2453 = vld [vmem:[%s13 + $0xb] sm:$0x1]
    %v2455 = vlaneseq
    %v2456 = vshrl.u32 %v2455, 7
    %v2457 = vsub.s32 0, %v2456
    %v2458 = vrot.slane %v2453, %v2457
    %v2461 = vsel %vm701, %v2452, 0
    %2463 = vmatprep.subr.mxu0 0.0
    %2464 = vmatpush1.msra.mxu0 %v2433
    %2465 = vmatprep.subr.mxu0 0.0
    %2466 = vmatpush1.msra.mxu0 %v2434
    %2467 = vmatprep.subr.mxu0 0.0
    %2468 = vmatpush1.msra.mxu0 %v2435
    %2469 = vmatprep.subr.mxu0 0.0
    %2470 = vmatpush1.msra.mxu0 %v2436
    %2471 = vmatprep.subr.mxu0 0.0
    %2472 = vmatpush1.msra.mxu0 %v2437
    %2473 = vmatprep.subr.mxu0 0.0
    %2474 = vmatpush1.msra.mxu0 %v2438
    %2475 = vmatprep.subr.mxu0 0.0
    %2476 = vmatpush1.msra.mxu0 %v2439
    %2477 = vmatprep.subr.mxu0 0.0
    %2478 = vmatpush1.msra.mxu0 %v2440
    %2479 = vmatprep.subr.mxu0 0.0
    %2480 = vmatpush1.msra.mxu0 %v2441
    %2481 = vmatprep.subr.mxu0 0.0
    %2482 = vmatpush1.msra.mxu0 %v2442
    %2483 = vmatprep.subr.mxu0 0.0
    %2484 = vmatpush1.msra.mxu0 %v2443
    %2485 = vmatprep.subr.mxu0 0.0
    %2486 = vmatpush1.msra.mxu0 %v2444
    %2487 = vmatprep.subr.mxu0 0.0
    %2488 = vmatpush1.msra.mxu0 %v2445
    %2489 = vmatprep.subr.mxu0 0.0
    %2490 = vmatpush1.msra.mxu0 %v2446
    %2491 = vmatprep.subr.mxu0 0.0
    %2492 = vmatpush1.msra.mxu0 %v2447
    %2493 = vmatprep.subr.mxu0 0.0
    %2494 = vmatpush1.msra.mxu0 %v2448
    %2495 = vmatprep.subr.mxu0 0.0
    %2496 = vmatpush1.msra.mxu0 %v2449
    %2497 = vmatprep.subr.mxu0 0.0
    %2498 = vmatpush1.msra.mxu0 %v2450
    %2499 = vmatprep.subr.mxu0 0.0
    %2500 = vmatpush1.msra.mxu0 %v2451
    %2501 = vmatprep.subr.mxu0 0.0
    %2502 = vmatpush1.msra.mxu0 %v2461
    %2503 = vmatprep.subr.mxu0 0.0
    %2504 = vmatpush1.msra.mxu0 0.0
    %2505 = vmatprep.subr.mxu0 0.0
    %2506 = vmatpush1.msra.mxu0 0.0
    %2507 = vmatprep.subr.mxu0 0.0
    %2508 = vmatpush1.msra.mxu0 0.0
    %2509 = vmatprep.subr.mxu0 0.0
    %2510 = vmatpush1.msra.mxu0 0.0
    %2511 = vmatprep.subr.mxu0 0.0
    %2512 = vmatpush1.msra.mxu0 0.0
    %2513 = vmatprep.subr.mxu0 0.0
    %2514 = vmatpush1.msra.mxu0 0.0
    %2515 = vmatprep.subr.mxu0 0.0
    %2516 = vmatpush1.msra.mxu0 0.0
    %2517 = vmatprep.subr.mxu0 0.0
    %2518 = vmatpush1.msra.mxu0 0.0
    %2519 = vmatprep.subr.mxu0 0.0
    %2520 = vmatpush1.msra.mxu0 0.0
    %2521 = vmatprep.subr.mxu0 0.0
    %2522 = vmatpush1.msra.mxu0 0.0
    %2523 = vmatprep.subr.mxu0 0.0
    %2524 = vmatpush1.msra.mxu0 0.0
    %2525 = vmatprep.subr.mxu0 0.0
    %2526 = vmatpush1.msra.mxu0 0.0
    %2527 = vmatprep.mubr.f32.mxu0 %v2350
    %2528 = vmatmul.mubr.f32.gmra.mrb[0].mxu0 %v2223
    %v2529 = vpop.f32.mrb[0].mxu0
    %v2530 = vadd.f32 %v2458, %v2529
    %v2531 = vpop.f32.mrb[0].mxu0
    %2532 = vdwg.mxu0
    %v2533 = vmul.f32 %v2432, %v2530
    %v2535 = vsel %vm2423, %v2422, 0
    %2537 = vmatprep.subr.mxu0 0.0
    %2538 = vmatpush1.msra.mxu0 %v2533
    %2539 = vmatprep.subr.mxu0 0.0
    %2540 = vmatpush1.msra.mxu0 0.0
    %2541 = vmatprep.subr.mxu0 0.0
    %2542 = vmatpush1.msra.mxu0 0.0
    %2543 = vmatprep.subr.mxu0 0.0
    %2544 = vmatpush1.msra.mxu0 0.0
    %2545 = vmatprep.subr.mxu0 0.0
    %2546 = vmatpush1.msra.mxu0 0.0
    %2547 = vmatprep.subr.mxu0 0.0
    %2548 = vmatpush1.msra.mxu0 0.0
    %2549 = vmatprep.subr.mxu0 0.0
    %2550 = vmatpush1.msra.mxu0 0.0
    %2551 = vmatprep.subr.mxu0 0.0
    %2552 = vmatpush1.msra.mxu0 0.0
    %2553 = vmatprep.subr.mxu0 0.0
    %2554 = vmatpush1.msra.mxu0 0.0
    %2555 = vmatprep.subr.mxu0 0.0
    %2556 = vmatpush1.msra.mxu0 0.0
    %2557 = vmatprep.subr.mxu0 0.0
    %2558 = vmatpush1.msra.mxu0 0.0
    %2559 = vmatprep.subr.mxu0 0.0
    %2560 = vmatpush1.msra.mxu0 0.0
    %2561 = vmatprep.subr.mxu0 0.0
    %2562 = vmatpush1.msra.mxu0 0.0
    %2563 = vmatprep.subr.mxu0 0.0
    %2564 = vmatpush1.msra.mxu0 0.0
    %2565 = vmatprep.subr.mxu0 0.0
    %2566 = vmatpush1.msra.mxu0 0.0
    %2567 = vmatprep.subr.mxu0 0.0
    %2568 = vmatpush1.msra.mxu0 0.0
    %2569 = vmatprep.subr.mxu0 0.0
    %2570 = vmatpush1.msra.mxu0 0.0
    %2571 = vmatprep.subr.mxu0 0.0
    %2572 = vmatpush1.msra.mxu0 0.0
    %2573 = vmatprep.subr.mxu0 0.0
    %2574 = vmatpush1.msra.mxu0 0.0
    %2575 = vmatprep.subr.mxu0 0.0
    %2576 = vmatpush1.msra.mxu0 0.0
    %2577 = vmatprep.subr.mxu0 0.0
    %2578 = vmatpush1.msra.mxu0 0.0
    %2579 = vmatprep.subr.mxu0 0.0
    %2580 = vmatpush1.msra.mxu0 0.0
    %2581 = vmatprep.subr.mxu0 0.0
    %2582 = vmatpush1.msra.mxu0 0.0
    %2583 = vmatprep.subr.mxu0 0.0
    %2584 = vmatpush1.msra.mxu0 0.0
    %2585 = vmatprep.subr.mxu0 0.0
    %2586 = vmatpush1.msra.mxu0 0.0
    %2587 = vmatprep.subr.mxu0 0.0
    %2588 = vmatpush1.msra.mxu0 0.0
    %2589 = vmatprep.subr.mxu0 0.0
    %2590 = vmatpush1.msra.mxu0 0.0
    %2591 = vmatprep.subr.mxu0 0.0
    %2592 = vmatpush1.msra.mxu0 0.0
    %2593 = vmatprep.subr.mxu0 0.0
    %2594 = vmatpush1.msra.mxu0 0.0
    %2595 = vmatprep.subr.mxu0 0.0
    %2596 = vmatpush1.msra.mxu0 0.0
    %2597 = vmatprep.subr.mxu0 0.0
    %2598 = vmatpush1.msra.mxu0 0.0
    %2599 = vmatprep.subr.mxu0 0.0
    %2600 = vmatpush1.msra.mxu0 0.0
    %2601 = vmatprep.mubr.f32.mxu0 0.0
    %2602 = vmatmul.mubr.f32.gmra.mrb[0].mxu0 %v2535
    %v2603 = vpop.f32.mrb[0].mxu0
    %v2604 = vadd.f32 %v2533, %v2603
    %v2605 = vpop.f32.mrb[0].mxu0
    %2606 = vdwg.mxu0
    %v2607 = vmul.f32 %v2432, %v2604
    %v2608 = vmax.f32 %v2607, 0.0
    %v2610 = vsel %vm132, %v2608, 0
    %2612 = vmatprep.subr.mxu0 0.0
    %2613 = vmatpush1.xpose.msra.mxu0 %v2610
    %2614 = vmatprep.subr.mxu0 0.0
    %2615 = vmatpush1.xpose.msra.mxu0 0.0
    %2616 = vmatprep.subr.mxu0 0.0
    %2617 = vmatpush1.xpose.msra.mxu0 0.0
    %2618 = vmatprep.subr.mxu0 0.0
    %2619 = vmatpush1.xpose.msra.mxu0 0.0
    %2620 = vmatprep.subr.mxu0 0.0
    %2621 = vmatpush1.xpose.msra.mxu0 0.0
    %2622 = vmatprep.subr.mxu0 0.0
    %2623 = vmatpush1.xpose.msra.mxu0 0.0
    %2624 = vmatprep.subr.mxu0 0.0
    %2625 = vmatpush1.xpose.msra.mxu0 0.0
    %2626 = vmatprep.subr.mxu0 0.0
    %2627 = vmatpush1.xpose.msra.mxu0 0.0
    %2628 = vmatprep.subr.mxu0 0.0
    %2629 = vmatpush1.xpose.msra.mxu0 0.0
    %2630 = vmatprep.subr.mxu0 0.0
    %2631 = vmatpush1.xpose.msra.mxu0 0.0
    %2632 = vmatprep.subr.mxu0 0.0
    %2633 = vmatpush1.xpose.msra.mxu0 0.0
    %2634 = vmatprep.subr.mxu0 0.0
    %2635 = vmatpush1.xpose.msra.mxu0 0.0
    %2636 = vmatprep.subr.mxu0 0.0
    %2637 = vmatpush1.xpose.msra.mxu0 0.0
    %2638 = vmatprep.subr.mxu0 0.0
    %2639 = vmatpush1.xpose.msra.mxu0 0.0
    %2640 = vmatprep.subr.mxu0 0.0
    %2641 = vmatpush1.xpose.msra.mxu0 0.0
    %2642 = vmatprep.subr.mxu0 0.0
    %2643 = vmatpush1.xpose.msra.mxu0 0.0
    %2644 = vmatprep.subr.mxu0 0.0
    %2645 = vmatpush1.xpose.msra.mxu0 0.0
    %2646 = vmatprep.subr.mxu0 0.0
    %2647 = vmatpush1.xpose.msra.mxu0 0.0
    %2648 = vmatprep.subr.mxu0 0.0
    %2649 = vmatpush1.xpose.msra.mxu0 0.0
    %2650 = vmatprep.subr.mxu0 0.0
    %2651 = vmatpush1.xpose.msra.mxu0 0.0
    %2652 = vmatprep.subr.mxu0 0.0
    %2653 = vmatpush1.xpose.msra.mxu0 0.0
    %2654 = vmatprep.subr.mxu0 0.0
    %2655 = vmatpush1.xpose.msra.mxu0 0.0
    %2656 = vmatprep.subr.mxu0 0.0
    %2657 = vmatpush1.xpose.msra.mxu0 0.0
    %2658 = vmatprep.subr.mxu0 0.0
    %2659 = vmatpush1.xpose.msra.mxu0 0.0
    %2660 = vmatprep.subr.mxu0 0.0
    %2661 = vmatpush1.xpose.msra.mxu0 0.0
    %2662 = vmatprep.subr.mxu0 0.0
    %2663 = vmatpush1.xpose.msra.mxu0 0.0
    %2664 = vmatprep.subr.mxu0 0.0
    %2665 = vmatpush1.xpose.msra.mxu0 0.0
    %2666 = vmatprep.subr.mxu0 0.0
    %2667 = vmatpush1.xpose.msra.mxu0 0.0
    %2668 = vmatprep.subr.mxu0 0.0
    %2669 = vmatpush1.xpose.msra.mxu0 0.0
    %2670 = vmatprep.subr.mxu0 0.0
    %2671 = vmatpush1.xpose.msra.mxu0 0.0
    %2672 = vmatprep.subr.mxu0 0.0
    %2673 = vmatpush1.xpose.msra.mxu0 0.0
    %2674 = vmatprep.subr.mxu0 0.0
    %2675 = vmatpush1.xpose.msra.mxu0 0.0
    %2676 = vmatprep.mubr.f32.mxu0 0.0
    %2677 = vmatmul.mubr.f32.gmra.mrb[0].mxu0 %v2610
    %v2678 = vpop.f32.mrb[0].mxu0
    %v2679 = vadd.f32 0.0, %v2678
    %v2680 = vpop.f32.mrb[0].mxu0
    %2681 = vdwg.mxu0
    %v2682 = vmul.f32 %v2346, %v2679
    %v2683 = vsel %vm2423, %v2682, 0.0
    %2684 = vadd.xlane.f32.xlu0 %v2683
    %v2685 = vpop.xlane.xlu0 %2684
    %v2686 = vadd.f32 %v2685, 1.0
    %vm2687 = vcmp.eq.f32.partialorder %v2686, 0.0
    %v2688 = vsel %vm2687, 1, 0
    %v2689 = vcvt.s32.f32 %v2688
    %v2690 = vadd.f32 %v2686, %v2689
    %v2691 = vrsqrt.pop %v2690
    %v2692 = vld [vmem:[%s9] sm:$0xff]
    %v2693 = vld [vmem:[%s9 + $0x8] sm:$0xff]
    %v2694 = vld [vmem:[%s9 + $0x10] sm:$0xff]
    %v2695 = vld [vmem:[%s9 + $0x18] sm:$0xff]
    %v2696 = vld [vmem:[%s9 + $0x20] sm:$0xff]
    %v2697 = vld [vmem:[%s9 + $0x28] sm:$0xff]
    %v2698 = vld [vmem:[%s9 + $0x30] sm:$0xff]
    %v2699 = vld [vmem:[%s9 + $0x38] sm:$0xff]
    %v2700 = vld [vmem:[%s13 + $0xc] sm:$0x1]
    %v2702 = vlaneseq
    %v2703 = vshrl.u32 %v2702, 7
    %v2704 = vsub.s32 0, %v2703
    %v2705 = vrot.slane %v2700, %v2704
    %2707 = vmatprep.subr.mxu0 0.0
    %2708 = vmatpush1.msra.mxu0 %v2692
    %2709 = vmatprep.subr.mxu0 0.0
    %2710 = vmatpush1.msra.mxu0 %v2693
    %2711 = vmatprep.subr.mxu0 0.0
    %2712 = vmatpush1.msra.mxu0 %v2694
    %2713 = vmatprep.subr.mxu0 0.0
    %2714 = vmatpush1.msra.mxu0 %v2695
    %2715 = vmatprep.subr.mxu0 0.0
    %2716 = vmatpush1.msra.mxu0 %v2696
    %2717 = vmatprep.subr.mxu0 0.0
    %2718 = vmatpush1.msra.mxu0 %v2697
    %2719 = vmatprep.subr.mxu0 0.0
    %2720 = vmatpush1.msra.mxu0 %v2698
    %2721 = vmatprep.subr.mxu0 0.0
    %2722 = vmatpush1.msra.mxu0 %v2699
    %2723 = vmatprep.subr.mxu0 0.0
    %2724 = vmatpush1.msra.mxu0 0.0
    %2725 = vmatprep.subr.mxu0 0.0
    %2726 = vmatpush1.msra.mxu0 0.0
    %2727 = vmatprep.subr.mxu0 0.0
    %2728 = vmatpush1.msra.mxu0 0.0
    %2729 = vmatprep.subr.mxu0 0.0
    %2730 = vmatpush1.msra.mxu0 0.0
    %2731 = vmatprep.subr.mxu0 0.0
    %2732 = vmatpush1.msra.mxu0 0.0
    %2733 = vmatprep.subr.mxu0 0.0
    %2734 = vmatpush1.msra.mxu0 0.0
    %2735 = vmatprep.subr.mxu0 0.0
    %2736 = vmatpush1.msra.mxu0 0.0
    %2737 = vmatprep.subr.mxu0 0.0
    %2738 = vmatpush1.msra.mxu0 0.0
    %2739 = vmatprep.subr.mxu0 0.0
    %2740 = vmatpush1.msra.mxu0 0.0
    %2741 = vmatprep.subr.mxu0 0.0
    %2742 = vmatpush1.msra.mxu0 0.0
    %2743 = vmatprep.subr.mxu0 0.0
    %2744 = vmatpush1.msra.mxu0 0.0
    %2745 = vmatprep.subr.mxu0 0.0
    %2746 = vmatpush1.msra.mxu0 0.0
    %2747 = vmatprep.subr.mxu0 0.0
    %2748 = vmatpush1.msra.mxu0 0.0
    %2749 = vmatprep.subr.mxu0 0.0
    %2750 = vmatpush1.msra.mxu0 0.0
    %2751 = vmatprep.subr.mxu0 0.0
    %2752 = vmatpush1.msra.mxu0 0.0
    %2753 = vmatprep.subr.mxu0 0.0
    %2754 = vmatpush1.msra.mxu0 0.0
    %2755 = vmatprep.subr.mxu0 0.0
    %2756 = vmatpush1.msra.mxu0 0.0
    %2757 = vmatprep.subr.mxu0 0.0
    %2758 = vmatpush1.msra.mxu0 0.0
    %2759 = vmatprep.subr.mxu0 0.0
    %2760 = vmatpush1.msra.mxu0 0.0
    %2761 = vmatprep.subr.mxu0 0.0
    %2762 = vmatpush1.msra.mxu0 0.0
    %2763 = vmatprep.subr.mxu0 0.0
    %2764 = vmatpush1.msra.mxu0 0.0
    %2765 = vmatprep.subr.mxu0 0.0
    %2766 = vmatpush1.msra.mxu0 0.0
    %2767 = vmatprep.subr.mxu0 0.0
    %2768 = vmatpush1.msra.mxu0 0.0
    %2769 = vmatprep.subr.mxu0 0.0
    %2770 = vmatpush1.msra.mxu0 0.0
    %2771 = vmatprep.mubr.f32.mxu0 0.0
    %2772 = vmatmul.mubr.f32.gmra.mrb[0].mxu0 %v2610
    %v2773 = vpop.f32.mrb[0].mxu0
    %v2774 = vadd.f32 %v2705, %v2773
    %v2775 = vpop.f32.mrb[0].mxu0
    %2776 = vdwg.mxu0
    %v2777 = vmul.f32 %v2691, %v2774
    %v2779 = vsel %vm2423, %v2682, 0
    %2781 = vmatprep.subr.mxu0 0.0
    %2782 = vmatpush1.msra.mxu0 %v2777
    %2783 = vmatprep.subr.mxu0 0.0
    %2784 = vmatpush1.msra.mxu0 0.0
    %2785 = vmatprep.subr.mxu0 0.0
    %2786 = vmatpush1.msra.mxu0 0.0
    %2787 = vmatprep.subr.mxu0 0.0
    %2788 = vmatpush1.msra.mxu0 0.0
    %2789 = vmatprep.subr.mxu0 0.0
    %2790 = vmatpush1.msra.mxu0 0.0
    %2791 = vmatprep.subr.mxu0 0.0
    %2792 = vmatpush1.msra.mxu0 0.0
    %2793 = vmatprep.subr.mxu0 0.0
    %2794 = vmatpush1.msra.mxu0 0.0
    %2795 = vmatprep.subr.mxu0 0.0
    %2796 = vmatpush1.msra.mxu0 0.0
    %2797 = vmatprep.subr.mxu0 0.0
    %2798 = vmatpush1.msra.mxu0 0.0
    %2799 = vmatprep.subr.mxu0 0.0
    %2800 = vmatpush1.msra.mxu0 0.0
    %2801 = vmatprep.subr.mxu0 0.0
    %2802 = vmatpush1.msra.mxu0 0.0
    %2803 = vmatprep.subr.mxu0 0.0
    %2804 = vmatpush1.msra.mxu0 0.0
    %2805 = vmatprep.subr.mxu0 0.0
    %2806 = vmatpush1.msra.mxu0 0.0
    %2807 = vmatprep.subr.mxu0 0.0
    %2808 = vmatpush1.msra.mxu0 0.0
    %2809 = vmatprep.subr.mxu0 0.0
    %2810 = vmatpush1.msra.mxu0 0.0
    %2811 = vmatprep.subr.mxu0 0.0
    %2812 = vmatpush1.msra.mxu0 0.0
    %2813 = vmatprep.subr.mxu0 0.0
    %2814 = vmatpush1.msra.mxu0 0.0
    %2815 = vmatprep.subr.mxu0 0.0
    %2816 = vmatpush1.msra.mxu0 0.0
    %2817 = vmatprep.subr.mxu0 0.0
    %2818 = vmatpush1.msra.mxu0 0.0
    %2819 = vmatprep.subr.mxu0 0.0
    %2820 = vmatpush1.msra.mxu0 0.0
    %2821 = vmatprep.subr.mxu0 0.0
    %2822 = vmatpush1.msra.mxu0 0.0
    %2823 = vmatprep.subr.mxu0 0.0
    %2824 = vmatpush1.msra.mxu0 0.0
    %2825 = vmatprep.subr.mxu0 0.0
    %2826 = vmatpush1.msra.mxu0 0.0
    %2827 = vmatprep.subr.mxu0 0.0
    %2828 = vmatpush1.msra.mxu0 0.0
    %2829 = vmatprep.subr.mxu0 0.0
    %2830 = vmatpush1.msra.mxu0 0.0
    %2831 = vmatprep.subr.mxu0 0.0
    %2832 = vmatpush1.msra.mxu0 0.0
    %2833 = vmatprep.subr.mxu0 0.0
    %2834 = vmatpush1.msra.mxu0 0.0
    %2835 = vmatprep.subr.mxu0 0.0
    %2836 = vmatpush1.msra.mxu0 0.0
    %2837 = vmatprep.subr.mxu0 0.0
    %2838 = vmatpush1.msra.mxu0 0.0
    %2839 = vmatprep.subr.mxu0 0.0
    %2840 = vmatpush1.msra.mxu0 0.0
    %2841 = vmatprep.subr.mxu0 0.0
    %2842 = vmatpush1.msra.mxu0 0.0
    %2843 = vmatprep.subr.mxu0 0.0
    %2844 = vmatpush1.msra.mxu0 0.0
    %2845 = vmatprep.mubr.f32.mxu0 0.0
    %2846 = vmatmul.mubr.f32.gmra.mrb[0].mxu0 %v2779
    %v2847 = vpop.f32.mrb[0].mxu0
    %v2848 = vadd.f32 %v2777, %v2847
    %v2849 = vpop.f32.mrb[0].mxu0
    %2850 = vdwg.mxu0
    %v2851 = vmul.f32 %v2691, %v2848
    %v2852 = vmax.f32 %v2851, 0.0
    %v2854 = vsel %vm132, %v2852, 0
    %2856 = vmatprep.subr.mxu0 0.0
    %2857 = vmatpush1.xpose.msra.mxu0 %v2854
    %2858 = vmatprep.subr.mxu0 0.0
    %2859 = vmatpush1.xpose.msra.mxu0 0.0
    %2860 = vmatprep.subr.mxu0 0.0
    %2861 = vmatpush1.xpose.msra.mxu0 0.0
    %2862 = vmatprep.subr.mxu0 0.0
    %2863 = vmatpush1.xpose.msra.mxu0 0.0
    %2864 = vmatprep.subr.mxu0 0.0
    %2865 = vmatpush1.xpose.msra.mxu0 0.0
    %2866 = vmatprep.subr.mxu0 0.0
    %2867 = vmatpush1.xpose.msra.mxu0 0.0
    %2868 = vmatprep.subr.mxu0 0.0
    %2869 = vmatpush1.xpose.msra.mxu0 0.0
    %2870 = vmatprep.subr.mxu0 0.0
    %2871 = vmatpush1.xpose.msra.mxu0 0.0
    %2872 = vmatprep.subr.mxu0 0.0
    %2873 = vmatpush1.xpose.msra.mxu0 0.0
    %2874 = vmatprep.subr.mxu0 0.0
    %2875 = vmatpush1.xpose.msra.mxu0 0.0
    %2876 = vmatprep.subr.mxu0 0.0
    %2877 = vmatpush1.xpose.msra.mxu0 0.0
    %2878 = vmatprep.subr.mxu0 0.0
    %2879 = vmatpush1.xpose.msra.mxu0 0.0
    %2880 = vmatprep.subr.mxu0 0.0
    %2881 = vmatpush1.xpose.msra.mxu0 0.0
    %2882 = vmatprep.subr.mxu0 0.0
    %2883 = vmatpush1.xpose.msra.mxu0 0.0
    %2884 = vmatprep.subr.mxu0 0.0
    %2885 = vmatpush1.xpose.msra.mxu0 0.0
    %2886 = vmatprep.subr.mxu0 0.0
    %2887 = vmatpush1.xpose.msra.mxu0 0.0
    %2888 = vmatprep.subr.mxu0 0.0
    %2889 = vmatpush1.xpose.msra.mxu0 0.0
    %2890 = vmatprep.subr.mxu0 0.0
    %2891 = vmatpush1.xpose.msra.mxu0 0.0
    %2892 = vmatprep.subr.mxu0 0.0
    %2893 = vmatpush1.xpose.msra.mxu0 0.0
    %2894 = vmatprep.subr.mxu0 0.0
    %2895 = vmatpush1.xpose.msra.mxu0 0.0
    %2896 = vmatprep.subr.mxu0 0.0
    %2897 = vmatpush1.xpose.msra.mxu0 0.0
    %2898 = vmatprep.subr.mxu0 0.0
    %2899 = vmatpush1.xpose.msra.mxu0 0.0
    %2900 = vmatprep.subr.mxu0 0.0
    %2901 = vmatpush1.xpose.msra.mxu0 0.0
    %2902 = vmatprep.subr.mxu0 0.0
    %2903 = vmatpush1.xpose.msra.mxu0 0.0
    %2904 = vmatprep.subr.mxu0 0.0
    %2905 = vmatpush1.xpose.msra.mxu0 0.0
    %2906 = vmatprep.subr.mxu0 0.0
    %2907 = vmatpush1.xpose.msra.mxu0 0.0
    %2908 = vmatprep.subr.mxu0 0.0
    %2909 = vmatpush1.xpose.msra.mxu0 0.0
    %2910 = vmatprep.subr.mxu0 0.0
    %2911 = vmatpush1.xpose.msra.mxu0 0.0
    %2912 = vmatprep.subr.mxu0 0.0
    %2913 = vmatpush1.xpose.msra.mxu0 0.0
    %2914 = vmatprep.subr.mxu0 0.0
    %2915 = vmatpush1.xpose.msra.mxu0 0.0
    %2916 = vmatprep.subr.mxu0 0.0
    %2917 = vmatpush1.xpose.msra.mxu0 0.0
    %2918 = vmatprep.subr.mxu0 0.0
    %2919 = vmatpush1.xpose.msra.mxu0 0.0
    %2920 = vmatprep.mubr.f32.mxu0 0.0
    %2921 = vmatmul.mubr.f32.gmra.mrb[0].mxu0 %v2854
    %v2922 = vpop.f32.mrb[0].mxu0
    %v2923 = vadd.f32 0.0, %v2922
    %v2924 = vpop.f32.mrb[0].mxu0
    %2925 = vdwg.mxu0
    %v2926 = vmul.f32 %v2346, %v2923
    %v2927 = vsel %vm2423, %v2926, 0.0
    %2928 = vadd.xlane.f32.xlu0 %v2927
    %v2929 = vpop.xlane.xlu0 %2928
    %v2930 = vadd.f32 %v2929, 1.0
    %vm2931 = vcmp.eq.f32.partialorder %v2930, 0.0
    %v2932 = vsel %vm2931, 1, 0
    %v2933 = vcvt.s32.f32 %v2932
    %v2934 = vadd.f32 %v2930, %v2933
    %v2935 = vrsqrt.pop %v2934
    %v2936 = vld [vmem:[%s10] sm:$0xff]
    %v2937 = vld [vmem:[%s10 + $0x8] sm:$0xff]
    %v2938 = vld [vmem:[%s10 + $0x10] sm:$0xff]
    %v2939 = vld [vmem:[%s10 + $0x18] sm:$0xff]
    %v2940 = vld [vmem:[%s10 + $0x20] sm:$0xff]
    %v2941 = vld [vmem:[%s10 + $0x28] sm:$0xff]
    %v2942 = vld [vmem:[%s10 + $0x30] sm:$0xff]
    %v2943 = vld [vmem:[%s10 + $0x38] sm:$0xff]
    %v2944 = vld [vmem:[%s13 + $0xd] sm:$0x1]
    %v2946 = vlaneseq
    %v2947 = vshrl.u32 %v2946, 7
    %v2948 = vsub.s32 0, %v2947
    %v2949 = vrot.slane %v2944, %v2948
    %2951 = vmatprep.subr.mxu0 0.0
    %2952 = vmatpush1.msra.mxu0 %v2936
    %2953 = vmatprep.subr.mxu0 0.0
    %2954 = vmatpush1.msra.mxu0 %v2937
    %2955 = vmatprep.subr.mxu0 0.0
    %2956 = vmatpush1.msra.mxu0 %v2938
    %2957 = vmatprep.subr.mxu0 0.0
    %2958 = vmatpush1.msra.mxu0 %v2939
    %2959 = vmatprep.subr.mxu0 0.0
    %2960 = vmatpush1.msra.mxu0 %v2940
    %2961 = vmatprep.subr.mxu0 0.0
    %2962 = vmatpush1.msra.mxu0 %v2941
    %2963 = vmatprep.subr.mxu0 0.0
    %2964 = vmatpush1.msra.mxu0 %v2942
    %2965 = vmatprep.subr.mxu0 0.0
    %2966 = vmatpush1.msra.mxu0 %v2943
    %2967 = vmatprep.subr.mxu0 0.0
    %2968 = vmatpush1.msra.mxu0 0.0
    %2969 = vmatprep.subr.mxu0 0.0
    %2970 = vmatpush1.msra.mxu0 0.0
    %2971 = vmatprep.subr.mxu0 0.0
    %2972 = vmatpush1.msra.mxu0 0.0
    %2973 = vmatprep.subr.mxu0 0.0
    %2974 = vmatpush1.msra.mxu0 0.0
    %2975 = vmatprep.subr.mxu0 0.0
    %2976 = vmatpush1.msra.mxu0 0.0
    %2977 = vmatprep.subr.mxu0 0.0
    %2978 = vmatpush1.msra.mxu0 0.0
    %2979 = vmatprep.subr.mxu0 0.0
    %2980 = vmatpush1.msra.mxu0 0.0
    %2981 = vmatprep.subr.mxu0 0.0
    %2982 = vmatpush1.msra.mxu0 0.0
    %2983 = vmatprep.subr.mxu0 0.0
    %2984 = vmatpush1.msra.mxu0 0.0
    %2985 = vmatprep.subr.mxu0 0.0
    %2986 = vmatpush1.msra.mxu0 0.0
    %2987 = vmatprep.subr.mxu0 0.0
    %2988 = vmatpush1.msra.mxu0 0.0
    %2989 = vmatprep.subr.mxu0 0.0
    %2990 = vmatpush1.msra.mxu0 0.0
    %2991 = vmatprep.subr.mxu0 0.0
    %2992 = vmatpush1.msra.mxu0 0.0
    %2993 = vmatprep.subr.mxu0 0.0
    %2994 = vmatpush1.msra.mxu0 0.0
    %2995 = vmatprep.subr.mxu0 0.0
    %2996 = vmatpush1.msra.mxu0 0.0
    %2997 = vmatprep.subr.mxu0 0.0
    %2998 = vmatpush1.msra.mxu0 0.0
    %2999 = vmatprep.subr.mxu0 0.0
    %3000 = vmatpush1.msra.mxu0 0.0
    %3001 = vmatprep.subr.mxu0 0.0
    %3002 = vmatpush1.msra.mxu0 0.0
    %3003 = vmatprep.subr.mxu0 0.0
    %3004 = vmatpush1.msra.mxu0 0.0
    %3005 = vmatprep.subr.mxu0 0.0
    %3006 = vmatpush1.msra.mxu0 0.0
    %3007 = vmatprep.subr.mxu0 0.0
    %3008 = vmatpush1.msra.mxu0 0.0
    %3009 = vmatprep.subr.mxu0 0.0
    %3010 = vmatpush1.msra.mxu0 0.0
    %3011 = vmatprep.subr.mxu0 0.0
    %3012 = vmatpush1.msra.mxu0 0.0
    %3013 = vmatprep.subr.mxu0 0.0
    %3014 = vmatpush1.msra.mxu0 0.0
    %3015 = vmatprep.mubr.f32.mxu0 0.0
    %3016 = vmatmul.mubr.f32.gmra.mrb[0].mxu0 %v2854
    %v3017 = vpop.f32.mrb[0].mxu0
    %v3018 = vadd.f32 %v2949, %v3017
    %v3019 = vpop.f32.mrb[0].mxu0
    %3020 = vdwg.mxu0
    %v3021 = vmul.f32 %v2935, %v3018
    %v3023 = vsel %vm2423, %v2926, 0
    %3025 = vmatprep.subr.mxu0 0.0
    %3026 = vmatpush1.msra.mxu0 %v3021
    %3027 = vmatprep.subr.mxu0 0.0
    %3028 = vmatpush1.msra.mxu0 0.0
    %3029 = vmatprep.subr.mxu0 0.0
    %3030 = vmatpush1.msra.mxu0 0.0
    %3031 = vmatprep.subr.mxu0 0.0
    %3032 = vmatpush1.msra.mxu0 0.0
    %3033 = vmatprep.subr.mxu0 0.0
    %3034 = vmatpush1.msra.mxu0 0.0
    %3035 = vmatprep.subr.mxu0 0.0
    %3036 = vmatpush1.msra.mxu0 0.0
    %3037 = vmatprep.subr.mxu0 0.0
    %3038 = vmatpush1.msra.mxu0 0.0
    %3039 = vmatprep.subr.mxu0 0.0
    %3040 = vmatpush1.msra.mxu0 0.0
    %3041 = vmatprep.subr.mxu0 0.0
    %3042 = vmatpush1.msra.mxu0 0.0
    %3043 = vmatprep.subr.mxu0 0.0
    %3044 = vmatpush1.msra.mxu0 0.0
    %3045 = vmatprep.subr.mxu0 0.0
    %3046 = vmatpush1.msra.mxu0 0.0
    %3047 = vmatprep.subr.mxu0 0.0
    %3048 = vmatpush1.msra.mxu0 0.0
    %3049 = vmatprep.subr.mxu0 0.0
    %3050 = vmatpush1.msra.mxu0 0.0
    %3051 = vmatprep.subr.mxu0 0.0
    %3052 = vmatpush1.msra.mxu0 0.0
    %3053 = vmatprep.subr.mxu0 0.0
    %3054 = vmatpush1.msra.mxu0 0.0
    %3055 = vmatprep.subr.mxu0 0.0
    %3056 = vmatpush1.msra.mxu0 0.0
    %3057 = vmatprep.subr.mxu0 0.0
    %3058 = vmatpush1.msra.mxu0 0.0
    %3059 = vmatprep.subr.mxu0 0.0
    %3060 = vmatpush1.msra.mxu0 0.0
    %3061 = vmatprep.subr.mxu0 0.0
    %3062 = vmatpush1.msra.mxu0 0.0
    %3063 = vmatprep.subr.mxu0 0.0
    %3064 = vmatpush1.msra.mxu0 0.0
    %3065 = vmatprep.subr.mxu0 0.0
    %3066 = vmatpush1.msra.mxu0 0.0
    %3067 = vmatprep.subr.mxu0 0.0
    %3068 = vmatpush1.msra.mxu0 0.0
    %3069 = vmatprep.subr.mxu0 0.0
    %3070 = vmatpush1.msra.mxu0 0.0
    %3071 = vmatprep.subr.mxu0 0.0
    %3072 = vmatpush1.msra.mxu0 0.0
    %3073 = vmatprep.subr.mxu0 0.0
    %3074 = vmatpush1.msra.mxu0 0.0
    %3075 = vmatprep.subr.mxu0 0.0
    %3076 = vmatpush1.msra.mxu0 0.0
    %3077 = vmatprep.subr.mxu0 0.0
    %3078 = vmatpush1.msra.mxu0 0.0
    %3079 = vmatprep.subr.mxu0 0.0
    %3080 = vmatpush1.msra.mxu0 0.0
    %3081 = vmatprep.subr.mxu0 0.0
    %3082 = vmatpush1.msra.mxu0 0.0
    %3083 = vmatprep.subr.mxu0 0.0
    %3084 = vmatpush1.msra.mxu0 0.0
    %3085 = vmatprep.subr.mxu0 0.0
    %3086 = vmatpush1.msra.mxu0 0.0
    %3087 = vmatprep.subr.mxu0 0.0
    %3088 = vmatpush1.msra.mxu0 0.0
    %3089 = vmatprep.mubr.f32.mxu0 0.0
    %3090 = vmatmul.mubr.f32.gmra.mrb[0].mxu0 %v3023
    %v3091 = vpop.f32.mrb[0].mxu0
    %v3092 = vadd.f32 %v3021, %v3091
    %v3093 = vpop.f32.mrb[0].mxu0
    %3094 = vdwg.mxu0
    %v3095 = vmul.f32 %v2935, %v3092
    %v3096 = vmax.f32 %v3095, 0.0
    %v3097 = vld [vmem:[%s12] sm:$0x3]
    %v3099 = vsel %vm2423, %v3097, 0
    %3101 = vmatprep.subr.mxu0 0.0
    %3102 = vmatpush1.msra.mxu0 %v3096
    %3103 = vmatprep.subr.mxu0 0.0
    %3104 = vmatpush1.msra.mxu0 0.0
    %3105 = vmatprep.subr.mxu0 0.0
    %3106 = vmatpush1.msra.mxu0 0.0
    %3107 = vmatprep.subr.mxu0 0.0
    %3108 = vmatpush1.msra.mxu0 0.0
    %3109 = vmatprep.subr.mxu0 0.0
    %3110 = vmatpush1.msra.mxu0 0.0
    %3111 = vmatprep.subr.mxu0 0.0
    %3112 = vmatpush1.msra.mxu0 0.0
    %3113 = vmatprep.subr.mxu0 0.0
    %3114 = vmatpush1.msra.mxu0 0.0
    %3115 = vmatprep.subr.mxu0 0.0
    %3116 = vmatpush1.msra.mxu0 0.0
    %3117 = vmatprep.subr.mxu0 0.0
    %3118 = vmatpush1.msra.mxu0 0.0
    %3119 = vmatprep.subr.mxu0 0.0
    %3120 = vmatpush1.msra.mxu0 0.0
    %3121 = vmatprep.subr.mxu0 0.0
    %3122 = vmatpush1.msra.mxu0 0.0
    %3123 = vmatprep.subr.mxu0 0.0
    %3124 = vmatpush1.msra.mxu0 0.0
    %3125 = vmatprep.subr.mxu0 0.0
    %3126 = vmatpush1.msra.mxu0 0.0
    %3127 = vmatprep.subr.mxu0 0.0
    %3128 = vmatpush1.msra.mxu0 0.0
    %3129 = vmatprep.subr.mxu0 0.0
    %3130 = vmatpush1.msra.mxu0 0.0
    %3131 = vmatprep.subr.mxu0 0.0
    %3132 = vmatpush1.msra.mxu0 0.0
    %3133 = vmatprep.subr.mxu0 0.0
    %3134 = vmatpush1.msra.mxu0 0.0
    %3135 = vmatprep.subr.mxu0 0.0
    %3136 = vmatpush1.msra.mxu0 0.0
    %3137 = vmatprep.subr.mxu0 0.0
    %3138 = vmatpush1.msra.mxu0 0.0
    %3139 = vmatprep.subr.mxu0 0.0
    %3140 = vmatpush1.msra.mxu0 0.0
    %3141 = vmatprep.subr.mxu0 0.0
    %3142 = vmatpush1.msra.mxu0 0.0
    %3143 = vmatprep.subr.mxu0 0.0
    %3144 = vmatpush1.msra.mxu0 0.0
    %3145 = vmatprep.subr.mxu0 0.0
    %3146 = vmatpush1.msra.mxu0 0.0
    %3147 = vmatprep.subr.mxu0 0.0
    %3148 = vmatpush1.msra.mxu0 0.0
    %3149 = vmatprep.subr.mxu0 0.0
    %3150 = vmatpush1.msra.mxu0 0.0
    %3151 = vmatprep.subr.mxu0 0.0
    %3152 = vmatpush1.msra.mxu0 0.0
    %3153 = vmatprep.subr.mxu0 0.0
    %3154 = vmatpush1.msra.mxu0 0.0
    %3155 = vmatprep.subr.mxu0 0.0
    %3156 = vmatpush1.msra.mxu0 0.0
    %3157 = vmatprep.subr.mxu0 0.0
    %3158 = vmatpush1.msra.mxu0 0.0
    %3159 = vmatprep.subr.mxu0 0.0
    %3160 = vmatpush1.msra.mxu0 0.0
    %3161 = vmatprep.subr.mxu0 0.0
    %3162 = vmatpush1.msra.mxu0 0.0
    %3163 = vmatprep.subr.mxu0 0.0
    %3164 = vmatpush1.msra.mxu0 0.0
    %3165 = vmatprep.mubr.f32.mxu0 0.0
    %3166 = vmatmul.mubr.f32.gmra.mrb[0].mxu0 %v3099
    %v3167 = vpop.f32.mrb[0].mxu0
    %v3168 = vadd.f32 0.0, %v3167
    %v3169 = vpop.f32.mrb[0].mxu0
    %3170 = vdwg.mxu0
    %v3171 = vld [vmem:[%s11] sm:$0xff]
    %s3172 = scalar_lea.vmem %s12, 2
    %v3173 = vld [vmem:[%s3172] sm:$0x3]
    %v3175 = vsel %vm2423, %v3173, 0
    %3177 = vmatprep.subr.mxu0 0.0
    %3178 = vmatpush1.msra.mxu0 %v3096
    %3179 = vmatprep.subr.mxu0 0.0
    %3180 = vmatpush1.msra.mxu0 0.0
    %3181 = vmatprep.subr.mxu0 0.0
    %3182 = vmatpush1.msra.mxu0 0.0
    %3183 = vmatprep.subr.mxu0 0.0
    %3184 = vmatpush1.msra.mxu0 0.0
    %3185 = vmatprep.subr.mxu0 0.0
    %3186 = vmatpush1.msra.mxu0 0.0
    %3187 = vmatprep.subr.mxu0 0.0
    %3188 = vmatpush1.msra.mxu0 0.0
    %3189 = vmatprep.subr.mxu0 0.0
    %3190 = vmatpush1.msra.mxu0 0.0
    %3191 = vmatprep.subr.mxu0 0.0
    %3192 = vmatpush1.msra.mxu0 0.0
    %3193 = vmatprep.subr.mxu0 0.0
    %3194 = vmatpush1.msra.mxu0 0.0
    %3195 = vmatprep.subr.mxu0 0.0
    %3196 = vmatpush1.msra.mxu0 0.0
    %3197 = vmatprep.subr.mxu0 0.0
    %3198 = vmatpush1.msra.mxu0 0.0
    %3199 = vmatprep.subr.mxu0 0.0
    %3200 = vmatpush1.msra.mxu0 0.0
    %3201 = vmatprep.subr.mxu0 0.0
    %3202 = vmatpush1.msra.mxu0 0.0
    %3203 = vmatprep.subr.mxu0 0.0
    %3204 = vmatpush1.msra.mxu0 0.0
    %3205 = vmatprep.subr.mxu0 0.0
    %3206 = vmatpush1.msra.mxu0 0.0
    %3207 = vmatprep.subr.mxu0 0.0
    %3208 = vmatpush1.msra.mxu0 0.0
    %3209 = vmatprep.subr.mxu0 0.0
    %3210 = vmatpush1.msra.mxu0 0.0
    %3211 = vmatprep.subr.mxu0 0.0
    %3212 = vmatpush1.msra.mxu0 0.0
    %3213 = vmatprep.subr.mxu0 0.0
    %3214 = vmatpush1.msra.mxu0 0.0
    %3215 = vmatprep.subr.mxu0 0.0
    %3216 = vmatpush1.msra.mxu0 0.0
    %3217 = vmatprep.subr.mxu0 0.0
    %3218 = vmatpush1.msra.mxu0 0.0
    %3219 = vmatprep.subr.mxu0 0.0
    %3220 = vmatpush1.msra.mxu0 0.0
    %3221 = vmatprep.subr.mxu0 0.0
    %3222 = vmatpush1.msra.mxu0 0.0
    %3223 = vmatprep.subr.mxu0 0.0
    %3224 = vmatpush1.msra.mxu0 0.0
    %3225 = vmatprep.subr.mxu0 0.0
    %3226 = vmatpush1.msra.mxu0 0.0
    %3227 = vmatprep.subr.mxu0 0.0
    %3228 = vmatpush1.msra.mxu0 0.0
    %3229 = vmatprep.subr.mxu0 0.0
    %3230 = vmatpush1.msra.mxu0 0.0
    %3231 = vmatprep.subr.mxu0 0.0
    %3232 = vmatpush1.msra.mxu0 0.0
    %3233 = vmatprep.subr.mxu0 0.0
    %3234 = vmatpush1.msra.mxu0 0.0
    %3235 = vmatprep.subr.mxu0 0.0
    %3236 = vmatpush1.msra.mxu0 0.0
    %3237 = vmatprep.subr.mxu0 0.0
    %3238 = vmatpush1.msra.mxu0 0.0
    %3239 = vmatprep.subr.mxu0 0.0
    %3240 = vmatpush1.msra.mxu0 0.0
    %3241 = vmatprep.mubr.f32.mxu0 0.0
    %3242 = vmatmul.mubr.f32.gmra.mrb[0].mxu0 %v3175
    %v3243 = vpop.f32.mrb[0].mxu0
    %v3244 = vadd.f32 0.0, %v3243
    %v3245 = vpop.f32.mrb[0].mxu0
    %3246 = vdwg.mxu0
    %s3247 = scalar_lea.vmem %s11, 8
    %v3248 = vld [vmem:[%s3247] sm:$0xff]
    %v3250 = vsel %vm2423, %v3244, 0
    %3252 = vmatprep.subr.mxu0 0.0
    %3253 = vmatpush1.msra.mxu0 %v3248
    %3254 = vmatprep.subr.mxu0 0.0
    %3255 = vmatpush1.msra.mxu0 0.0
    %3256 = vmatprep.subr.mxu0 0.0
    %3257 = vmatpush1.msra.mxu0 0.0
    %3258 = vmatprep.subr.mxu0 0.0
    %3259 = vmatpush1.msra.mxu0 0.0
    %3260 = vmatprep.subr.mxu0 0.0
    %3261 = vmatpush1.msra.mxu0 0.0
    %3262 = vmatprep.subr.mxu0 0.0
    %3263 = vmatpush1.msra.mxu0 0.0
    %3264 = vmatprep.subr.mxu0 0.0
    %3265 = vmatpush1.msra.mxu0 0.0
    %3266 = vmatprep.subr.mxu0 0.0
    %3267 = vmatpush1.msra.mxu0 0.0
    %3268 = vmatprep.subr.mxu0 0.0
    %3269 = vmatpush1.msra.mxu0 0.0
    %3270 = vmatprep.subr.mxu0 0.0
    %3271 = vmatpush1.msra.mxu0 0.0
    %3272 = vmatprep.subr.mxu0 0.0
    %3273 = vmatpush1.msra.mxu0 0.0
    %3274 = vmatprep.subr.mxu0 0.0
    %3275 = vmatpush1.msra.mxu0 0.0
    %3276 = vmatprep.subr.mxu0 0.0
    %3277 = vmatpush1.msra.mxu0 0.0
    %3278 = vmatprep.subr.mxu0 0.0
    %3279 = vmatpush1.msra.mxu0 0.0
    %3280 = vmatprep.subr.mxu0 0.0
    %3281 = vmatpush1.msra.mxu0 0.0
    %3282 = vmatprep.subr.mxu0 0.0
    %3283 = vmatpush1.msra.mxu0 0.0
    %3284 = vmatprep.subr.mxu0 0.0
    %3285 = vmatpush1.msra.mxu0 0.0
    %3286 = vmatprep.subr.mxu0 0.0
    %3287 = vmatpush1.msra.mxu0 0.0
    %3288 = vmatprep.subr.mxu0 0.0
    %3289 = vmatpush1.msra.mxu0 0.0
    %3290 = vmatprep.subr.mxu0 0.0
    %3291 = vmatpush1.msra.mxu0 0.0
    %3292 = vmatprep.subr.mxu0 0.0
    %3293 = vmatpush1.msra.mxu0 0.0
    %3294 = vmatprep.subr.mxu0 0.0
    %3295 = vmatpush1.msra.mxu0 0.0
    %3296 = vmatprep.subr.mxu0 0.0
    %3297 = vmatpush1.msra.mxu0 0.0
    %3298 = vmatprep.subr.mxu0 0.0
    %3299 = vmatpush1.msra.mxu0 0.0
    %3300 = vmatprep.subr.mxu0 0.0
    %3301 = vmatpush1.msra.mxu0 0.0
    %3302 = vmatprep.subr.mxu0 0.0
    %3303 = vmatpush1.msra.mxu0 0.0
    %3304 = vmatprep.subr.mxu0 0.0
    %3305 = vmatpush1.msra.mxu0 0.0
    %3306 = vmatprep.subr.mxu0 0.0
    %3307 = vmatpush1.msra.mxu0 0.0
    %3308 = vmatprep.subr.mxu0 0.0
    %3309 = vmatpush1.msra.mxu0 0.0
    %3310 = vmatprep.subr.mxu0 0.0
    %3311 = vmatpush1.msra.mxu0 0.0
    %3312 = vmatprep.subr.mxu0 0.0
    %3313 = vmatpush1.msra.mxu0 0.0
    %3314 = vmatprep.subr.mxu0 0.0
    %3315 = vmatpush1.msra.mxu0 0.0
    %3316 = vmatprep.mubr.f32.mxu0 0.0
    %3317 = vmatmul.mubr.f32.gmra.mrb[0].mxu0 %v3250
    %v3318 = vpop.f32.mrb[0].mxu0
    %v3319 = vadd.f32 0.0, %v3318
    %v3320 = vpop.f32.mrb[0].mxu0
    %3321 = vdwg.mxu0
    %v3323 = vsel %vm2423, %v3168, 0
    %3325 = vmatprep.subr.mxu0 0.0
    %3326 = vmatpush1.msra.mxu0 %v3171
    %3327 = vmatprep.subr.mxu0 0.0
    %3328 = vmatpush1.msra.mxu0 0.0
    %3329 = vmatprep.subr.mxu0 0.0
    %3330 = vmatpush1.msra.mxu0 0.0
    %3331 = vmatprep.subr.mxu0 0.0
    %3332 = vmatpush1.msra.mxu0 0.0
    %3333 = vmatprep.subr.mxu0 0.0
    %3334 = vmatpush1.msra.mxu0 0.0
    %3335 = vmatprep.subr.mxu0 0.0
    %3336 = vmatpush1.msra.mxu0 0.0
    %3337 = vmatprep.subr.mxu0 0.0
    %3338 = vmatpush1.msra.mxu0 0.0
    %3339 = vmatprep.subr.mxu0 0.0
    %3340 = vmatpush1.msra.mxu0 0.0
    %3341 = vmatprep.subr.mxu0 0.0
    %3342 = vmatpush1.msra.mxu0 0.0
    %3343 = vmatprep.subr.mxu0 0.0
    %3344 = vmatpush1.msra.mxu0 0.0
    %3345 = vmatprep.subr.mxu0 0.0
    %3346 = vmatpush1.msra.mxu0 0.0
    %3347 = vmatprep.subr.mxu0 0.0
    %3348 = vmatpush1.msra.mxu0 0.0
    %3349 = vmatprep.subr.mxu0 0.0
    %3350 = vmatpush1.msra.mxu0 0.0
    %3351 = vmatprep.subr.mxu0 0.0
    %3352 = vmatpush1.msra.mxu0 0.0
    %3353 = vmatprep.subr.mxu0 0.0
    %3354 = vmatpush1.msra.mxu0 0.0
    %3355 = vmatprep.subr.mxu0 0.0
    %3356 = vmatpush1.msra.mxu0 0.0
    %3357 = vmatprep.subr.mxu0 0.0
    %3358 = vmatpush1.msra.mxu0 0.0
    %3359 = vmatprep.subr.mxu0 0.0
    %3360 = vmatpush1.msra.mxu0 0.0
    %3361 = vmatprep.subr.mxu0 0.0
    %3362 = vmatpush1.msra.mxu0 0.0
    %3363 = vmatprep.subr.mxu0 0.0
    %3364 = vmatpush1.msra.mxu0 0.0
    %3365 = vmatprep.subr.mxu0 0.0
    %3366 = vmatpush1.msra.mxu0 0.0
    %3367 = vmatprep.subr.mxu0 0.0
    %3368 = vmatpush1.msra.mxu0 0.0
    %3369 = vmatprep.subr.mxu0 0.0
    %3370 = vmatpush1.msra.mxu0 0.0
    %3371 = vmatprep.subr.mxu0 0.0
    %3372 = vmatpush1.msra.mxu0 0.0
    %3373 = vmatprep.subr.mxu0 0.0
    %3374 = vmatpush1.msra.mxu0 0.0
    %3375 = vmatprep.subr.mxu0 0.0
    %3376 = vmatpush1.msra.mxu0 0.0
    %3377 = vmatprep.subr.mxu0 0.0
    %3378 = vmatpush1.msra.mxu0 0.0
    %3379 = vmatprep.subr.mxu0 0.0
    %3380 = vmatpush1.msra.mxu0 0.0
    %3381 = vmatprep.subr.mxu0 0.0
    %3382 = vmatpush1.msra.mxu0 0.0
    %3383 = vmatprep.subr.mxu0 0.0
    %3384 = vmatpush1.msra.mxu0 0.0
    %3385 = vmatprep.subr.mxu0 0.0
    %3386 = vmatpush1.msra.mxu0 0.0
    %3387 = vmatprep.subr.mxu0 0.0
    %3388 = vmatpush1.msra.mxu0 0.0
    %3389 = vmatprep.mubr.f32.mxu0 0.0
    %3390 = vmatmul.mubr.f32.gmra.mrb[0].mxu0 %v3323
    %v3391 = vpop.f32.mrb[0].mxu0
    %v3392 = vadd.f32 %v3319, %v3391
    %v3393 = vpop.f32.mrb[0].mxu0
    %3394 = vdwg.mxu0
    %s3395 = scalar_lea.vmem %s12, 4
    %v3396 = vld [vmem:[%s3395] sm:$0x3]
    %v3398 = vsel %vm2423, %v3396, 0
    %3400 = vmatprep.subr.mxu0 0.0
    %3401 = vmatpush1.msra.mxu0 %v3096
    %3402 = vmatprep.subr.mxu0 0.0
    %3403 = vmatpush1.msra.mxu0 0.0
    %3404 = vmatprep.subr.mxu0 0.0
    %3405 = vmatpush1.msra.mxu0 0.0
    %3406 = vmatprep.subr.mxu0 0.0
    %3407 = vmatpush1.msra.mxu0 0.0
    %3408 = vmatprep.subr.mxu0 0.0
    %3409 = vmatpush1.msra.mxu0 0.0
    %3410 = vmatprep.subr.mxu0 0.0
    %3411 = vmatpush1.msra.mxu0 0.0
    %3412 = vmatprep.subr.mxu0 0.0
    %3413 = vmatpush1.msra.mxu0 0.0
    %3414 = vmatprep.subr.mxu0 0.0
    %3415 = vmatpush1.msra.mxu0 0.0
    %3416 = vmatprep.subr.mxu0 0.0
    %3417 = vmatpush1.msra.mxu0 0.0
    %3418 = vmatprep.subr.mxu0 0.0
    %3419 = vmatpush1.msra.mxu0 0.0
    %3420 = vmatprep.subr.mxu0 0.0
    %3421 = vmatpush1.msra.mxu0 0.0
    %3422 = vmatprep.subr.mxu0 0.0
    %3423 = vmatpush1.msra.mxu0 0.0
    %3424 = vmatprep.subr.mxu0 0.0
    %3425 = vmatpush1.msra.mxu0 0.0
    %3426 = vmatprep.subr.mxu0 0.0
    %3427 = vmatpush1.msra.mxu0 0.0
    %3428 = vmatprep.subr.mxu0 0.0
    %3429 = vmatpush1.msra.mxu0 0.0
    %3430 = vmatprep.subr.mxu0 0.0
    %3431 = vmatpush1.msra.mxu0 0.0
    %3432 = vmatprep.subr.mxu0 0.0
    %3433 = vmatpush1.msra.mxu0 0.0
    %3434 = vmatprep.subr.mxu0 0.0
    %3435 = vmatpush1.msra.mxu0 0.0
    %3436 = vmatprep.subr.mxu0 0.0
    %3437 = vmatpush1.msra.mxu0 0.0
    %3438 = vmatprep.subr.mxu0 0.0
    %3439 = vmatpush1.msra.mxu0 0.0
    %3440 = vmatprep.subr.mxu0 0.0
    %3441 = vmatpush1.msra.mxu0 0.0
    %3442 = vmatprep.subr.mxu0 0.0
    %3443 = vmatpush1.msra.mxu0 0.0
    %3444 = vmatprep.subr.mxu0 0.0
    %3445 = vmatpush1.msra.mxu0 0.0
    %3446 = vmatprep.subr.mxu0 0.0
    %3447 = vmatpush1.msra.mxu0 0.0
    %3448 = vmatprep.subr.mxu0 0.0
    %3449 = vmatpush1.msra.mxu0 0.0
    %3450 = vmatprep.subr.mxu0 0.0
    %3451 = vmatpush1.msra.mxu0 0.0
    %3452 = vmatprep.subr.mxu0 0.0
    %3453 = vmatpush1.msra.mxu0 0.0
    %3454 = vmatprep.subr.mxu0 0.0
    %3455 = vmatpush1.msra.mxu0 0.0
    %3456 = vmatprep.subr.mxu0 0.0
    %3457 = vmatpush1.msra.mxu0 0.0
    %3458 = vmatprep.subr.mxu0 0.0
    %3459 = vmatpush1.msra.mxu0 0.0
    %3460 = vmatprep.subr.mxu0 0.0
    %3461 = vmatpush1.msra.mxu0 0.0
    %3462 = vmatprep.subr.mxu0 0.0
    %3463 = vmatpush1.msra.mxu0 0.0
    %3464 = vmatprep.mubr.f32.mxu0 0.0
    %3465 = vmatmul.mubr.f32.gmra.mrb[0].mxu0 %v3398
    %v3466 = vpop.f32.mrb[0].mxu0
    %v3467 = vadd.f32 0.0, %v3466
    %v3468 = vpop.f32.mrb[0].mxu0
    %3469 = vdwg.mxu0
    %s3470 = scalar_lea.vmem %s11, 16
    %v3471 = vld [vmem:[%s3470] sm:$0xff]
    %v3473 = vsel %vm2423, %v3467, 0
    %3475 = vmatprep.subr.mxu0 0.0
    %3476 = vmatpush1.msra.mxu0 %v3471
    %3477 = vmatprep.subr.mxu0 0.0
    %3478 = vmatpush1.msra.mxu0 0.0
    %3479 = vmatprep.subr.mxu0 0.0
    %3480 = vmatpush1.msra.mxu0 0.0
    %3481 = vmatprep.subr.mxu0 0.0
    %3482 = vmatpush1.msra.mxu0 0.0
    %3483 = vmatprep.subr.mxu0 0.0
    %3484 = vmatpush1.msra.mxu0 0.0
    %3485 = vmatprep.subr.mxu0 0.0
    %3486 = vmatpush1.msra.mxu0 0.0
    %3487 = vmatprep.subr.mxu0 0.0
    %3488 = vmatpush1.msra.mxu0 0.0
    %3489 = vmatprep.subr.mxu0 0.0
    %3490 = vmatpush1.msra.mxu0 0.0
    %3491 = vmatprep.subr.mxu0 0.0
    %3492 = vmatpush1.msra.mxu0 0.0
    %3493 = vmatprep.subr.mxu0 0.0
    %3494 = vmatpush1.msra.mxu0 0.0
    %3495 = vmatprep.subr.mxu0 0.0
    %3496 = vmatpush1.msra.mxu0 0.0
    %3497 = vmatprep.subr.mxu0 0.0
    %3498 = vmatpush1.msra.mxu0 0.0
    %3499 = vmatprep.subr.mxu0 0.0
    %3500 = vmatpush1.msra.mxu0 0.0
    %3501 = vmatprep.subr.mxu0 0.0
    %3502 = vmatpush1.msra.mxu0 0.0
    %3503 = vmatprep.subr.mxu0 0.0
    %3504 = vmatpush1.msra.mxu0 0.0
    %3505 = vmatprep.subr.mxu0 0.0
    %3506 = vmatpush1.msra.mxu0 0.0
    %3507 = vmatprep.subr.mxu0 0.0
    %3508 = vmatpush1.msra.mxu0 0.0
    %3509 = vmatprep.subr.mxu0 0.0
    %3510 = vmatpush1.msra.mxu0 0.0
    %3511 = vmatprep.subr.mxu0 0.0
    %3512 = vmatpush1.msra.mxu0 0.0
    %3513 = vmatprep.subr.mxu0 0.0
    %3514 = vmatpush1.msra.mxu0 0.0
    %3515 = vmatprep.subr.mxu0 0.0
    %3516 = vmatpush1.msra.mxu0 0.0
    %3517 = vmatprep.subr.mxu0 0.0
    %3518 = vmatpush1.msra.mxu0 0.0
    %3519 = vmatprep.subr.mxu0 0.0
    %3520 = vmatpush1.msra.mxu0 0.0
    %3521 = vmatprep.subr.mxu0 0.0
    %3522 = vmatpush1.msra.mxu0 0.0
    %3523 = vmatprep.subr.mxu0 0.0
    %3524 = vmatpush1.msra.mxu0 0.0
    %3525 = vmatprep.subr.mxu0 0.0
    %3526 = vmatpush1.msra.mxu0 0.0
    %3527 = vmatprep.subr.mxu0 0.0
    %3528 = vmatpush1.msra.mxu0 0.0
    %3529 = vmatprep.subr.mxu0 0.0
    %3530 = vmatpush1.msra.mxu0 0.0
    %3531 = vmatprep.subr.mxu0 0.0
    %3532 = vmatpush1.msra.mxu0 0.0
    %3533 = vmatprep.subr.mxu0 0.0
    %3534 = vmatpush1.msra.mxu0 0.0
    %3535 = vmatprep.subr.mxu0 0.0
    %3536 = vmatpush1.msra.mxu0 0.0
    %3537 = vmatprep.subr.mxu0 0.0
    %3538 = vmatpush1.msra.mxu0 0.0
    %3539 = vmatprep.mubr.f32.mxu0 0.0
    %3540 = vmatmul.mubr.f32.gmra.mrb[0].mxu0 %v3473
    %v3541 = vpop.f32.mrb[0].mxu0
    %v3542 = vadd.f32 0.0, %v3541
    %v3543 = vpop.f32.mrb[0].mxu0
    %3544 = vdwg.mxu0
    %v3545 = vadd.f32 %v3392, %v3542
    %s3546 = scalar_lea.vmem %s12, 6
    %v3547 = vld [vmem:[%s3546] sm:$0x3]
    %v3549 = vsel %vm2423, %v3547, 0
    %3551 = vmatprep.subr.mxu0 0.0
    %3552 = vmatpush1.msra.mxu0 %v3096
    %3553 = vmatprep.subr.mxu0 0.0
    %3554 = vmatpush1.msra.mxu0 0.0
    %3555 = vmatprep.subr.mxu0 0.0
    %3556 = vmatpush1.msra.mxu0 0.0
    %3557 = vmatprep.subr.mxu0 0.0
    %3558 = vmatpush1.msra.mxu0 0.0
    %3559 = vmatprep.subr.mxu0 0.0
    %3560 = vmatpush1.msra.mxu0 0.0
    %3561 = vmatprep.subr.mxu0 0.0
    %3562 = vmatpush1.msra.mxu0 0.0
    %3563 = vmatprep.subr.mxu0 0.0
    %3564 = vmatpush1.msra.mxu0 0.0
    %3565 = vmatprep.subr.mxu0 0.0
    %3566 = vmatpush1.msra.mxu0 0.0
    %3567 = vmatprep.subr.mxu0 0.0
    %3568 = vmatpush1.msra.mxu0 0.0
    %3569 = vmatprep.subr.mxu0 0.0
    %3570 = vmatpush1.msra.mxu0 0.0
    %3571 = vmatprep.subr.mxu0 0.0
    %3572 = vmatpush1.msra.mxu0 0.0
    %3573 = vmatprep.subr.mxu0 0.0
    %3574 = vmatpush1.msra.mxu0 0.0
    %3575 = vmatprep.subr.mxu0 0.0
    %3576 = vmatpush1.msra.mxu0 0.0
    %3577 = vmatprep.subr.mxu0 0.0
    %3578 = vmatpush1.msra.mxu0 0.0
    %3579 = vmatprep.subr.mxu0 0.0
    %3580 = vmatpush1.msra.mxu0 0.0
    %3581 = vmatprep.subr.mxu0 0.0
    %3582 = vmatpush1.msra.mxu0 0.0
    %3583 = vmatprep.subr.mxu0 0.0
    %3584 = vmatpush1.msra.mxu0 0.0
    %3585 = vmatprep.subr.mxu0 0.0
    %3586 = vmatpush1.msra.mxu0 0.0
    %3587 = vmatprep.subr.mxu0 0.0
    %3588 = vmatpush1.msra.mxu0 0.0
    %3589 = vmatprep.subr.mxu0 0.0
    %3590 = vmatpush1.msra.mxu0 0.0
    %3591 = vmatprep.subr.mxu0 0.0
    %3592 = vmatpush1.msra.mxu0 0.0
    %3593 = vmatprep.subr.mxu0 0.0
    %3594 = vmatpush1.msra.mxu0 0.0
    %3595 = vmatprep.subr.mxu0 0.0
    %3596 = vmatpush1.msra.mxu0 0.0
    %3597 = vmatprep.subr.mxu0 0.0
    %3598 = vmatpush1.msra.mxu0 0.0
    %3599 = vmatprep.subr.mxu0 0.0
    %3600 = vmatpush1.msra.mxu0 0.0
    %3601 = vmatprep.subr.mxu0 0.0
    %3602 = vmatpush1.msra.mxu0 0.0
    %3603 = vmatprep.subr.mxu0 0.0
    %3604 = vmatpush1.msra.mxu0 0.0
    %3605 = vmatprep.subr.mxu0 0.0
    %3606 = vmatpush1.msra.mxu0 0.0
    %3607 = vmatprep.subr.mxu0 0.0
    %3608 = vmatpush1.msra.mxu0 0.0
    %3609 = vmatprep.subr.mxu0 0.0
    %3610 = vmatpush1.msra.mxu0 0.0
    %3611 = vmatprep.subr.mxu0 0.0
    %3612 = vmatpush1.msra.mxu0 0.0
    %3613 = vmatprep.subr.mxu0 0.0
    %3614 = vmatpush1.msra.mxu0 0.0
    %3615 = vmatprep.mubr.f32.mxu0 0.0
    %3616 = vmatmul.mubr.f32.gmra.mrb[0].mxu0 %v3549
    %v3617 = vpop.f32.mrb[0].mxu0
    %v3618 = vadd.f32 0.0, %v3617
    %v3619 = vpop.f32.mrb[0].mxu0
    %3620 = vdwg.mxu0
    %s3621 = scalar_lea.vmem %s11, 24
    %v3622 = vld [vmem:[%s3621] sm:$0xff]
    %v3624 = vsel %vm2423, %v3618, 0
    %3626 = vmatprep.subr.mxu0 0.0
    %3627 = vmatpush1.msra.mxu0 %v3622
    %3628 = vmatprep.subr.mxu0 0.0
    %3629 = vmatpush1.msra.mxu0 0.0
    %3630 = vmatprep.subr.mxu0 0.0
    %3631 = vmatpush1.msra.mxu0 0.0
    %3632 = vmatprep.subr.mxu0 0.0
    %3633 = vmatpush1.msra.mxu0 0.0
    %3634 = vmatprep.subr.mxu0 0.0
    %3635 = vmatpush1.msra.mxu0 0.0
    %3636 = vmatprep.subr.mxu0 0.0
    %3637 = vmatpush1.msra.mxu0 0.0
    %3638 = vmatprep.subr.mxu0 0.0
    %3639 = vmatpush1.msra.mxu0 0.0
    %3640 = vmatprep.subr.mxu0 0.0
    %3641 = vmatpush1.msra.mxu0 0.0
    %3642 = vmatprep.subr.mxu0 0.0
    %3643 = vmatpush1.msra.mxu0 0.0
    %3644 = vmatprep.subr.mxu0 0.0
    %3645 = vmatpush1.msra.mxu0 0.0
    %3646 = vmatprep.subr.mxu0 0.0
    %3647 = vmatpush1.msra.mxu0 0.0
    %3648 = vmatprep.subr.mxu0 0.0
    %3649 = vmatpush1.msra.mxu0 0.0
    %3650 = vmatprep.subr.mxu0 0.0
    %3651 = vmatpush1.msra.mxu0 0.0
    %3652 = vmatprep.subr.mxu0 0.0
    %3653 = vmatpush1.msra.mxu0 0.0
    %3654 = vmatprep.subr.mxu0 0.0
    %3655 = vmatpush1.msra.mxu0 0.0
    %3656 = vmatprep.subr.mxu0 0.0
    %3657 = vmatpush1.msra.mxu0 0.0
    %3658 = vmatprep.subr.mxu0 0.0
    %3659 = vmatpush1.msra.mxu0 0.0
    %3660 = vmatprep.subr.mxu0 0.0
    %3661 = vmatpush1.msra.mxu0 0.0
    %3662 = vmatprep.subr.mxu0 0.0
    %3663 = vmatpush1.msra.mxu0 0.0
    %3664 = vmatprep.subr.mxu0 0.0
    %3665 = vmatpush1.msra.mxu0 0.0
    %3666 = vmatprep.subr.mxu0 0.0
    %3667 = vmatpush1.msra.mxu0 0.0
    %3668 = vmatprep.subr.mxu0 0.0
    %3669 = vmatpush1.msra.mxu0 0.0
    %3670 = vmatprep.subr.mxu0 0.0
    %3671 = vmatpush1.msra.mxu0 0.0
    %3672 = vmatprep.subr.mxu0 0.0
    %3673 = vmatpush1.msra.mxu0 0.0
    %3674 = vmatprep.subr.mxu0 0.0
    %3675 = vmatpush1.msra.mxu0 0.0
    %3676 = vmatprep.subr.mxu0 0.0
    %3677 = vmatpush1.msra.mxu0 0.0
    %3678 = vmatprep.subr.mxu0 0.0
    %3679 = vmatpush1.msra.mxu0 0.0
    %3680 = vmatprep.subr.mxu0 0.0
    %3681 = vmatpush1.msra.mxu0 0.0
    %3682 = vmatprep.subr.mxu0 0.0
    %3683 = vmatpush1.msra.mxu0 0.0
    %3684 = vmatprep.subr.mxu0 0.0
    %3685 = vmatpush1.msra.mxu0 0.0
    %3686 = vmatprep.subr.mxu0 0.0
    %3687 = vmatpush1.msra.mxu0 0.0
    %3688 = vmatprep.subr.mxu0 0.0
    %3689 = vmatpush1.msra.mxu0 0.0
    %3690 = vmatprep.mubr.f32.mxu0 0.0
    %3691 = vmatmul.mubr.f32.gmra.mrb[0].mxu0 %v3624
    %v3692 = vpop.f32.mrb[0].mxu0
    %v3693 = vadd.f32 0.0, %v3692
    %v3694 = vpop.f32.mrb[0].mxu0
    %3695 = vdwg.mxu0
    %v3696 = vadd.f32 %v3545, %v3693
    %v3697 = vld [vmem:[%s13 + $0xe] sm:$0x1]
    %v3699 = vlaneseq
    %v3700 = vshrl.u32 %v3699, 7
    %v3701 = vsub.s32 0, %v3700
    %v3702 = vrot.slane %v3697, %v3701
    %v3704 = vadd.f32 %v3696, %v3702
    %3705 = vst [vmem:[#allocation2] sm:$0x3] %v3704
    // Predicated region
    $region58: #{tpu_custom_call.1} parent=1 // pred_check
      _
    $region59: #{tpu_custom_call.1} parent=1 // pred_check_branch
      %3707 = sbr.rel (0) target = $region61
    $region60: #{tpu_custom_call.1} parent=1 // pred_region
      %s3709 = ssub.s32 32, 32
      %3710 = vsyncadd [#allocation3], %s3709
      %s3712 = sshll.u32 [#allocation2], 4
      %s3713 = int_to_ptr.vmem [resolvable:$true] %s3712
      %3715 = dma.vmem_to_hbm [thread:$0]  %s3713, 32, %s14, [#allocation3]
    $region61: #{tpu_custom_call.1} parent=1 // pred_fallthru
      _
    // Predicated region
    $region62: #{tpu_custom_call.1} parent=1 // pred_check
      _
    $region63: #{tpu_custom_call.1} parent=1 // pred_check_branch
      %3717 = sbr.rel (0) target = $region65
    $region64: #{tpu_custom_call.1} parent=1 // pred_region
      %3718 = dma.done [#allocation3], 32
    $region65: #{tpu_custom_call.1} parent=1 // pred_fallthru
      _
    %3719 = vsyncpa [#allocation3], 1

</llo_original>
